<compile_context>
chip_gen: v6e
topology: v6e:2x2x1
jax: 0.10.0
libtpu: 0.0.40
codegen_flags: <defaults>
</compile_context>

<pallas_src>
import math
import functools

import jax
import jax.numpy as jnp
from jax.experimental import pallas as pl
from jax.experimental.pallas import tpu as pltpu

NEG_INF = 1.0e9   # same constant the reference uses as "inf"
LN_EPS = 1e-5     # torch.nn.LayerNorm default eps

# Matmul-operand dtype. Flip to jnp.bfloat16 to halve HBM weight traffic and
# roughly double MXU throughput (accumulation stays f32 via
# preferred_element_type); kept f32 here for exact parity with the f32 PyTorch
# reference.
MATMUL_DTYPE = jnp.float32


# ----------------------------------------------------------------------------
# In-kernel helpers (traced inside the Pallas kernel)
# ----------------------------------------------------------------------------
def _mm(a, b):
    """MXU matmul with f32 accumulation."""
    return jnp.dot(a.astype(MATMUL_DTYPE), b.astype(MATMUL_DTYPE),
                   preferred_element_type=jnp.float32)


def _layernorm(x):
    """LayerNorm over the last dim, elementwise_affine=False (matches ref)."""
    mu = jnp.mean(x, axis=-1, keepdims=True)
    var = jnp.mean(jnp.square(x - mu), axis=-1, keepdims=True)
    return (x - mu) * jax.lax.rsqrt(var + LN_EPS)


def _mha_heads(q, k, v, mask, n_head, qk_ch, v_ch, scale):
    """Multi-head attention on 2-D [rows, H*ch] projections.

    Heads are a short static unroll (H is small) over lane slices, which avoids
    materializing any [B, H, N, ch] transpose between kernels.
    """
    outs = []
    for h in range(n_head):
        qh = q[:, h * qk_ch:(h + 1) * qk_ch]          # (Nq, qk)
        kh = k[:, h * qk_ch:(h + 1) * qk_ch]          # (Nk, qk)
        vh = v[:, h * v_ch:(h + 1) * v_ch]            # (Nk, v)
        # q @ k^T without materializing a transpose.
        s = jax.lax.dot_general(qh, kh, (((1,), (1,)), ((), ())),
                                preferred_element_type=jnp.float32)
        s = s * scale + mask                          # (Nq, Nk) additive mask
        s = s - jnp.max(s, axis=-1, keepdims=True)
        p = jnp.exp(s)
        # Denominator via EUP approximate reciprocal; normalization deferred
        # to the (Nq, v) output.
        inv_l = pl.reciprocal(jnp.sum(p, axis=-1, keepdims=True), approx=True)
        oh = _mm(p, vh) * inv_l                       # (Nq, v)
        outs.append(oh)
    return jnp.concatenate(outs, axis=-1)             # (Nq, H*v)


# ----------------------------------------------------------------------------
# Fully fused decoder-stack + final-fc kernel
#   grid = (batch, layer); layer is the inner "arbitrary" axis.
#   x_state (VMEM scratch) carries the decoder hidden state across layers.
# ----------------------------------------------------------------------------
def _decoder_stack_kernel(x_ref, enc_ref, mself_ref, menc_ref,
                          wqkv_s_ref, wo_s_ref,
                          wq_c_ref, wkv_c_ref, wo_c_ref,
                          w1_ref, w2_ref,
                          fcw_ref, fcb_ref,
                          o_ref, x_state,
                          *, n_head, qk_ch, v_ch):
    l = pl.program_id(1)
    scale = 1.0 / math.sqrt(qk_ch)
    hqk = n_head * qk_ch
    hv = n_head * v_ch

    # Load the embedded decoder input once per batch element.
    @pl.when(l == 0)
    def _():
        x_state[...] = x_ref[...]

    x = x_state[...]        # (Nd, d)  decoder stream
    enc = enc_ref[...]      # (Ne, d)  encoder output

    # ------------- self attention (MutiHeadAttention, feedforward=False) -----
    qkv = _mm(x, wqkv_s_ref[...])                     # (Nd, 2*hqk + hv)
    q = qkv[:, :hqk]
    k = qkv[:, hqk:2 * hqk]
    v = qkv[:, 2 * hqk:]
    attn = _mha_heads(q, k, v, mself_ref[...], n_head, qk_ch, v_ch, scale)
    x = _layernorm(x + _mm(attn, wo_s_ref[...]))      # norm1(query + out)

    # ------------- cross attention (feedforward=True) -------------------------
    q = _mm(x, wq_c_ref[...])                         # (Nd, hqk)
    kv = _mm(enc, wkv_c_ref[...])                     # (Ne, hqk + hv)
    k = kv[:, :hqk]
    v = kv[:, hqk:]
    attn = _mha_heads(q, k, v, menc_ref[...], n_head, qk_ch, v_ch, scale)
    x = _layernorm(x + _mm(attn, wo_c_ref[...]))      # norm1(query + out)

    # ------------- feedforward (hidden stays in VMEM, no HBM round-trip) ------
    h = jnp.maximum(_mm(x, w1_ref[...]), 0.0)         # (Nd, mid)
    x = _layernorm(x + _mm(h, w2_ref[...]))           # norm2(out + FF(out))

    x_state[...] = x

    # ------------- final fc, applied only once after the last layer -----------
    @pl.when(l == pl.num_programs(1) - 1)
    def _():
        o_ref[...] = (_mm(x, fcw_ref[...]) + fcb_ref[...]).astype(o_ref.dtype)


def decoder_stack_fc(x, enc, mask_self, mask_enc, params, n_head, qk_ch, v_ch):
    """Single pallas_call for the whole decoder stack + final fc."""
    B, Nd, d = x.shape
    Ne = enc.shape[1]
    L = params["Wqkv_self"].shape[0]
    out_pad = params["fc_w"].shape[1]

    kernel = functools.partial(_decoder_stack_kernel,
                               n_head=n_head, qk_ch=qk_ch, v_ch=v_ch)

    layer_ws = (params["Wqkv_self"], params["Wo_self"],
                params["WQ_enc"], params["Wkv_enc"], params["Wo_enc"],
                params["W1"], params["W2"])
    # Layer-indexed weight blocks: prefetched (double-buffered) along the
    # inner layer axis while the current layer computes.
    layer_specs = [pl.BlockSpec((None,) + w.shape[1:], lambda b, l: (l, 0, 0))
                   for w in layer_ws]
    const_ws = (params["fc_w"], params["fc_b"])
    # Grid-invariant blocks: stay resident in VMEM for the whole call.
    const_specs = [pl.BlockSpec(w.shape, lambda b, l: (0, 0)) for w in const_ws]

    return pl.pallas_call(
        kernel,
        out_shape=jax.ShapeDtypeStruct((B, Nd, out_pad), jnp.float32),
        grid=(B, L),
        in_specs=[
            pl.BlockSpec((None, Nd, d), lambda b, l: (b, 0, 0)),    # x (embedded)
            pl.BlockSpec((None, Ne, d), lambda b, l: (b, 0, 0)),    # encoder_out
            pl.BlockSpec((None, Nd, Nd), lambda b, l: (b, 0, 0)),   # self mask
            pl.BlockSpec((None, Nd, Ne), lambda b, l: (b, 0, 0)),   # enc mask
        ] + layer_specs + const_specs,
        out_specs=pl.BlockSpec((None, Nd, out_pad), lambda b, l: (b, 0, 0)),
        scratch_shapes=[pltpu.VMEM((Nd, d), jnp.float32)],          # x state
        compiler_params=pltpu.CompilerParams(
            dimension_semantics=("parallel", "arbitrary"),
            # ~per-layer weights + tiny activations, double-buffered; 32 MiB is
            # safe on v5e/v6e (128 MiB physical) and v7x (64 MiB physical).
            vmem_limit_bytes=32 * 1024 * 1024,
        ),
    )(x, enc, mask_self, mask_enc, *layer_ws, *const_ws)


# ----------------------------------------------------------------------------
# Model glue (plain JAX): masks, embedding, positional encoding, orchestration
# ----------------------------------------------------------------------------
def get_mask(seq1, seq2, pad_num):
    m1 = (seq1 == pad_num)[:, :, None]
    m2 = (seq2 == pad_num)[:, None, :]
    return (m1 | m2).astype(jnp.float32) * (-NEG_INF)


def get_decoder_mask(seq, pad_num):
    n = seq.shape[1]
    m = get_mask(seq, seq, pad_num)
    causal = jnp.triu(jnp.ones((n, n), jnp.float32), 1) * (-NEG_INF)
    m = m + causal[None, :, :]
    return jnp.where(m != 0, -NEG_INF, 0.0)


def make_positional_encoding(max_len, d):
    position = jnp.arange(max_len, dtype=jnp.float32)[:, None]
    div_term = jnp.exp(jnp.arange(0, d, 2, dtype=jnp.float32)
                       * (-math.log(10000.0) / d))
    pe = jnp.zeros((max_len, d), jnp.float32)
    pe = pe.at[:, 0::2].set(jnp.sin(position * div_term))
    pe = pe.at[:, 1::2].set(jnp.cos(position * div_term))
    return pe


@functools.partial(jax.jit,
                   static_argnames=("pad_num", "n_head", "qk_ch", "v_ch", "out_dim"))
def decoder_forward(params, decoder_inp, encoder_out, mask_encode, *,
                    pad_num, n_head, qk_ch, v_ch, out_dim):
    B, Nd = decoder_inp.shape

    mask_self = get_decoder_mask(decoder_inp, pad_num)

    x = jnp.take(params["emb"], decoder_inp, axis=0)          # [B, Nd, d]
    # PositionEncode: x.transpose(0,1) + pe[:N] then transpose back == add pe
    # along the sequence axis.
    x = x + params["pe"][:Nd][None, :, :]
    # TODO(synk): nn.Dropout(0.1) in PositionEncode is stochastic; identity here
    # (eval mode).

    out = decoder_stack_fc(x, encoder_out, mask_self, mask_encode, params,
                           n_head, qk_ch, v_ch)
    return out[:, :, :out_dim]                                # drop lane padding


# ----------------------------------------------------------------------------
# Deterministic parameter init (synthetic, not a checkpoint load)
# ----------------------------------------------------------------------------
def init_params(key, voc_size, out_dim, d, n_decoder, n_head, qk_ch, v_ch, mid,
                max_len=5000):
    def nrm(k, shape, scale=0.02):
        return scale * jax.random.normal(k, shape, jnp.float32)

    keys = jax.random.split(key, 3 + n_decoder)
    out_pad = ((out_dim + 127) // 128) * 128
    hqk = qk_ch * n_head
    hv = v_ch * n_head

    fc_w = nrm(keys[1], (d, out_dim))
    fc_b = nrm(keys[2], (1, out_dim))

    wqkv_s, wo_s, wq_c, wkv_c, wo_c, w1, w2 = ([] for _ in range(7))
    for i in range(n_decoder):
        ks = jax.random.split(keys[3 + i], 10)
        # Fused projection weights == concatenation of the reference WQ/WK/WV
        # (self-attn) and WK/WV (cross-attn) along the output dim.
        wqkv_s.append(jnp.concatenate(
            [nrm(ks[0], (d, hqk)), nrm(ks[1], (d, hqk)), nrm(ks[2], (d, hv))],
            axis=1))
        wo_s.append(nrm(ks[3], (hv, d)))
        wq_c.append(nrm(ks[4], (d, hqk)))
        wkv_c.append(jnp.concatenate(
            [nrm(ks[5], (d, hqk)), nrm(ks[6], (d, hv))], axis=1))
        wo_c.append(nrm(ks[7], (hv, d)))
        w1.append(nrm(ks[8], (d, mid)))
        w2.append(nrm(ks[9], (mid, d)))

    return {
        "emb": nrm(keys[0], (voc_size, d)),
        "pe": make_positional_encoding(max_len, d),
        # fc weight/bias zero-padded to a lane-dense width; extra columns are
        # sliced off after the kernel.
        "fc_w": jnp.zeros((d, out_pad), jnp.float32).at[:, :out_dim].set(fc_w),
        "fc_b": jnp.zeros((1, out_pad), jnp.float32).at[:, :out_dim].set(fc_b),
        # Per-layer weights stacked along a leading layer axis.
        "Wqkv_self": jnp.stack(wqkv_s),
        "Wo_self": jnp.stack(wo_s),
        "WQ_enc": jnp.stack(wq_c),
        "Wkv_enc": jnp.stack(wkv_c),
        "Wo_enc": jnp.stack(wo_c),
        "W1": jnp.stack(w1),
        "W2": jnp.stack(w2),
    }


# ----------------------------------------------------------------------------
# Demo
# ----------------------------------------------------------------------------
if __name__ == "__main__":
    # Small shapes consistent with the module (qk/v/mid are hardcoded in Decoder).
    B, Nd, Ne = 2, 8, 8
    voc_size, out_dim = 50, 16
    d, n_decoder, n_head = 128, 2, 4
    qk_ch, v_ch, mid = 64, 64, 2048
    pad_num = 0

    key = jax.random.PRNGKey(0)
    k_dec, k_enc_tok, k_enc_out, k_par = jax.random.split(key, 4)

    decoder_inp = jax.random.randint(k_dec, (B, Nd), 1, voc_size, dtype=jnp.int32)
    decoder_inp = decoder_inp.at[:, -2:].set(pad_num)          # some padding positions
    enc_tokens = jax.random.randint(k_enc_tok, (B, Ne), 1, voc_size, dtype=jnp.int32)
    enc_tokens = enc_tokens.at[:, -1:].set(pad_num)
    encoder_out = jax.random.normal(k_enc_out, (B, Ne, d), jnp.float32)

    mask_encode = get_mask(decoder_inp, enc_tokens, pad_num)   # [B, Nd, Ne]

    params = init_params(k_par, voc_size, out_dim, d, n_decoder, n_head,
                         qk_ch, v_ch, mid)

    out = decoder_forward(params, decoder_inp, encoder_out, mask_encode,
                          pad_num=pad_num, n_head=n_head, qk_ch=qk_ch,
                          v_ch=v_ch, out_dim=out_dim)
    jax.block_until_ready(out)
    assert out.shape == (B, Nd, out_dim)
    print("KERNEL_OK")
</pallas_src>

<mosaic_0001>
module attributes {stable_mosaic.version = 11 : i64} {
  func.func @_decoder_stack_kernel(%arg0: i32, %arg1: i32, %arg2: memref<1x8x128xf32, #tpu.memory_space<vmem>>, %arg3: memref<1x8x128xf32, #tpu.memory_space<vmem>>, %arg4: memref<1x8x8xf32, #tpu.memory_space<vmem>>, %arg5: memref<1x8x8xf32, #tpu.memory_space<vmem>>, %arg6: memref<1x128x768xf32, #tpu.memory_space<vmem>>, %arg7: memref<1x256x128xf32, #tpu.memory_space<vmem>>, %arg8: memref<1x128x256xf32, #tpu.memory_space<vmem>>, %arg9: memref<1x128x512xf32, #tpu.memory_space<vmem>>, %arg10: memref<1x256x128xf32, #tpu.memory_space<vmem>>, %arg11: memref<1x128x2048xf32, #tpu.memory_space<vmem>>, %arg12: memref<1x2048x128xf32, #tpu.memory_space<vmem>>, %arg13: memref<128x128xf32, #tpu.memory_space<vmem>>, %arg14: memref<1x128xf32, #tpu.memory_space<vmem>>, %arg15: memref<1x8x128xf32, #tpu.memory_space<vmem>>, %arg16: memref<8x128xf32, #tpu.memory_space<vmem>>) attributes {dimension_semantics = [#tpu.dimension_semantics<parallel>, #tpu.dimension_semantics<arbitrary>], iteration_bounds = array<i64: 2, 2>, scalar_prefetch = 0 : i64, scratch_operands = 1 : i64, tpu.core_type = #tpu.core_type<tc>, window_params = [{transform_indices = @transform_0, window_bounds = array<i64: 1, 8, 128>}, {transform_indices = @transform_1, window_bounds = array<i64: 1, 8, 128>}, {transform_indices = @transform_2, window_bounds = array<i64: 1, 8, 8>}, {transform_indices = @transform_3, window_bounds = array<i64: 1, 8, 8>}, {transform_indices = @transform_4, window_bounds = array<i64: 1, 128, 768>}, {transform_indices = @transform_5, window_bounds = array<i64: 1, 256, 128>}, {transform_indices = @transform_6, window_bounds = array<i64: 1, 128, 256>}, {transform_indices = @transform_7, window_bounds = array<i64: 1, 128, 512>}, {transform_indices = @transform_8, window_bounds = array<i64: 1, 256, 128>}, {transform_indices = @transform_9, window_bounds = array<i64: 1, 128, 2048>}, {transform_indices = @transform_10, window_bounds = array<i64: 1, 2048, 128>}, {pipeline_mode = #tpu.pipeline_mode<synchronous>, transform_indices = @transform_11, window_bounds = array<i64: 128, 128>}, {pipeline_mode = #tpu.pipeline_mode<synchronous>, transform_indices = @transform_12, window_bounds = array<i64: 1, 128>}, {transform_indices = @transform_13, window_bounds = array<i64: 1, 8, 128>}]} {
    %c0_i32 = arith.constant 0 : i32
    %0 = arith.cmpi eq, %arg1, %c0_i32 : i32
    %1 = arith.extui %0 : i1 to i32
    %c0_i32_0 = arith.constant 0 : i32
    %2 = arith.cmpi ne, %1, %c0_i32_0 : i32
    scf.if %2 {
      %c0_97 = arith.constant 0 : index
      %c0_98 = arith.constant 0 : index
      %c0_99 = arith.constant 0 : index
      %245 = vector.load %arg2[%c0_97, %c0_98, %c0_99] : memref<1x8x128xf32, #tpu.memory_space<vmem>>, vector<1x8x128xf32>
      %246 = vector.shape_cast %245 : vector<1x8x128xf32> to vector<8x128xf32>
      %c0_100 = arith.constant 0 : index
      %c0_101 = arith.constant 0 : index
      %247 = vector.load %arg16[%c0_100, %c0_101] : memref<8x128xf32, #tpu.memory_space<vmem>>, vector<8x128xf32>
      tpu.vector_store %arg16[%c0_100, %c0_101], %246 {strides = array<i32>} : memref<8x128xf32, #tpu.memory_space<vmem>>, vector<8x128xf32>,
    } else {
    }
    %c0 = arith.constant 0 : index
    %c0_1 = arith.constant 0 : index
    %3 = vector.load %arg16[%c0, %c0_1] : memref<8x128xf32, #tpu.memory_space<vmem>>, vector<8x128xf32>
    %c0_2 = arith.constant 0 : index
    %c0_3 = arith.constant 0 : index
    %c0_4 = arith.constant 0 : index
    %4 = vector.load %arg3[%c0_2, %c0_3, %c0_4] : memref<1x8x128xf32, #tpu.memory_space<vmem>>, vector<1x8x128xf32>
    %5 = vector.shape_cast %4 : vector<1x8x128xf32> to vector<8x128xf32>
    %c0_5 = arith.constant 0 : index
    %c0_6 = arith.constant 0 : index
    %c0_7 = arith.constant 0 : index
    %6 = vector.load %arg6[%c0_5, %c0_6, %c0_7] : memref<1x128x768xf32, #tpu.memory_space<vmem>>, vector<1x128x768xf32>
    %7 = vector.shape_cast %6 : vector<1x128x768xf32> to vector<128x768xf32>
    %cst = arith.constant dense<0.000000e+00> : vector<8x768xf32>
    %8 = tpu.matmul %3, %7, %cst {dimension_numbers = #tpu.dot_dimension_numbers<[1], [0], [0], [1], [0, 0, 1, 1], [], []>} : vector<8x128xf32>, vector<128x768xf32>, vector<8x768xf32> -> vector<8x768xf32>
    %9 = vector.extract_strided_slice %8 {offsets = [0, 0], sizes = [8, 256], strides = [1, 1]} : vector<8x768xf32> to vector<8x256xf32>
    %10 = vector.extract_strided_slice %8 {offsets = [0, 256], sizes = [8, 256], strides = [1, 1]} : vector<8x768xf32> to vector<8x256xf32>
    %11 = vector.extract_strided_slice %8 {offsets = [0, 512], sizes = [8, 256], strides = [1, 1]} : vector<8x768xf32> to vector<8x256xf32>
    %c0_8 = arith.constant 0 : index
    %c0_9 = arith.constant 0 : index
    %c0_10 = arith.constant 0 : index
    %12 = vector.load %arg4[%c0_8, %c0_9, %c0_10] : memref<1x8x8xf32, #tpu.memory_space<vmem>>, vector<1x8x8xf32>
    %13 = vector.shape_cast %12 : vector<1x8x8xf32> to vector<8x8xf32>
    %14 = vector.extract_strided_slice %9 {offsets = [0, 0], sizes = [8, 64], strides = [1, 1]} : vector<8x256xf32> to vector<8x64xf32>
    %15 = vector.extract_strided_slice %10 {offsets = [0, 0], sizes = [8, 64], strides = [1, 1]} : vector<8x256xf32> to vector<8x64xf32>
    %16 = vector.extract_strided_slice %11 {offsets = [0, 0], sizes = [8, 64], strides = [1, 1]} : vector<8x256xf32> to vector<8x64xf32>
    %cst_11 = arith.constant dense<0.000000e+00> : vector<8x8xf32>
    %17 = tpu.matmul %14, %15, %cst_11 {dimension_numbers = #tpu.dot_dimension_numbers<[1], [1], [0], [0], [0, 0, 1, 0], [], []>} : vector<8x64xf32>, vector<8x64xf32>, vector<8x8xf32> -> vector<8x8xf32>
    %cst_12 = arith.constant 1.250000e-01 : f32
    %18 = vector.broadcast %cst_12 : f32 to vector<8x8xf32>
    %19 = arith.mulf %17, %18 : vector<8x8xf32>
    %20 = arith.addf %19, %13 : vector<8x8xf32>
    %cst_13 = arith.constant dense<0xFF800000> : vector<8xf32>
    %21 = vector.multi_reduction <maximumf>, %20, %cst_13 [1] : vector<8x8xf32> to vector<8xf32>
    %22 = vector.shape_cast %21 : vector<8xf32> to vector<8x1xf32>
    %23 = vector.broadcast %22 : vector<8x1xf32> to vector<8x8xf32>
    %24 = arith.subf %20, %23 : vector<8x8xf32>
    %25 = math.exp %24 : vector<8x8xf32>
    %cst_14 = arith.constant dense<0.000000e+00> : vector<8xf32>
    %26 = vector.multi_reduction <add>, %25, %cst_14 [1] : vector<8x8xf32> to vector<8xf32>
    %27 = vector.shape_cast %26 : vector<8xf32> to vector<8x1xf32>
    %28 = tpu.reciprocal %27 {approx = true} : vector<8x1xf32> -> vector<8x1xf32>
    %cst_15 = arith.constant dense<0.000000e+00> : vector<8x64xf32>
    %29 = tpu.matmul %25, %16, %cst_15 {dimension_numbers = #tpu.dot_dimension_numbers<[1], [0], [0], [1], [0, 0, 1, 1], [], []>} : vector<8x8xf32>, vector<8x64xf32>, vector<8x64xf32> -> vector<8x64xf32>
    %30 = vector.broadcast %28 : vector<8x1xf32> to vector<8x64xf32>
    %31 = arith.mulf %29, %30 : vector<8x64xf32>
    %32 = vector.extract_strided_slice %9 {offsets = [0, 64], sizes = [8, 64], strides = [1, 1]} : vector<8x256xf32> to vector<8x64xf32>
    %33 = vector.extract_strided_slice %10 {offsets = [0, 64], sizes = [8, 64], strides = [1, 1]} : vector<8x256xf32> to vector<8x64xf32>
    %34 = vector.extract_strided_slice %11 {offsets = [0, 64], sizes = [8, 64], strides = [1, 1]} : vector<8x256xf32> to vector<8x64xf32>
    %cst_16 = arith.constant dense<0.000000e+00> : vector<8x8xf32>
    %35 = tpu.matmul %32, %33, %cst_16 {dimension_numbers = #tpu.dot_dimension_numbers<[1], [1], [0], [0], [0, 0, 1, 0], [], []>} : vector<8x64xf32>, vector<8x64xf32>, vector<8x8xf32> -> vector<8x8xf32>
    %cst_17 = arith.constant 1.250000e-01 : f32
    %36 = vector.broadcast %cst_17 : f32 to vector<8x8xf32>
    %37 = arith.mulf %35, %36 : vector<8x8xf32>
    %38 = arith.addf %37, %13 : vector<8x8xf32>
    %cst_18 = arith.constant dense<0xFF800000> : vector<8xf32>
    %39 = vector.multi_reduction <maximumf>, %38, %cst_18 [1] : vector<8x8xf32> to vector<8xf32>
    %40 = vector.shape_cast %39 : vector<8xf32> to vector<8x1xf32>
    %41 = vector.broadcast %40 : vector<8x1xf32> to vector<8x8xf32>
    %42 = arith.subf %38, %41 : vector<8x8xf32>
    %43 = math.exp %42 : vector<8x8xf32>
    %cst_19 = arith.constant dense<0.000000e+00> : vector<8xf32>
    %44 = vector.multi_reduction <add>, %43, %cst_19 [1] : vector<8x8xf32> to vector<8xf32>
    %45 = vector.shape_cast %44 : vector<8xf32> to vector<8x1xf32>
    %46 = tpu.reciprocal %45 {approx = true} : vector<8x1xf32> -> vector<8x1xf32>
    %cst_20 = arith.constant dense<0.000000e+00> : vector<8x64xf32>
    %47 = tpu.matmul %43, %34, %cst_20 {dimension_numbers = #tpu.dot_dimension_numbers<[1], [0], [0], [1], [0, 0, 1, 1], [], []>} : vector<8x8xf32>, vector<8x64xf32>, vector<8x64xf32> -> vector<8x64xf32>
    %48 = vector.broadcast %46 : vector<8x1xf32> to vector<8x64xf32>
    %49 = arith.mulf %47, %48 : vector<8x64xf32>
    %50 = vector.extract_strided_slice %9 {offsets = [0, 128], sizes = [8, 64], strides = [1, 1]} : vector<8x256xf32> to vector<8x64xf32>
    %51 = vector.extract_strided_slice %10 {offsets = [0, 128], sizes = [8, 64], strides = [1, 1]} : vector<8x256xf32> to vector<8x64xf32>
    %52 = vector.extract_strided_slice %11 {offsets = [0, 128], sizes = [8, 64], strides = [1, 1]} : vector<8x256xf32> to vector<8x64xf32>
    %cst_21 = arith.constant dense<0.000000e+00> : vector<8x8xf32>
    %53 = tpu.matmul %50, %51, %cst_21 {dimension_numbers = #tpu.dot_dimension_numbers<[1], [1], [0], [0], [0, 0, 1, 0], [], []>} : vector<8x64xf32>, vector<8x64xf32>, vector<8x8xf32> -> vector<8x8xf32>
    %cst_22 = arith.constant 1.250000e-01 : f32
    %54 = vector.broadcast %cst_22 : f32 to vector<8x8xf32>
    %55 = arith.mulf %53, %54 : vector<8x8xf32>
    %56 = arith.addf %55, %13 : vector<8x8xf32>
    %cst_23 = arith.constant dense<0xFF800000> : vector<8xf32>
    %57 = vector.multi_reduction <maximumf>, %56, %cst_23 [1] : vector<8x8xf32> to vector<8xf32>
    %58 = vector.shape_cast %57 : vector<8xf32> to vector<8x1xf32>
    %59 = vector.broadcast %58 : vector<8x1xf32> to vector<8x8xf32>
    %60 = arith.subf %56, %59 : vector<8x8xf32>
    %61 = math.exp %60 : vector<8x8xf32>
    %cst_24 = arith.constant dense<0.000000e+00> : vector<8xf32>
    %62 = vector.multi_reduction <add>, %61, %cst_24 [1] : vector<8x8xf32> to vector<8xf32>
    %63 = vector.shape_cast %62 : vector<8xf32> to vector<8x1xf32>
    %64 = tpu.reciprocal %63 {approx = true} : vector<8x1xf32> -> vector<8x1xf32>
    %cst_25 = arith.constant dense<0.000000e+00> : vector<8x64xf32>
    %65 = tpu.matmul %61, %52, %cst_25 {dimension_numbers = #tpu.dot_dimension_numbers<[1], [0], [0], [1], [0, 0, 1, 1], [], []>} : vector<8x8xf32>, vector<8x64xf32>, vector<8x64xf32> -> vector<8x64xf32>
    %66 = vector.broadcast %64 : vector<8x1xf32> to vector<8x64xf32>
    %67 = arith.mulf %65, %66 : vector<8x64xf32>
    %68 = vector.extract_strided_slice %9 {offsets = [0, 192], sizes = [8, 64], strides = [1, 1]} : vector<8x256xf32> to vector<8x64xf32>
    %69 = vector.extract_strided_slice %10 {offsets = [0, 192], sizes = [8, 64], strides = [1, 1]} : vector<8x256xf32> to vector<8x64xf32>
    %70 = vector.extract_strided_slice %11 {offsets = [0, 192], sizes = [8, 64], strides = [1, 1]} : vector<8x256xf32> to vector<8x64xf32>
    %cst_26 = arith.constant dense<0.000000e+00> : vector<8x8xf32>
    %71 = tpu.matmul %68, %69, %cst_26 {dimension_numbers = #tpu.dot_dimension_numbers<[1], [1], [0], [0], [0, 0, 1, 0], [], []>} : vector<8x64xf32>, vector<8x64xf32>, vector<8x8xf32> -> vector<8x8xf32>
    %cst_27 = arith.constant 1.250000e-01 : f32
    %72 = vector.broadcast %cst_27 : f32 to vector<8x8xf32>
    %73 = arith.mulf %71, %72 : vector<8x8xf32>
    %74 = arith.addf %73, %13 : vector<8x8xf32>
    %cst_28 = arith.constant dense<0xFF800000> : vector<8xf32>
    %75 = vector.multi_reduction <maximumf>, %74, %cst_28 [1] : vector<8x8xf32> to vector<8xf32>
    %76 = vector.shape_cast %75 : vector<8xf32> to vector<8x1xf32>
    %77 = vector.broadcast %76 : vector<8x1xf32> to vector<8x8xf32>
    %78 = arith.subf %74, %77 : vector<8x8xf32>
    %79 = math.exp %78 : vector<8x8xf32>
    %cst_29 = arith.constant dense<0.000000e+00> : vector<8xf32>
    %80 = vector.multi_reduction <add>, %79, %cst_29 [1] : vector<8x8xf32> to vector<8xf32>
    %81 = vector.shape_cast %80 : vector<8xf32> to vector<8x1xf32>
    %82 = tpu.reciprocal %81 {approx = true} : vector<8x1xf32> -> vector<8x1xf32>
    %cst_30 = arith.constant dense<0.000000e+00> : vector<8x64xf32>
    %83 = tpu.matmul %79, %70, %cst_30 {dimension_numbers = #tpu.dot_dimension_numbers<[1], [0], [0], [1], [0, 0, 1, 1], [], []>} : vector<8x8xf32>, vector<8x64xf32>, vector<8x64xf32> -> vector<8x64xf32>
    %84 = vector.broadcast %82 : vector<8x1xf32> to vector<8x64xf32>
    %85 = arith.mulf %83, %84 : vector<8x64xf32>
    %86 = tpu.concatenate %31, %49, %67, %85 in 1 : vector<8x64xf32>, vector<8x64xf32>, vector<8x64xf32>, vector<8x64xf32> -> vector<8x256xf32>
    %c0_31 = arith.constant 0 : index
    %c0_32 = arith.constant 0 : index
    %c0_33 = arith.constant 0 : index
    %87 = vector.load %arg7[%c0_31, %c0_32, %c0_33] : memref<1x256x128xf32, #tpu.memory_space<vmem>>, vector<1x256x128xf32>
    %88 = vector.shape_cast %87 : vector<1x256x128xf32> to vector<256x128xf32>
    %cst_34 = arith.constant dense<0.000000e+00> : vector<8x128xf32>
    %89 = tpu.matmul %86, %88, %cst_34 {dimension_numbers = #tpu.dot_dimension_numbers<[1], [0], [0], [1], [0, 0, 1, 1], [], []>} : vector<8x256xf32>, vector<256x128xf32>, vector<8x128xf32> -> vector<8x128xf32>
    %90 = arith.addf %3, %89 : vector<8x128xf32>
    %cst_35 = arith.constant dense<0.000000e+00> : vector<8xf32>
    %91 = vector.multi_reduction <add>, %90, %cst_35 [1] : vector<8x128xf32> to vector<8xf32>
    %92 = vector.shape_cast %91 : vector<8xf32> to vector<8x1xf32>
    %cst_36 = arith.constant 1.280000e+02 : f32
    %93 = vector.broadcast %cst_36 : f32 to vector<8x1xf32>
    %94 = arith.divf %92, %93 : vector<8x1xf32>
    %95 = vector.broadcast %94 : vector<8x1xf32> to vector<8x128xf32>
    %96 = arith.subf %90, %95 : vector<8x128xf32>
    %97 = arith.mulf %96, %96 : vector<8x128xf32>
    %cst_37 = arith.constant dense<0.000000e+00> : vector<8xf32>
    %98 = vector.multi_reduction <add>, %97, %cst_37 [1] : vector<8x128xf32> to vector<8xf32>
    %99 = vector.shape_cast %98 : vector<8xf32> to vector<8x1xf32>
    %cst_38 = arith.constant 1.280000e+02 : f32
    %100 = vector.broadcast %cst_38 : f32 to vector<8x1xf32>
    %101 = arith.divf %99, %100 : vector<8x1xf32>
    %102 = vector.broadcast %94 : vector<8x1xf32> to vector<8x128xf32>
    %103 = arith.subf %90, %102 : vector<8x128xf32>
    %cst_39 = arith.constant 9.99999974E-6 : f32
    %104 = vector.broadcast %cst_39 : f32 to vector<8x1xf32>
    %105 = arith.addf %101, %104 : vector<8x1xf32>
    %106 = math.rsqrt %105 : vector<8x1xf32>
    %107 = vector.broadcast %106 : vector<8x1xf32> to vector<8x128xf32>
    %108 = arith.mulf %103, %107 : vector<8x128xf32>
    %c0_40 = arith.constant 0 : index
    %c0_41 = arith.constant 0 : index
    %c0_42 = arith.constant 0 : index
    %109 = vector.load %arg8[%c0_40, %c0_41, %c0_42] : memref<1x128x256xf32, #tpu.memory_space<vmem>>, vector<1x128x256xf32>
    %110 = vector.shape_cast %109 : vector<1x128x256xf32> to vector<128x256xf32>
    %cst_43 = arith.constant dense<0.000000e+00> : vector<8x256xf32>
    %111 = tpu.matmul %108, %110, %cst_43 {dimension_numbers = #tpu.dot_dimension_numbers<[1], [0], [0], [1], [0, 0, 1, 1], [], []>} : vector<8x128xf32>, vector<128x256xf32>, vector<8x256xf32> -> vector<8x256xf32>
    %c0_44 = arith.constant 0 : index
    %c0_45 = arith.constant 0 : index
    %c0_46 = arith.constant 0 : index
    %112 = vector.load %arg9[%c0_44, %c0_45, %c0_46] : memref<1x128x512xf32, #tpu.memory_space<vmem>>, vector<1x128x512xf32>
    %113 = vector.shape_cast %112 : vector<1x128x512xf32> to vector<128x512xf32>
    %cst_47 = arith.constant dense<0.000000e+00> : vector<8x512xf32>
    %114 = tpu.matmul %5, %113, %cst_47 {dimension_numbers = #tpu.dot_dimension_numbers<[1], [0], [0], [1], [0, 0, 1, 1], [], []>} : vector<8x128xf32>, vector<128x512xf32>, vector<8x512xf32> -> vector<8x512xf32>
    %115 = vector.extract_strided_slice %114 {offsets = [0, 0], sizes = [8, 256], strides = [1, 1]} : vector<8x512xf32> to vector<8x256xf32>
    %116 = vector.extract_strided_slice %114 {offsets = [0, 256], sizes = [8, 256], strides = [1, 1]} : vector<8x512xf32> to vector<8x256xf32>
    %c0_48 = arith.constant 0 : index
    %c0_49 = arith.constant 0 : index
    %c0_50 = arith.constant 0 : index
    %117 = vector.load %arg5[%c0_48, %c0_49, %c0_50] : memref<1x8x8xf32, #tpu.memory_space<vmem>>, vector<1x8x8xf32>
    %118 = vector.shape_cast %117 : vector<1x8x8xf32> to vector<8x8xf32>
    %119 = vector.extract_strided_slice %111 {offsets = [0, 0], sizes = [8, 64], strides = [1, 1]} : vector<8x256xf32> to vector<8x64xf32>
    %120 = vector.extract_strided_slice %115 {offsets = [0, 0], sizes = [8, 64], strides = [1, 1]} : vector<8x256xf32> to vector<8x64xf32>
    %121 = vector.extract_strided_slice %116 {offsets = [0, 0], sizes = [8, 64], strides = [1, 1]} : vector<8x256xf32> to vector<8x64xf32>
    %cst_51 = arith.constant dense<0.000000e+00> : vector<8x8xf32>
    %122 = tpu.matmul %119, %120, %cst_51 {dimension_numbers = #tpu.dot_dimension_numbers<[1], [1], [0], [0], [0, 0, 1, 0], [], []>} : vector<8x64xf32>, vector<8x64xf32>, vector<8x8xf32> -> vector<8x8xf32>
    %cst_52 = arith.constant 1.250000e-01 : f32
    %123 = vector.broadcast %cst_52 : f32 to vector<8x8xf32>
    %124 = arith.mulf %122, %123 : vector<8x8xf32>
    %125 = arith.addf %124, %118 : vector<8x8xf32>
    %cst_53 = arith.constant dense<0xFF800000> : vector<8xf32>
    %126 = vector.multi_reduction <maximumf>, %125, %cst_53 [1] : vector<8x8xf32> to vector<8xf32>
    %127 = vector.shape_cast %126 : vector<8xf32> to vector<8x1xf32>
    %128 = vector.broadcast %127 : vector<8x1xf32> to vector<8x8xf32>
    %129 = arith.subf %125, %128 : vector<8x8xf32>
    %130 = math.exp %129 : vector<8x8xf32>
    %cst_54 = arith.constant dense<0.000000e+00> : vector<8xf32>
    %131 = vector.multi_reduction <add>, %130, %cst_54 [1] : vector<8x8xf32> to vector<8xf32>
    %132 = vector.shape_cast %131 : vector<8xf32> to vector<8x1xf32>
    %133 = tpu.reciprocal %132 {approx = true} : vector<8x1xf32> -> vector<8x1xf32>
    %cst_55 = arith.constant dense<0.000000e+00> : vector<8x64xf32>
    %134 = tpu.matmul %130, %121, %cst_55 {dimension_numbers = #tpu.dot_dimension_numbers<[1], [0], [0], [1], [0, 0, 1, 1], [], []>} : vector<8x8xf32>, vector<8x64xf32>, vector<8x64xf32> -> vector<8x64xf32>
    %135 = vector.broadcast %133 : vector<8x1xf32> to vector<8x64xf32>
    %136 = arith.mulf %134, %135 : vector<8x64xf32>
    %137 = vector.extract_strided_slice %111 {offsets = [0, 64], sizes = [8, 64], strides = [1, 1]} : vector<8x256xf32> to vector<8x64xf32>
    %138 = vector.extract_strided_slice %115 {offsets = [0, 64], sizes = [8, 64], strides = [1, 1]} : vector<8x256xf32> to vector<8x64xf32>
    %139 = vector.extract_strided_slice %116 {offsets = [0, 64], sizes = [8, 64], strides = [1, 1]} : vector<8x256xf32> to vector<8x64xf32>
    %cst_56 = arith.constant dense<0.000000e+00> : vector<8x8xf32>
    %140 = tpu.matmul %137, %138, %cst_56 {dimension_numbers = #tpu.dot_dimension_numbers<[1], [1], [0], [0], [0, 0, 1, 0], [], []>} : vector<8x64xf32>, vector<8x64xf32>, vector<8x8xf32> -> vector<8x8xf32>
    %cst_57 = arith.constant 1.250000e-01 : f32
    %141 = vector.broadcast %cst_57 : f32 to vector<8x8xf32>
    %142 = arith.mulf %140, %141 : vector<8x8xf32>
    %143 = arith.addf %142, %118 : vector<8x8xf32>
    %cst_58 = arith.constant dense<0xFF800000> : vector<8xf32>
    %144 = vector.multi_reduction <maximumf>, %143, %cst_58 [1] : vector<8x8xf32> to vector<8xf32>
    %145 = vector.shape_cast %144 : vector<8xf32> to vector<8x1xf32>
    %146 = vector.broadcast %145 : vector<8x1xf32> to vector<8x8xf32>
    %147 = arith.subf %143, %146 : vector<8x8xf32>
    %148 = math.exp %147 : vector<8x8xf32>
    %cst_59 = arith.constant dense<0.000000e+00> : vector<8xf32>
    %149 = vector.multi_reduction <add>, %148, %cst_59 [1] : vector<8x8xf32> to vector<8xf32>
    %150 = vector.shape_cast %149 : vector<8xf32> to vector<8x1xf32>
    %151 = tpu.reciprocal %150 {approx = true} : vector<8x1xf32> -> vector<8x1xf32>
    %cst_60 = arith.constant dense<0.000000e+00> : vector<8x64xf32>
    %152 = tpu.matmul %148, %139, %cst_60 {dimension_numbers = #tpu.dot_dimension_numbers<[1], [0], [0], [1], [0, 0, 1, 1], [], []>} : vector<8x8xf32>, vector<8x64xf32>, vector<8x64xf32> -> vector<8x64xf32>
    %153 = vector.broadcast %151 : vector<8x1xf32> to vector<8x64xf32>
    %154 = arith.mulf %152, %153 : vector<8x64xf32>
    %155 = vector.extract_strided_slice %111 {offsets = [0, 128], sizes = [8, 64], strides = [1, 1]} : vector<8x256xf32> to vector<8x64xf32>
    %156 = vector.extract_strided_slice %115 {offsets = [0, 128], sizes = [8, 64], strides = [1, 1]} : vector<8x256xf32> to vector<8x64xf32>
    %157 = vector.extract_strided_slice %116 {offsets = [0, 128], sizes = [8, 64], strides = [1, 1]} : vector<8x256xf32> to vector<8x64xf32>
    %cst_61 = arith.constant dense<0.000000e+00> : vector<8x8xf32>
    %158 = tpu.matmul %155, %156, %cst_61 {dimension_numbers = #tpu.dot_dimension_numbers<[1], [1], [0], [0], [0, 0, 1, 0], [], []>} : vector<8x64xf32>, vector<8x64xf32>, vector<8x8xf32> -> vector<8x8xf32>
    %cst_62 = arith.constant 1.250000e-01 : f32
    %159 = vector.broadcast %cst_62 : f32 to vector<8x8xf32>
    %160 = arith.mulf %158, %159 : vector<8x8xf32>
    %161 = arith.addf %160, %118 : vector<8x8xf32>
    %cst_63 = arith.constant dense<0xFF800000> : vector<8xf32>
    %162 = vector.multi_reduction <maximumf>, %161, %cst_63 [1] : vector<8x8xf32> to vector<8xf32>
    %163 = vector.shape_cast %162 : vector<8xf32> to vector<8x1xf32>
    %164 = vector.broadcast %163 : vector<8x1xf32> to vector<8x8xf32>
    %165 = arith.subf %161, %164 : vector<8x8xf32>
    %166 = math.exp %165 : vector<8x8xf32>
    %cst_64 = arith.constant dense<0.000000e+00> : vector<8xf32>
    %167 = vector.multi_reduction <add>, %166, %cst_64 [1] : vector<8x8xf32> to vector<8xf32>
    %168 = vector.shape_cast %167 : vector<8xf32> to vector<8x1xf32>
    %169 = tpu.reciprocal %168 {approx = true} : vector<8x1xf32> -> vector<8x1xf32>
    %cst_65 = arith.constant dense<0.000000e+00> : vector<8x64xf32>
    %170 = tpu.matmul %166, %157, %cst_65 {dimension_numbers = #tpu.dot_dimension_numbers<[1], [0], [0], [1], [0, 0, 1, 1], [], []>} : vector<8x8xf32>, vector<8x64xf32>, vector<8x64xf32> -> vector<8x64xf32>
    %171 = vector.broadcast %169 : vector<8x1xf32> to vector<8x64xf32>
    %172 = arith.mulf %170, %171 : vector<8x64xf32>
    %173 = vector.extract_strided_slice %111 {offsets = [0, 192], sizes = [8, 64], strides = [1, 1]} : vector<8x256xf32> to vector<8x64xf32>
    %174 = vector.extract_strided_slice %115 {offsets = [0, 192], sizes = [8, 64], strides = [1, 1]} : vector<8x256xf32> to vector<8x64xf32>
    %175 = vector.extract_strided_slice %116 {offsets = [0, 192], sizes = [8, 64], strides = [1, 1]} : vector<8x256xf32> to vector<8x64xf32>
    %cst_66 = arith.constant dense<0.000000e+00> : vector<8x8xf32>
    %176 = tpu.matmul %173, %174, %cst_66 {dimension_numbers = #tpu.dot_dimension_numbers<[1], [1], [0], [0], [0, 0, 1, 0], [], []>} : vector<8x64xf32>, vector<8x64xf32>, vector<8x8xf32> -> vector<8x8xf32>
    %cst_67 = arith.constant 1.250000e-01 : f32
    %177 = vector.broadcast %cst_67 : f32 to vector<8x8xf32>
    %178 = arith.mulf %176, %177 : vector<8x8xf32>
    %179 = arith.addf %178, %118 : vector<8x8xf32>
    %cst_68 = arith.constant dense<0xFF800000> : vector<8xf32>
    %180 = vector.multi_reduction <maximumf>, %179, %cst_68 [1] : vector<8x8xf32> to vector<8xf32>
    %181 = vector.shape_cast %180 : vector<8xf32> to vector<8x1xf32>
    %182 = vector.broadcast %181 : vector<8x1xf32> to vector<8x8xf32>
    %183 = arith.subf %179, %182 : vector<8x8xf32>
    %184 = math.exp %183 : vector<8x8xf32>
    %cst_69 = arith.constant dense<0.000000e+00> : vector<8xf32>
    %185 = vector.multi_reduction <add>, %184, %cst_69 [1] : vector<8x8xf32> to vector<8xf32>
    %186 = vector.shape_cast %185 : vector<8xf32> to vector<8x1xf32>
    %187 = tpu.reciprocal %186 {approx = true} : vector<8x1xf32> -> vector<8x1xf32>
    %cst_70 = arith.constant dense<0.000000e+00> : vector<8x64xf32>
    %188 = tpu.matmul %184, %175, %cst_70 {dimension_numbers = #tpu.dot_dimension_numbers<[1], [0], [0], [1], [0, 0, 1, 1], [], []>} : vector<8x8xf32>, vector<8x64xf32>, vector<8x64xf32> -> vector<8x64xf32>
    %189 = vector.broadcast %187 : vector<8x1xf32> to vector<8x64xf32>
    %190 = arith.mulf %188, %189 : vector<8x64xf32>
    %191 = tpu.concatenate %136, %154, %172, %190 in 1 : vector<8x64xf32>, vector<8x64xf32>, vector<8x64xf32>, vector<8x64xf32> -> vector<8x256xf32>
    %c0_71 = arith.constant 0 : index
    %c0_72 = arith.constant 0 : index
    %c0_73 = arith.constant 0 : index
    %192 = vector.load %arg10[%c0_71, %c0_72, %c0_73] : memref<1x256x128xf32, #tpu.memory_space<vmem>>, vector<1x256x128xf32>
    %193 = vector.shape_cast %192 : vector<1x256x128xf32> to vector<256x128xf32>
    %cst_74 = arith.constant dense<0.000000e+00> : vector<8x128xf32>
    %194 = tpu.matmul %191, %193, %cst_74 {dimension_numbers = #tpu.dot_dimension_numbers<[1], [0], [0], [1], [0, 0, 1, 1], [], []>} : vector<8x256xf32>, vector<256x128xf32>, vector<8x128xf32> -> vector<8x128xf32>
    %195 = arith.addf %108, %194 : vector<8x128xf32>
    %cst_75 = arith.constant dense<0.000000e+00> : vector<8xf32>
    %196 = vector.multi_reduction <add>, %195, %cst_75 [1] : vector<8x128xf32> to vector<8xf32>
    %197 = vector.shape_cast %196 : vector<8xf32> to vector<8x1xf32>
    %cst_76 = arith.constant 1.280000e+02 : f32
    %198 = vector.broadcast %cst_76 : f32 to vector<8x1xf32>
    %199 = arith.divf %197, %198 : vector<8x1xf32>
    %200 = vector.broadcast %199 : vector<8x1xf32> to vector<8x128xf32>
    %201 = arith.subf %195, %200 : vector<8x128xf32>
    %202 = arith.mulf %201, %201 : vector<8x128xf32>
    %cst_77 = arith.constant dense<0.000000e+00> : vector<8xf32>
    %203 = vector.multi_reduction <add>, %202, %cst_77 [1] : vector<8x128xf32> to vector<8xf32>
    %204 = vector.shape_cast %203 : vector<8xf32> to vector<8x1xf32>
    %cst_78 = arith.constant 1.280000e+02 : f32
    %205 = vector.broadcast %cst_78 : f32 to vector<8x1xf32>
    %206 = arith.divf %204, %205 : vector<8x1xf32>
    %207 = vector.broadcast %199 : vector<8x1xf32> to vector<8x128xf32>
    %208 = arith.subf %195, %207 : vector<8x128xf32>
    %cst_79 = arith.constant 9.99999974E-6 : f32
    %209 = vector.broadcast %cst_79 : f32 to vector<8x1xf32>
    %210 = arith.addf %206, %209 : vector<8x1xf32>
    %211 = math.rsqrt %210 : vector<8x1xf32>
    %212 = vector.broadcast %211 : vector<8x1xf32> to vector<8x128xf32>
    %213 = arith.mulf %208, %212 : vector<8x128xf32>
    %c0_80 = arith.constant 0 : index
    %c0_81 = arith.constant 0 : index
    %c0_82 = arith.constant 0 : index
    %214 = vector.load %arg11[%c0_80, %c0_81, %c0_82] : memref<1x128x2048xf32, #tpu.memory_space<vmem>>, vector<1x128x2048xf32>
    %215 = vector.shape_cast %214 : vector<1x128x2048xf32> to vector<128x2048xf32>
    %cst_83 = arith.constant dense<0.000000e+00> : vector<8x2048xf32>
    %216 = tpu.matmul %213, %215, %cst_83 {dimension_numbers = #tpu.dot_dimension_numbers<[1], [0], [0], [1], [0, 0, 1, 1], [], []>} : vector<8x128xf32>, vector<128x2048xf32>, vector<8x2048xf32> -> vector<8x2048xf32>
    %cst_84 = arith.constant 0.000000e+00 : f32
    %217 = vector.broadcast %cst_84 : f32 to vector<8x2048xf32>
    %218 = arith.maximumf %216, %217 : vector<8x2048xf32>
    %c0_85 = arith.constant 0 : index
    %c0_86 = arith.constant 0 : index
    %c0_87 = arith.constant 0 : index
    %219 = vector.load %arg12[%c0_85, %c0_86, %c0_87] : memref<1x2048x128xf32, #tpu.memory_space<vmem>>, vector<1x2048x128xf32>
    %220 = vector.shape_cast %219 : vector<1x2048x128xf32> to vector<2048x128xf32>
    %cst_88 = arith.constant dense<0.000000e+00> : vector<8x128xf32>
    %221 = tpu.matmul %218, %220, %cst_88 {dimension_numbers = #tpu.dot_dimension_numbers<[1], [0], [0], [1], [0, 0, 1, 1], [], []>} : vector<8x2048xf32>, vector<2048x128xf32>, vector<8x128xf32> -> vector<8x128xf32>
    %222 = arith.addf %213, %221 : vector<8x128xf32>
    %cst_89 = arith.constant dense<0.000000e+00> : vector<8xf32>
    %223 = vector.multi_reduction <add>, %222, %cst_89 [1] : vector<8x128xf32> to vector<8xf32>
    %224 = vector.shape_cast %223 : vector<8xf32> to vector<8x1xf32>
    %cst_90 = arith.constant 1.280000e+02 : f32
    %225 = vector.broadcast %cst_90 : f32 to vector<8x1xf32>
    %226 = arith.divf %224, %225 : vector<8x1xf32>
    %227 = vector.broadcast %226 : vector<8x1xf32> to vector<8x128xf32>
    %228 = arith.subf %222, %227 : vector<8x128xf32>
    %229 = arith.mulf %228, %228 : vector<8x128xf32>
    %cst_91 = arith.constant dense<0.000000e+00> : vector<8xf32>
    %230 = vector.multi_reduction <add>, %229, %cst_91 [1] : vector<8x128xf32> to vector<8xf32>
    %231 = vector.shape_cast %230 : vector<8xf32> to vector<8x1xf32>
    %cst_92 = arith.constant 1.280000e+02 : f32
    %232 = vector.broadcast %cst_92 : f32 to vector<8x1xf32>
    %233 = arith.divf %231, %232 : vector<8x1xf32>
    %234 = vector.broadcast %226 : vector<8x1xf32> to vector<8x128xf32>
    %235 = arith.subf %222, %234 : vector<8x128xf32>
    %cst_93 = arith.constant 9.99999974E-6 : f32
    %236 = vector.broadcast %cst_93 : f32 to vector<8x1xf32>
    %237 = arith.addf %233, %236 : vector<8x1xf32>
    %238 = math.rsqrt %237 : vector<8x1xf32>
    %239 = vector.broadcast %238 : vector<8x1xf32> to vector<8x128xf32>
    %240 = arith.mulf %235, %239 : vector<8x128xf32>
    %c0_94 = arith.constant 0 : index
    %c0_95 = arith.constant 0 : index
    %241 = vector.load %arg16[%c0_94, %c0_95] : memref<8x128xf32, #tpu.memory_space<vmem>>, vector<8x128xf32>
    tpu.vector_store %arg16[%c0_94, %c0_95], %240 {strides = array<i32>} : memref<8x128xf32, #tpu.memory_space<vmem>>, vector<8x128xf32>,
    %c1_i32 = arith.constant 1 : i32
    %242 = arith.cmpi eq, %arg1, %c1_i32 : i32
    %243 = arith.extui %242 : i1 to i32
    %c0_i32_96 = arith.constant 0 : i32
    %244 = arith.cmpi ne, %243, %c0_i32_96 : i32
    scf.if %244 {
      %c0_97 = arith.constant 0 : index
      %c0_98 = arith.constant 0 : index
      %245 = vector.load %arg13[%c0_97, %c0_98] : memref<128x128xf32, #tpu.memory_space<vmem>>, vector<128x128xf32>
      %cst_99 = arith.constant dense<0.000000e+00> : vector<8x128xf32>
      %246 = tpu.matmul %240, %245, %cst_99 {dimension_numbers = #tpu.dot_dimension_numbers<[1], [0], [0], [1], [0, 0, 1, 1], [], []>} : vector<8x128xf32>, vector<128x128xf32>, vector<8x128xf32> -> vector<8x128xf32>
      %c0_100 = arith.constant 0 : index
      %c0_101 = arith.constant 0 : index
      %247 = vector.load %arg14[%c0_100, %c0_101] : memref<1x128xf32, #tpu.memory_space<vmem>>, vector<1x128xf32>
      %248 = vector.broadcast %247 : vector<1x128xf32> to vector<8x128xf32>
      %249 = arith.addf %246, %248 : vector<8x128xf32>
      %c0_102 = arith.constant 0 : index
      %c0_103 = arith.constant 0 : index
      %c0_104 = arith.constant 0 : index
      %250 = vector.load %arg15[%c0_102, %c0_103, %c0_104] : memref<1x8x128xf32, #tpu.memory_space<vmem>>, vector<1x8x128xf32>
      %251 = vector.shape_cast %250 : vector<1x8x128xf32> to vector<8x128xf32>
      %252 = vector.shape_cast %249 : vector<8x128xf32> to vector<1x8x128xf32>
      tpu.vector_store %arg15[%c0_102, %c0_103, %c0_104], %252 {strides = array<i32>} : memref<1x8x128xf32, #tpu.memory_space<vmem>>, vector<1x8x128xf32>,
    } else {
    }
    return
  }
  func.func @transform_0(%arg0: i32, %arg1: i32) -> (i32, i32, i32) {
    %c0_i32 = arith.constant 0 : i32
    %c0_i32_0 = arith.constant 0 : i32
    %c0_i32_1 = arith.constant 0 : i32
    return %arg0, %c0_i32, %c0_i32_0 : i32, i32, i32
  }
  func.func @transform_1(%arg0: i32, %arg1: i32) -> (i32, i32, i32) {
    %c0_i32 = arith.constant 0 : i32
    %c0_i32_0 = arith.constant 0 : i32
    %c0_i32_1 = arith.constant 0 : i32
    return %arg0, %c0_i32, %c0_i32_0 : i32, i32, i32
  }
  func.func @transform_2(%arg0: i32, %arg1: i32) -> (i32, i32, i32) {
    %c0_i32 = arith.constant 0 : i32
    %c0_i32_0 = arith.constant 0 : i32
    %c0_i32_1 = arith.constant 0 : i32
    return %arg0, %c0_i32, %c0_i32_0 : i32, i32, i32
  }
  func.func @transform_3(%arg0: i32, %arg1: i32) -> (i32, i32, i32) {
    %c0_i32 = arith.constant 0 : i32
    %c0_i32_0 = arith.constant 0 : i32
    %c0_i32_1 = arith.constant 0 : i32
    return %arg0, %c0_i32, %c0_i32_0 : i32, i32, i32
  }
  func.func @transform_4(%arg0: i32, %arg1: i32) -> (i32, i32, i32) {
    %c0_i32 = arith.constant 0 : i32
    %c0_i32_0 = arith.constant 0 : i32
    %c0_i32_1 = arith.constant 0 : i32
    return %arg1, %c0_i32, %c0_i32_0 : i32, i32, i32
  }
  func.func @transform_5(%arg0: i32, %arg1: i32) -> (i32, i32, i32) {
    %c0_i32 = arith.constant 0 : i32
    %c0_i32_0 = arith.constant 0 : i32
    %c0_i32_1 = arith.constant 0 : i32
    return %arg1, %c0_i32, %c0_i32_0 : i32, i32, i32
  }
  func.func @transform_6(%arg0: i32, %arg1: i32) -> (i32, i32, i32) {
    %c0_i32 = arith.constant 0 : i32
    %c0_i32_0 = arith.constant 0 : i32
    %c0_i32_1 = arith.constant 0 : i32
    return %arg1, %c0_i32, %c0_i32_0 : i32, i32, i32
  }
  func.func @transform_7(%arg0: i32, %arg1: i32) -> (i32, i32, i32) {
    %c0_i32 = arith.constant 0 : i32
    %c0_i32_0 = arith.constant 0 : i32
    %c0_i32_1 = arith.constant 0 : i32
    return %arg1, %c0_i32, %c0_i32_0 : i32, i32, i32
  }
  func.func @transform_8(%arg0: i32, %arg1: i32) -> (i32, i32, i32) {
    %c0_i32 = arith.constant 0 : i32
    %c0_i32_0 = arith.constant 0 : i32
    %c0_i32_1 = arith.constant 0 : i32
    return %arg1, %c0_i32, %c0_i32_0 : i32, i32, i32
  }
  func.func @transform_9(%arg0: i32, %arg1: i32) -> (i32, i32, i32) {
    %c0_i32 = arith.constant 0 : i32
    %c0_i32_0 = arith.constant 0 : i32
    %c0_i32_1 = arith.constant 0 : i32
    return %arg1, %c0_i32, %c0_i32_0 : i32, i32, i32
  }
  func.func @transform_10(%arg0: i32, %arg1: i32) -> (i32, i32, i32) {
    %c0_i32 = arith.constant 0 : i32
    %c0_i32_0 = arith.constant 0 : i32
    %c0_i32_1 = arith.constant 0 : i32
    return %arg1, %c0_i32, %c0_i32_0 : i32, i32, i32
  }
  func.func @transform_11(%arg0: i32, %arg1: i32) -> (i32, i32) {
    %c0_i32 = arith.constant 0 : i32
    %c0_i32_0 = arith.constant 0 : i32
    %c0_i32_1 = arith.constant 0 : i32
    return %c0_i32, %c0_i32_0 : i32, i32
  }
  func.func @transform_12(%arg0: i32, %arg1: i32) -> (i32, i32) {
    %c0_i32 = arith.constant 0 : i32
    %c0_i32_0 = arith.constant 0 : i32
    %c0_i32_1 = arith.constant 0 : i32
    return %c0_i32, %c0_i32_0 : i32, i32
  }
  func.func @transform_13(%arg0: i32, %arg1: i32) -> (i32, i32, i32) {
    %c0_i32 = arith.constant 0 : i32
    %c0_i32_0 = arith.constant 0 : i32
    %c0_i32_1 = arith.constant 0 : i32
    return %arg0, %c0_i32, %c0_i32_0 : i32, i32, i32
  }
}

</mosaic_0001>

<llo_original>
// kernel: decoder_forward.1
$region0: #{decoder_forward.1}
  #allocation0 [shape = 'u32[]', space=smem, size = 0x4, offset = 0x4, fixed_abs, tag = 'smem constant byte address 0x4 - core index']
  #allocation1 [shape = 'u32[144,128]{1,0:T(1,128)}', space=vmem, size = 0x12000, scoped, tag = 'internal scratch']
  #allocation2 [shape = 'f32[8,128]{1,0:T(8,128)}', space=vmem, size = 0x1000, scoped, tag = 'scratch operand']
  %s0 = inlined_call_operand.vmem [shape: f32[2,8,128], index: 0, kind: input, shape index: {}]
  %s1 = inlined_call_operand.hbm [shape: f32[2,8,128], index: 1, kind: input, shape index: {}]
  %s2 = inlined_call_operand.vmem [shape: f32[2,8,8], index: 2, kind: input, shape index: {}]
  %s3 = inlined_call_operand.hbm [shape: f32[2,8,8], index: 3, kind: input, shape index: {}]
  %s4 = inlined_call_operand.hbm [shape: f32[2,128,768], index: 4, kind: input, shape index: {}]
  %s5 = inlined_call_operand.hbm [shape: f32[2,256,128], index: 5, kind: input, shape index: {}]
  %s6 = inlined_call_operand.hbm [shape: f32[2,128,256], index: 6, kind: input, shape index: {}]
  %s7 = inlined_call_operand.hbm [shape: f32[2,128,512], index: 7, kind: input, shape index: {}]
  %s8 = inlined_call_operand.hbm [shape: f32[2,256,128], index: 8, kind: input, shape index: {}]
  %s9 = inlined_call_operand.hbm [shape: f32[2,128,2048], index: 9, kind: input, shape index: {}]
  %s10 = inlined_call_operand.hbm [shape: f32[2,2048,128], index: 10, kind: input, shape index: {}]
  %s11 = inlined_call_operand.hbm [shape: f32[128,128], index: 11, kind: input, shape index: {}]
  %s12 = inlined_call_operand.hbm [shape: f32[1,128], index: 12, kind: input, shape index: {}]
  %s13 = inlined_call_operand.hbm [shape: f32[2,8,128], index: 13, kind: output, shape index: {}]
  %s14 = sld [smem:[#allocation0]]
  $region137: #{decoder_forward.1} parent=0
    _
  %s16 = ssub.s32 1, %s14
  %s17 = scalar_select 0, %s16, %s14
  $region1: #{decoder_forward.1} parent=0
    #allocation3 [shape = 'u8[8192]{0}', space=vmem, size = 0x2000, scoped, tag = 'input window, operand 1']
    #allocation4 [shape = 's32[2]{0}', space=sflag, size = 0x8, scoped, tag = 'scoped memory for decoder_forward.1']
    #allocation5 [shape = 's32[2]{0}', space=sflag, size = 0x8, scoped, tag = 'scoped memory for decoder_forward.1']
    #allocation6 [shape = 'u8[8192]{0}', space=vmem, size = 0x2000, scoped, tag = 'input window, operand 3']
    #allocation7 [shape = 's32[2]{0}', space=sflag, size = 0x8, scoped, tag = 'scoped memory for decoder_forward.1']
    #allocation8 [shape = 'u8[786432]{0}', space=vmem, size = 0xc0000, scoped, tag = 'input window, operand 4']
    #allocation9 [shape = 'u8[262144]{0}', space=vmem, size = 0x40000, scoped, tag = 'input window, operand 5']
    #allocation10 [shape = 's32[2]{0}', space=sflag, size = 0x8, scoped, tag = 'scoped memory for decoder_forward.1']
    #allocation11 [shape = 'u8[262144]{0}', space=vmem, size = 0x40000, scoped, tag = 'input window, operand 6']
    #allocation12 [shape = 'u8[524288]{0}', space=vmem, size = 0x80000, scoped, tag = 'input window, operand 7']
    #allocation13 [shape = 's32[2]{0}', space=sflag, size = 0x8, scoped, tag = 'scoped memory for decoder_forward.1']
    #allocation14 [shape = 'u8[262144]{0}', space=vmem, size = 0x40000, scoped, tag = 'input window, operand 8']
    #allocation15 [shape = 'u8[2097152]{0}', space=vmem, size = 0x200000, scoped, tag = 'input window, operand 9']
    #allocation16 [shape = 's32[2]{0}', space=sflag, size = 0x8, scoped, tag = 'scoped memory for decoder_forward.1']
    #allocation17 [shape = 'u8[2097152]{0}', space=vmem, size = 0x200000, scoped, tag = 'input window, operand 10']
    #allocation18 [shape = 'u8[65536]{0}', space=vmem, size = 0x10000, scoped, tag = 'input window, operand 11, single buffered']
    #allocation19 [shape = 's32[1]{0}', space=sflag, size = 0x4, scoped, tag = 'scoped memory for decoder_forward.1']
    #allocation20 [shape = 'u8[512]{0}', space=vmem, size = 0x400, scoped, tag = 'input window, operand 12, single buffered']
    #allocation21 [shape = 'u8[8192]{0}', space=vmem, size = 0x2000, scoped, tag = 'output window, operand 0']
    %18 = vsyncpa [#allocation4], 0
    %s19 = scalar_lea.sflag [#allocation4], 1
    %20 = vsyncpa %s19, 0
    %21 = vsyncpa [#allocation7], 0
    %s22 = scalar_lea.sflag [#allocation7], 1
    %23 = vsyncpa %s22, 0
    %24 = vsyncpa [#allocation10], 0
    %s25 = scalar_lea.sflag [#allocation10], 1
    %26 = vsyncpa %s25, 0
    %27 = vsyncpa [#allocation13], 0
    %s28 = scalar_lea.sflag [#allocation13], 1
    %29 = vsyncpa %s28, 0
    %30 = vsyncpa [#allocation16], 0
    %s31 = scalar_lea.sflag [#allocation16], 1
    %32 = vsyncpa %s31, 0
    %33 = vsyncpa [#allocation19], 0
    %34 = vsyncpa [#allocation5], 0
    %s35 = scalar_lea.sflag [#allocation5], 1
    %36 = vsyncpa %s35, 0
    loop: start=0, step=1, limit=6
    $region2: #{decoder_forward.1} parent=1 // loop_pre_header
      _
    $region3: #{decoder_forward.1} parent=1 // loop_header
      %s38 = sphi 0, %s42
      %p39 = scmp.ge.s32.totalorder %s38, 6
      %s45 = sphi 0, %s57
      %s46 = sphi 0, %s53
      %s47 = sphi 0, %s45
      %s48 = sphi 0, %s46
      %s49 = sphi 0, %s47
      %s50 = sphi 0, %s48
      %s60 = sphi 0, %s62
      %s63 = sphi 0, %s60
      %s64 = sphi 0, %s63
      %s80 = sphi 0, %s64
      %s86 = sphi 0, %s88
      %s89 = sphi 0, %s86
      %s90 = sphi 0, %s89
      %s106 = sphi 0, %s90
      %s112 = sphi 0, %s114
      %s115 = sphi 0, %s112
      %s116 = sphi 0, %s115
      %s132 = sphi 0, %s116
      %s138 = sphi 0, %s140
      %s141 = sphi 0, %s138
      %s142 = sphi 0, %s141
      %s158 = sphi 0, %s142
      %s164 = sphi 0, %s166
      %s167 = sphi 0, %s164
      %s168 = sphi 0, %s167
      %s184 = sphi 0, %s168
      %s190 = sphi 0, %s192
      %s193 = sphi 0, %s190
      %s194 = sphi 0, %s193
      %s210 = sphi 0, %s194
      %s216 = sphi 0, %s218
      %s219 = sphi 0, %s216
      %s220 = sphi 0, %s219
      %s236 = sphi 0, %s220
      %s242 = sphi 0, %s244
      %s245 = sphi 0, %s242
      %s246 = sphi 0, %s245
      %s262 = sphi 0, %s246
      %s268 = sphi 0, %s270
      %s271 = sphi 0, %s268
      %s272 = sphi 0, %s271
      %s288 = sphi 0, %s272
      %s294 = sphi 0, %s296
      %s297 = sphi 0, %s294
      %s298 = sphi 0, %s297
      %s314 = sphi 0, %s298
      %s320 = sphi 0, %s322
      %s323 = sphi 0, %s320
      %s324 = sphi 0, %s323
      %s340 = sphi 0, %s324
      %s344 = sphi 0, %s344
      %s346 = sphi 0, %s344
      %s347 = sphi 0, %s346
      %s361 = sphi 0, %s347
      %s365 = sphi 0, %s365
      %s367 = sphi 0, %s365
      %s368 = sphi 0, %s367
      %s382 = sphi 0, %s368
      %s388 = sphi 0, %s390
      %s391 = sphi 0, %s388
      %s392 = sphi 0, %s391
      %s408 = sphi 0, %s392
    $region4: #{decoder_forward.1} parent=1 // loop_header_branch
      %41 = sbr.rel (%p39) target = $region8
    $region5: #{decoder_forward.1} parent=1 // loop_body
      %s43 = ssub.s32 %s38, 1
      %s44 = ssub.s32 %s38, 2
      %s51 = sadd.s32 1, %s46
      %p52 = scmp.ge.s32.totalorder %s51, 2
      %s53 = scalar_select %p52, 0, %s51
      %s54 = sadd.s32 1, %s45
      %s55 = scalar_select %p52, %s54, %s45
      %p56 = scmp.ge.s32.totalorder %s55, 2
      %s57 = scalar_select %p56, 0, %s55
      %s58 = ssub.s32 %s45, %s57
      %p59 = scmp.eq.s32.totalorder %s58, 0
      %s61 = sadd.s32 %s60, 1
      %s62 = scalar_select %p59, %s60, %s61
      %p65 = pneg %p59
      %p66 = scmp.eq.s32.totalorder %s38, 3
      %p67 = por %p65, %p66
      %p68 = scmp.ne.s32.totalorder %s60, %s63
      %p69 = scmp.eq.s32.totalorder %s38, 0
      %p70 = por %p68, %p69
      %p71 = scmp.ne.s32.totalorder %s60, %s63
      %p72 = scmp.eq.s32.totalorder %s43, 3
      %p73 = por %p71, %p72
      %p74 = scmp.ne.s32.totalorder %s63, %s64
      %p75 = scmp.eq.s32.totalorder %s43, 0
      %p76 = por %p74, %p75
      %p77 = scmp.ne.s32.totalorder %s63, %s64
      %p78 = scmp.eq.s32.totalorder %s44, 3
      %p79 = por %p77, %p78
      %p81 = scmp.ne.s32.totalorder %s64, %s80
      %p82 = scmp.eq.s32.totalorder %s44, 0
      %p83 = por %p81, %p82
      %s84 = ssub.s32 %s45, %s57
      %p85 = scmp.eq.s32.totalorder %s84, 0
      %s87 = sadd.s32 %s86, 1
      %s88 = scalar_select %p85, %s86, %s87
      %p91 = pneg %p85
      %p92 = scmp.eq.s32.totalorder %s38, 3
      %p93 = por %p91, %p92
      %p94 = scmp.ne.s32.totalorder %s86, %s89
      %p95 = scmp.eq.s32.totalorder %s38, 0
      %p96 = por %p94, %p95
      %p97 = scmp.ne.s32.totalorder %s86, %s89
      %p98 = scmp.eq.s32.totalorder %s43, 3
      %p99 = por %p97, %p98
      %p100 = scmp.ne.s32.totalorder %s89, %s90
      %p101 = scmp.eq.s32.totalorder %s43, 0
      %p102 = por %p100, %p101
      %p103 = scmp.ne.s32.totalorder %s89, %s90
      %p104 = scmp.eq.s32.totalorder %s44, 3
      %p105 = por %p103, %p104
      %p107 = scmp.ne.s32.totalorder %s90, %s106
      %p108 = scmp.eq.s32.totalorder %s44, 0
      %p109 = por %p107, %p108
      %s110 = ssub.s32 %s45, %s57
      %p111 = scmp.eq.s32.totalorder %s110, 0
      %s113 = sadd.s32 %s112, 1
      %s114 = scalar_select %p111, %s112, %s113
      %p117 = pneg %p111
      %p118 = scmp.eq.s32.totalorder %s38, 3
      %p119 = por %p117, %p118
      %p120 = scmp.ne.s32.totalorder %s112, %s115
      %p121 = scmp.eq.s32.totalorder %s38, 0
      %p122 = por %p120, %p121
      %p123 = scmp.ne.s32.totalorder %s112, %s115
      %p124 = scmp.eq.s32.totalorder %s43, 3
      %p125 = por %p123, %p124
      %p126 = scmp.ne.s32.totalorder %s115, %s116
      %p127 = scmp.eq.s32.totalorder %s43, 0
      %p128 = por %p126, %p127
      %p129 = scmp.ne.s32.totalorder %s115, %s116
      %p130 = scmp.eq.s32.totalorder %s44, 3
      %p131 = por %p129, %p130
      %p133 = scmp.ne.s32.totalorder %s116, %s132
      %p134 = scmp.eq.s32.totalorder %s44, 0
      %p135 = por %p133, %p134
      %s136 = ssub.s32 %s45, %s57
      %p137 = scmp.eq.s32.totalorder %s136, 0
      %s139 = sadd.s32 %s138, 1
      %s140 = scalar_select %p137, %s138, %s139
      %p143 = pneg %p137
      %p144 = scmp.eq.s32.totalorder %s38, 3
      %p145 = por %p143, %p144
      %p146 = scmp.ne.s32.totalorder %s138, %s141
      %p147 = scmp.eq.s32.totalorder %s38, 0
      %p148 = por %p146, %p147
      %p149 = scmp.ne.s32.totalorder %s138, %s141
      %p150 = scmp.eq.s32.totalorder %s43, 3
      %p151 = por %p149, %p150
      %p152 = scmp.ne.s32.totalorder %s141, %s142
      %p153 = scmp.eq.s32.totalorder %s43, 0
      %p154 = por %p152, %p153
      %p155 = scmp.ne.s32.totalorder %s141, %s142
      %p156 = scmp.eq.s32.totalorder %s44, 3
      %p157 = por %p155, %p156
      %p159 = scmp.ne.s32.totalorder %s142, %s158
      %p160 = scmp.eq.s32.totalorder %s44, 0
      %p161 = por %p159, %p160
      %s162 = ssub.s32 %s46, %s53
      %p163 = scmp.eq.s32.totalorder %s162, 0
      %s165 = sadd.s32 %s164, 1
      %s166 = scalar_select %p163, %s164, %s165
      %p169 = pneg %p163
      %p170 = scmp.eq.s32.totalorder %s38, 3
      %p171 = por %p169, %p170
      %p172 = scmp.ne.s32.totalorder %s164, %s167
      %p173 = scmp.eq.s32.totalorder %s38, 0
      %p174 = por %p172, %p173
      %p175 = scmp.ne.s32.totalorder %s164, %s167
      %p176 = scmp.eq.s32.totalorder %s43, 3
      %p177 = por %p175, %p176
      %p178 = scmp.ne.s32.totalorder %s167, %s168
      %p179 = scmp.eq.s32.totalorder %s43, 0
      %p180 = por %p178, %p179
      %p181 = scmp.ne.s32.totalorder %s167, %s168
      %p182 = scmp.eq.s32.totalorder %s44, 3
      %p183 = por %p181, %p182
      %p185 = scmp.ne.s32.totalorder %s168, %s184
      %p186 = scmp.eq.s32.totalorder %s44, 0
      %p187 = por %p185, %p186
      %s188 = ssub.s32 %s46, %s53
      %p189 = scmp.eq.s32.totalorder %s188, 0
      %s191 = sadd.s32 %s190, 1
      %s192 = scalar_select %p189, %s190, %s191
      %p195 = pneg %p189
      %p196 = scmp.eq.s32.totalorder %s38, 3
      %p197 = por %p195, %p196
      %p198 = scmp.ne.s32.totalorder %s190, %s193
      %p199 = scmp.eq.s32.totalorder %s38, 0
      %p200 = por %p198, %p199
      %p201 = scmp.ne.s32.totalorder %s190, %s193
      %p202 = scmp.eq.s32.totalorder %s43, 3
      %p203 = por %p201, %p202
      %p204 = scmp.ne.s32.totalorder %s193, %s194
      %p205 = scmp.eq.s32.totalorder %s43, 0
      %p206 = por %p204, %p205
      %p207 = scmp.ne.s32.totalorder %s193, %s194
      %p208 = scmp.eq.s32.totalorder %s44, 3
      %p209 = por %p207, %p208
      %p211 = scmp.ne.s32.totalorder %s194, %s210
      %p212 = scmp.eq.s32.totalorder %s44, 0
      %p213 = por %p211, %p212
      %s214 = ssub.s32 %s46, %s53
      %p215 = scmp.eq.s32.totalorder %s214, 0
      %s217 = sadd.s32 %s216, 1
      %s218 = scalar_select %p215, %s216, %s217
      %p221 = pneg %p215
      %p222 = scmp.eq.s32.totalorder %s38, 3
      %p223 = por %p221, %p222
      %p224 = scmp.ne.s32.totalorder %s216, %s219
      %p225 = scmp.eq.s32.totalorder %s38, 0
      %p226 = por %p224, %p225
      %p227 = scmp.ne.s32.totalorder %s216, %s219
      %p228 = scmp.eq.s32.totalorder %s43, 3
      %p229 = por %p227, %p228
      %p230 = scmp.ne.s32.totalorder %s219, %s220
      %p231 = scmp.eq.s32.totalorder %s43, 0
      %p232 = por %p230, %p231
      %p233 = scmp.ne.s32.totalorder %s219, %s220
      %p234 = scmp.eq.s32.totalorder %s44, 3
      %p235 = por %p233, %p234
      %p237 = scmp.ne.s32.totalorder %s220, %s236
      %p238 = scmp.eq.s32.totalorder %s44, 0
      %p239 = por %p237, %p238
      %s240 = ssub.s32 %s46, %s53
      %p241 = scmp.eq.s32.totalorder %s240, 0
      %s243 = sadd.s32 %s242, 1
      %s244 = scalar_select %p241, %s242, %s243
      %p247 = pneg %p241
      %p248 = scmp.eq.s32.totalorder %s38, 3
      %p249 = por %p247, %p248
      %p250 = scmp.ne.s32.totalorder %s242, %s245
      %p251 = scmp.eq.s32.totalorder %s38, 0
      %p252 = por %p250, %p251
      %p253 = scmp.ne.s32.totalorder %s242, %s245
      %p254 = scmp.eq.s32.totalorder %s43, 3
      %p255 = por %p253, %p254
      %p256 = scmp.ne.s32.totalorder %s245, %s246
      %p257 = scmp.eq.s32.totalorder %s43, 0
      %p258 = por %p256, %p257
      %p259 = scmp.ne.s32.totalorder %s245, %s246
      %p260 = scmp.eq.s32.totalorder %s44, 3
      %p261 = por %p259, %p260
      %p263 = scmp.ne.s32.totalorder %s246, %s262
      %p264 = scmp.eq.s32.totalorder %s44, 0
      %p265 = por %p263, %p264
      %s266 = ssub.s32 %s46, %s53
      %p267 = scmp.eq.s32.totalorder %s266, 0
      %s269 = sadd.s32 %s268, 1
      %s270 = scalar_select %p267, %s268, %s269
      %p273 = pneg %p267
      %p274 = scmp.eq.s32.totalorder %s38, 3
      %p275 = por %p273, %p274
      %p276 = scmp.ne.s32.totalorder %s268, %s271
      %p277 = scmp.eq.s32.totalorder %s38, 0
      %p278 = por %p276, %p277
      %p279 = scmp.ne.s32.totalorder %s268, %s271
      %p280 = scmp.eq.s32.totalorder %s43, 3
      %p281 = por %p279, %p280
      %p282 = scmp.ne.s32.totalorder %s271, %s272
      %p283 = scmp.eq.s32.totalorder %s43, 0
      %p284 = por %p282, %p283
      %p285 = scmp.ne.s32.totalorder %s271, %s272
      %p286 = scmp.eq.s32.totalorder %s44, 3
      %p287 = por %p285, %p286
      %p289 = scmp.ne.s32.totalorder %s272, %s288
      %p290 = scmp.eq.s32.totalorder %s44, 0
      %p291 = por %p289, %p290
      %s292 = ssub.s32 %s46, %s53
      %p293 = scmp.eq.s32.totalorder %s292, 0
      %s295 = sadd.s32 %s294, 1
      %s296 = scalar_select %p293, %s294, %s295
      %p299 = pneg %p293
      %p300 = scmp.eq.s32.totalorder %s38, 3
      %p301 = por %p299, %p300
      %p302 = scmp.ne.s32.totalorder %s294, %s297
      %p303 = scmp.eq.s32.totalorder %s38, 0
      %p304 = por %p302, %p303
      %p305 = scmp.ne.s32.totalorder %s294, %s297
      %p306 = scmp.eq.s32.totalorder %s43, 3
      %p307 = por %p305, %p306
      %p308 = scmp.ne.s32.totalorder %s297, %s298
      %p309 = scmp.eq.s32.totalorder %s43, 0
      %p310 = por %p308, %p309
      %p311 = scmp.ne.s32.totalorder %s297, %s298
      %p312 = scmp.eq.s32.totalorder %s44, 3
      %p313 = por %p311, %p312
      %p315 = scmp.ne.s32.totalorder %s298, %s314
      %p316 = scmp.eq.s32.totalorder %s44, 0
      %p317 = por %p315, %p316
      %s318 = ssub.s32 %s46, %s53
      %p319 = scmp.eq.s32.totalorder %s318, 0
      %s321 = sadd.s32 %s320, 1
      %s322 = scalar_select %p319, %s320, %s321
      %p325 = pneg %p319
      %p326 = scmp.eq.s32.totalorder %s38, 3
      %p327 = por %p325, %p326
      %p328 = scmp.ne.s32.totalorder %s320, %s323
      %p329 = scmp.eq.s32.totalorder %s38, 0
      %p330 = por %p328, %p329
      %p331 = scmp.ne.s32.totalorder %s320, %s323
      %p332 = scmp.eq.s32.totalorder %s43, 3
      %p333 = por %p331, %p332
      %p334 = scmp.ne.s32.totalorder %s323, %s324
      %p335 = scmp.eq.s32.totalorder %s43, 0
      %p336 = por %p334, %p335
      %p337 = scmp.ne.s32.totalorder %s323, %s324
      %p338 = scmp.eq.s32.totalorder %s44, 3
      %p339 = por %p337, %p338
      %p341 = scmp.ne.s32.totalorder %s324, %s340
      %p342 = scmp.eq.s32.totalorder %s44, 0
      %p343 = por %p341, %p342
      %s345 = sadd.s32 %s344, 1
      %p348 = scmp.eq.s32.totalorder %s38, 3
      %p349 = scmp.ne.s32.totalorder %s344, %s346
      %p350 = scmp.eq.s32.totalorder %s38, 0
      %p351 = por %p349, %p350
      %p352 = scmp.ne.s32.totalorder %s344, %s346
      %p353 = scmp.eq.s32.totalorder %s43, 3
      %p354 = por %p352, %p353
      %p355 = scmp.ne.s32.totalorder %s346, %s347
      %p356 = scmp.eq.s32.totalorder %s43, 0
      %p357 = por %p355, %p356
      %p358 = scmp.ne.s32.totalorder %s346, %s347
      %p359 = scmp.eq.s32.totalorder %s44, 3
      %p360 = por %p358, %p359
      %p362 = scmp.ne.s32.totalorder %s347, %s361
      %p363 = scmp.eq.s32.totalorder %s44, 0
      %p364 = por %p362, %p363
      %s366 = sadd.s32 %s365, 1
      %p369 = scmp.eq.s32.totalorder %s38, 3
      %p370 = scmp.ne.s32.totalorder %s365, %s367
      %p371 = scmp.eq.s32.totalorder %s38, 0
      %p372 = por %p370, %p371
      %p373 = scmp.ne.s32.totalorder %s365, %s367
      %p374 = scmp.eq.s32.totalorder %s43, 3
      %p375 = por %p373, %p374
      %p376 = scmp.ne.s32.totalorder %s367, %s368
      %p377 = scmp.eq.s32.totalorder %s43, 0
      %p378 = por %p376, %p377
      %p379 = scmp.ne.s32.totalorder %s367, %s368
      %p380 = scmp.eq.s32.totalorder %s44, 3
      %p381 = por %p379, %p380
      %p383 = scmp.ne.s32.totalorder %s368, %s382
      %p384 = scmp.eq.s32.totalorder %s44, 0
      %p385 = por %p383, %p384
      %s386 = ssub.s32 %s45, %s57
      %p387 = scmp.eq.s32.totalorder %s386, 0
      %s389 = sadd.s32 %s388, 1
      %s390 = scalar_select %p387, %s388, %s389
      %p393 = pneg %p387
      %p394 = scmp.eq.s32.totalorder %s38, 3
      %p395 = por %p393, %p394
      %p396 = scmp.ne.s32.totalorder %s388, %s391
      %p397 = scmp.eq.s32.totalorder %s38, 0
      %p398 = por %p396, %p397
      %p399 = scmp.ne.s32.totalorder %s388, %s391
      %p400 = scmp.eq.s32.totalorder %s43, 3
      %p401 = por %p399, %p400
      %p402 = scmp.ne.s32.totalorder %s391, %s392
      %p403 = scmp.eq.s32.totalorder %s43, 0
      %p404 = por %p402, %p403
      %p405 = scmp.ne.s32.totalorder %s391, %s392
      %p406 = scmp.eq.s32.totalorder %s44, 3
      %p407 = por %p405, %p406
      %p409 = scmp.ne.s32.totalorder %s392, %s408
      %p410 = scmp.eq.s32.totalorder %s44, 0
      %p411 = por %p409, %p410
      %p412 = scmp.le.s32.totalorder 1, %s38
      %p413 = scmp.lt.s32.totalorder %s38, 5
      %p414 = pnand %p412, %p413
      %p415 = pneg %p414
      // Predicated region
      $region9: #{decoder_forward.1} parent=5 // pred_check
        _
      $region10: #{decoder_forward.1} parent=5 // pred_check_branch
        %417 = sbr.rel (%p414) target = $region12
      $region11: #{decoder_forward.1} parent=5 // pred_region
        %s418 = ssub.s32 %s38, 1
        // Predicated region
        $region13: #{decoder_forward.1} parent=11 // pred_check
          %p419 = pneg %p357
        $region14: #{decoder_forward.1} parent=11 // pred_check_branch
          %421 = sbr.rel (%p419) target = $region16
        $region15: #{decoder_forward.1} parent=11 // pred_region
          %s423 = ssub.s32 2048, 2048
          %424 = vsyncadd [#allocation19], %s423
          %s425 = sshll.u32 [#allocation18], 4
          %s426 = int_to_ptr.vmem [resolvable:$true] %s425
          %431 = dma.hbm_to_vmem [thread:$0]  %s11, 2048, %s426, [#allocation19], 128, 128, 8
        $region16: #{decoder_forward.1} parent=11 // pred_fallthru
          _
        // Predicated region
        $region17: #{decoder_forward.1} parent=11 // pred_check
          %p432 = pneg %p378
        $region18: #{decoder_forward.1} parent=11 // pred_check_branch
          %434 = sbr.rel (%p432) target = $region20
        $region19: #{decoder_forward.1} parent=11 // pred_region
          %s436 = ssub.s32 16, 16
          %437 = vsyncadd [#allocation19], %s436
          %s439 = sshll.u32 [#allocation20], 4
          %s440 = int_to_ptr.vmem [resolvable:$true] %s439
          %442 = dma.hbm_to_vmem [thread:$0]  %s12, 16, %s440, [#allocation19]
        $region20: #{decoder_forward.1} parent=11 // pred_fallthru
          _
      $region12: #{decoder_forward.1} parent=5 // pred_fallthru
        _
      %p443 = scmp.lt.s32.totalorder %s38, 4
      // Predicated region
      $region21: #{decoder_forward.1} parent=5 // pred_check
        %p444 = pneg %p443
      $region22: #{decoder_forward.1} parent=5 // pred_check_branch
        %446 = sbr.rel (%p444) target = $region24
      $region23: #{decoder_forward.1} parent=5 // pred_region
        // Predicated region
        $region25: #{decoder_forward.1} parent=23 // pred_check
          %p447 = pneg %p70
        $region26: #{decoder_forward.1} parent=23 // pred_check_branch
          %449 = sbr.rel (%p447) target = $region28
        $region27: #{decoder_forward.1} parent=23 // pred_region
          %p450 = scmp.lt.s32.totalorder %s45, 1
          %s451 = scalar_select %p450, %s45, 1
          %s452 = smul.addr %s451, 8
          %s453 = scalar_lea.vmem %s0, %s452
        $region28: #{decoder_forward.1} parent=23 // pred_fallthru
          _
        // Predicated region
        $region29: #{decoder_forward.1} parent=23 // pred_check
          %p454 = pneg %p96
        $region30: #{decoder_forward.1} parent=23 // pred_check_branch
          %456 = sbr.rel (%p454) target = $region32
        $region31: #{decoder_forward.1} parent=23 // pred_region
          %s457 = sand.u32 %s86, 1
          %s458 = scalar_lea.sflag [#allocation4], %s457
          %s459 = sand.u32 %s86, 1
          %s460 = smul.addr %s459, 8
          %s461 = scalar_lea.vmem [#allocation3], %s460
          %s463 = ssub.s32 128, 128
          %464 = vsyncadd %s458, %s463
          %s465 = smul.addr %s45, 128
          %s466 = scalar_lea.hbm %s1, %s465
          %s468 = sshll.u32 %s461, 4
          %s469 = int_to_ptr.vmem [resolvable:$true] %s468
          %471 = dma.hbm_to_vmem [thread:$0]  %s466, 128, %s469, %s458
        $region32: #{decoder_forward.1} parent=23 // pred_fallthru
          _
        // Predicated region
        $region33: #{decoder_forward.1} parent=23 // pred_check
          %p472 = pneg %p122
        $region34: #{decoder_forward.1} parent=23 // pred_check_branch
          %474 = sbr.rel (%p472) target = $region36
        $region35: #{decoder_forward.1} parent=23 // pred_region
          %p475 = scmp.lt.s32.totalorder %s45, 1
          %s476 = scalar_select %p475, %s45, 1
          %s477 = smul.addr %s476, 8
          %s478 = scalar_lea.vmem %s2, %s477
        $region36: #{decoder_forward.1} parent=23 // pred_fallthru
          _
        // Predicated region
        $region37: #{decoder_forward.1} parent=23 // pred_check
          %p479 = pneg %p148
        $region38: #{decoder_forward.1} parent=23 // pred_check_branch
          %481 = sbr.rel (%p479) target = $region40
        $region39: #{decoder_forward.1} parent=23 // pred_region
          %s482 = sand.u32 %s38, 1
          %s483 = scalar_lea.sflag [#allocation7], %s482
          %s484 = sand.u32 %s138, 1
          %s485 = smul.addr %s484, 8
          %s486 = scalar_lea.vmem [#allocation6], %s485
          %s488 = ssub.s32 128, 128
          %489 = vsyncadd %s483, %s488
          %s490 = smul.addr %s45, 128
          %s491 = scalar_lea.hbm %s3, %s490
          %s493 = sshll.u32 %s486, 4
          %s494 = int_to_ptr.vmem [resolvable:$true] %s493
          %496 = dma.hbm_to_vmem [thread:$0]  %s491, 128, %s494, %s483
        $region40: #{decoder_forward.1} parent=23 // pred_fallthru
          _
        // Predicated region
        $region41: #{decoder_forward.1} parent=23 // pred_check
          %p497 = pneg %p174
        $region42: #{decoder_forward.1} parent=23 // pred_check_branch
          %499 = sbr.rel (%p497) target = $region44
        $region43: #{decoder_forward.1} parent=23 // pred_region
          %s500 = sand.u32 %s38, 1
          %s501 = scalar_lea.sflag [#allocation7], %s500
          %s502 = sand.u32 %s164, 1
          %s503 = smul.addr %s502, 768
          %s504 = scalar_lea.vmem [#allocation8], %s503
          %s506 = ssub.s32 12288, 12288
          %507 = vsyncadd %s501, %s506
          %s508 = smul.addr %s46, 96
          %s509 = smul.addr %s508, 128
          %s510 = scalar_lea.hbm %s4, %s509
          %s511 = sshll.u32 %s504, 4
          %s512 = int_to_ptr.vmem [resolvable:$true] %s511
          %517 = dma.hbm_to_vmem [thread:$0]  %s510, 12288, %s512, %s501, 768, 768, 48
        $region44: #{decoder_forward.1} parent=23 // pred_fallthru
          _
        // Predicated region
        $region45: #{decoder_forward.1} parent=23 // pred_check
          %p518 = pneg %p200
        $region46: #{decoder_forward.1} parent=23 // pred_check_branch
          %520 = sbr.rel (%p518) target = $region48
        $region47: #{decoder_forward.1} parent=23 // pred_region
          %s521 = sand.u32 %s38, 1
          %s522 = scalar_lea.sflag [#allocation10], %s521
          %s523 = sand.u32 %s190, 1
          %s524 = smul.addr %s523, 256
          %s525 = scalar_lea.vmem [#allocation9], %s524
          %s527 = ssub.s32 4096, 4096
          %528 = vsyncadd %s522, %s527
          %s529 = smul.addr %s46, 32
          %s530 = smul.addr %s529, 128
          %s531 = scalar_lea.hbm %s5, %s530
          %s532 = sshll.u32 %s525, 4
          %s533 = int_to_ptr.vmem [resolvable:$true] %s532
          %538 = dma.hbm_to_vmem [thread:$0]  %s531, 4096, %s533, %s522, 128, 128, 8
        $region48: #{decoder_forward.1} parent=23 // pred_fallthru
          _
        // Predicated region
        $region49: #{decoder_forward.1} parent=23 // pred_check
          %p539 = pneg %p226
        $region50: #{decoder_forward.1} parent=23 // pred_check_branch
          %541 = sbr.rel (%p539) target = $region52
        $region51: #{decoder_forward.1} parent=23 // pred_region
          %s542 = sand.u32 %s38, 1
          %s543 = scalar_lea.sflag [#allocation10], %s542
          %s544 = sand.u32 %s216, 1
          %s545 = smul.addr %s544, 256
          %s546 = scalar_lea.vmem [#allocation11], %s545
          %s548 = ssub.s32 4096, 4096
          %549 = vsyncadd %s543, %s548
          %s550 = smul.addr %s46, 32
          %s551 = smul.addr %s550, 128
          %s552 = scalar_lea.hbm %s6, %s551
          %s553 = sshll.u32 %s546, 4
          %s554 = int_to_ptr.vmem [resolvable:$true] %s553
          %559 = dma.hbm_to_vmem [thread:$0]  %s552, 4096, %s554, %s543, 256, 256, 16
        $region52: #{decoder_forward.1} parent=23 // pred_fallthru
          _
        // Predicated region
        $region53: #{decoder_forward.1} parent=23 // pred_check
          %p560 = pneg %p252
        $region54: #{decoder_forward.1} parent=23 // pred_check_branch
          %562 = sbr.rel (%p560) target = $region56
        $region55: #{decoder_forward.1} parent=23 // pred_region
          %s563 = sand.u32 %s38, 1
          %s564 = scalar_lea.sflag [#allocation13], %s563
          %s565 = sand.u32 %s242, 1
          %s566 = smul.addr %s565, 512
          %s567 = scalar_lea.vmem [#allocation12], %s566
          %s569 = ssub.s32 8192, 8192
          %570 = vsyncadd %s564, %s569
          %s571 = smul.addr %s46, 64
          %s572 = smul.addr %s571, 128
          %s573 = scalar_lea.hbm %s7, %s572
          %s574 = sshll.u32 %s567, 4
          %s575 = int_to_ptr.vmem [resolvable:$true] %s574
          %580 = dma.hbm_to_vmem [thread:$0]  %s573, 8192, %s575, %s564, 512, 512, 32
        $region56: #{decoder_forward.1} parent=23 // pred_fallthru
          _
        // Predicated region
        $region57: #{decoder_forward.1} parent=23 // pred_check
          %p581 = pneg %p278
        $region58: #{decoder_forward.1} parent=23 // pred_check_branch
          %583 = sbr.rel (%p581) target = $region60
        $region59: #{decoder_forward.1} parent=23 // pred_region
          %s584 = sand.u32 %s38, 1
          %s585 = scalar_lea.sflag [#allocation13], %s584
          %s586 = sand.u32 %s268, 1
          %s587 = smul.addr %s586, 256
          %s588 = scalar_lea.vmem [#allocation14], %s587
          %s590 = ssub.s32 4096, 4096
          %591 = vsyncadd %s585, %s590
          %s592 = smul.addr %s46, 32
          %s593 = smul.addr %s592, 128
          %s594 = scalar_lea.hbm %s8, %s593
          %s595 = sshll.u32 %s588, 4
          %s596 = int_to_ptr.vmem [resolvable:$true] %s595
          %601 = dma.hbm_to_vmem [thread:$0]  %s594, 4096, %s596, %s585, 128, 128, 8
        $region60: #{decoder_forward.1} parent=23 // pred_fallthru
          _
        // Predicated region
        $region61: #{decoder_forward.1} parent=23 // pred_check
          %p602 = pneg %p304
        $region62: #{decoder_forward.1} parent=23 // pred_check_branch
          %604 = sbr.rel (%p602) target = $region64
        $region63: #{decoder_forward.1} parent=23 // pred_region
          %s605 = sand.u32 %s38, 1
          %s606 = scalar_lea.sflag [#allocation16], %s605
          %s607 = sand.u32 %s294, 1
          %s608 = smul.addr %s607, 2048
          %s609 = scalar_lea.vmem [#allocation15], %s608
          %s611 = ssub.s32 32768, 32768
          %612 = vsyncadd %s606, %s611
          %s613 = smul.addr %s46, 256
          %s614 = smul.addr %s613, 128
          %s615 = scalar_lea.hbm %s9, %s614
          %s616 = sshll.u32 %s609, 4
          %s617 = int_to_ptr.vmem [resolvable:$true] %s616
          %622 = dma.hbm_to_vmem [thread:$0]  %s615, 32768, %s617, %s606, 2048, 2048, 128
        $region64: #{decoder_forward.1} parent=23 // pred_fallthru
          _
        // Predicated region
        $region65: #{decoder_forward.1} parent=23 // pred_check
          %p623 = pneg %p330
        $region66: #{decoder_forward.1} parent=23 // pred_check_branch
          %625 = sbr.rel (%p623) target = $region68
        $region67: #{decoder_forward.1} parent=23 // pred_region
          %s626 = sand.u32 %s38, 1
          %s627 = scalar_lea.sflag [#allocation16], %s626
          %s628 = sand.u32 %s320, 1
          %s629 = smul.addr %s628, 2048
          %s630 = scalar_lea.vmem [#allocation17], %s629
          %s632 = ssub.s32 32768, 32768
          %633 = vsyncadd %s627, %s632
          %s634 = smul.addr %s46, 256
          %s635 = smul.addr %s634, 128
          %s636 = scalar_lea.hbm %s10, %s635
          %s637 = sshll.u32 %s630, 4
          %s638 = int_to_ptr.vmem [resolvable:$true] %s637
          %643 = dma.hbm_to_vmem [thread:$0]  %s636, 32768, %s638, %s627, 128, 128, 8
        $region68: #{decoder_forward.1} parent=23 // pred_fallthru
          _
      $region24: #{decoder_forward.1} parent=5 // pred_fallthru
        _
      %p644 = scmp.le.s32.totalorder 1, %s38
      %p645 = scmp.lt.s32.totalorder %s38, 5
      %p646 = pnand %p644, %p645
      %p647 = pneg %p646
      // Predicated region
      $region69: #{decoder_forward.1} parent=5 // pred_check
        _
      $region70: #{decoder_forward.1} parent=5 // pred_check_branch
        %649 = sbr.rel (%p646) target = $region72
      $region71: #{decoder_forward.1} parent=5 // pred_region
        %s650 = ssub.s32 %s38, 1
        %s651 = sand.u32 %s89, 1
        %s652 = scalar_lea.sflag [#allocation4], %s651
        %s653 = sand.u32 %s89, 1
        %s654 = smul.addr %s653, 8
        %s655 = scalar_lea.vmem [#allocation3], %s654
        // Predicated region
        $region73: #{decoder_forward.1} parent=71 // pred_check
          %p656 = pneg %p102
        $region74: #{decoder_forward.1} parent=71 // pred_check_branch
          %658 = sbr.rel (%p656) target = $region76
        $region75: #{decoder_forward.1} parent=71 // pred_region
          %659 = dma.done %s652, 128
        $region76: #{decoder_forward.1} parent=71 // pred_fallthru
          _
        %s660 = sand.u32 %s43, 1
        %s661 = scalar_lea.sflag [#allocation7], %s660
        %s662 = sand.u32 %s141, 1
        %s663 = smul.addr %s662, 8
        %s664 = scalar_lea.vmem [#allocation6], %s663
        // Predicated region
        $region77: #{decoder_forward.1} parent=71 // pred_check
          %p665 = pneg %p154
        $region78: #{decoder_forward.1} parent=71 // pred_check_branch
          %667 = sbr.rel (%p665) target = $region80
        $region79: #{decoder_forward.1} parent=71 // pred_region
          %668 = dma.done %s661, 128
        $region80: #{decoder_forward.1} parent=71 // pred_fallthru
          _
        %s669 = sand.u32 %s43, 1
        %s670 = scalar_lea.sflag [#allocation7], %s669
        %s671 = sand.u32 %s167, 1
        %s672 = smul.addr %s671, 768
        %s673 = scalar_lea.vmem [#allocation8], %s672
        // Predicated region
        $region81: #{decoder_forward.1} parent=71 // pred_check
          %p674 = pneg %p180
        $region82: #{decoder_forward.1} parent=71 // pred_check_branch
          %676 = sbr.rel (%p674) target = $region84
        $region83: #{decoder_forward.1} parent=71 // pred_region
          %677 = dma.done %s670, 12288
        $region84: #{decoder_forward.1} parent=71 // pred_fallthru
          _
        %s678 = sand.u32 %s43, 1
        %s679 = scalar_lea.sflag [#allocation10], %s678
        %s680 = sand.u32 %s193, 1
        %s681 = smul.addr %s680, 256
        %s682 = scalar_lea.vmem [#allocation9], %s681
        // Predicated region
        $region85: #{decoder_forward.1} parent=71 // pred_check
          %p683 = pneg %p206
        $region86: #{decoder_forward.1} parent=71 // pred_check_branch
          %685 = sbr.rel (%p683) target = $region88
        $region87: #{decoder_forward.1} parent=71 // pred_region
          %686 = dma.done %s679, 4096
        $region88: #{decoder_forward.1} parent=71 // pred_fallthru
          _
        %s687 = sand.u32 %s43, 1
        %s688 = scalar_lea.sflag [#allocation10], %s687
        %s689 = sand.u32 %s219, 1
        %s690 = smul.addr %s689, 256
        %s691 = scalar_lea.vmem [#allocation11], %s690
        // Predicated region
        $region89: #{decoder_forward.1} parent=71 // pred_check
          %p692 = pneg %p232
        $region90: #{decoder_forward.1} parent=71 // pred_check_branch
          %694 = sbr.rel (%p692) target = $region92
        $region91: #{decoder_forward.1} parent=71 // pred_region
          %695 = dma.done %s688, 4096
        $region92: #{decoder_forward.1} parent=71 // pred_fallthru
          _
        %s696 = sand.u32 %s43, 1
        %s697 = scalar_lea.sflag [#allocation13], %s696
        %s698 = sand.u32 %s245, 1
        %s699 = smul.addr %s698, 512
        %s700 = scalar_lea.vmem [#allocation12], %s699
        // Predicated region
        $region93: #{decoder_forward.1} parent=71 // pred_check
          %p701 = pneg %p258
        $region94: #{decoder_forward.1} parent=71 // pred_check_branch
          %703 = sbr.rel (%p701) target = $region96
        $region95: #{decoder_forward.1} parent=71 // pred_region
          %704 = dma.done %s697, 8192
        $region96: #{decoder_forward.1} parent=71 // pred_fallthru
          _
        %s705 = sand.u32 %s43, 1
        %s706 = scalar_lea.sflag [#allocation13], %s705
        %s707 = sand.u32 %s271, 1
        %s708 = smul.addr %s707, 256
        %s709 = scalar_lea.vmem [#allocation14], %s708
        // Predicated region
        $region97: #{decoder_forward.1} parent=71 // pred_check
          %p710 = pneg %p284
        $region98: #{decoder_forward.1} parent=71 // pred_check_branch
          %712 = sbr.rel (%p710) target = $region100
        $region99: #{decoder_forward.1} parent=71 // pred_region
          %713 = dma.done %s706, 4096
        $region100: #{decoder_forward.1} parent=71 // pred_fallthru
          _
        %s714 = sand.u32 %s43, 1
        %s715 = scalar_lea.sflag [#allocation16], %s714
        %s716 = sand.u32 %s297, 1
        %s717 = smul.addr %s716, 2048
        %s718 = scalar_lea.vmem [#allocation15], %s717
        // Predicated region
        $region101: #{decoder_forward.1} parent=71 // pred_check
          %p719 = pneg %p310
        $region102: #{decoder_forward.1} parent=71 // pred_check_branch
          %721 = sbr.rel (%p719) target = $region104
        $region103: #{decoder_forward.1} parent=71 // pred_region
          %722 = dma.done %s715, 32768
        $region104: #{decoder_forward.1} parent=71 // pred_fallthru
          _
        %s723 = sand.u32 %s43, 1
        %s724 = scalar_lea.sflag [#allocation16], %s723
        %s725 = sand.u32 %s323, 1
        %s726 = smul.addr %s725, 2048
        %s727 = scalar_lea.vmem [#allocation17], %s726
        // Predicated region
        $region105: #{decoder_forward.1} parent=71 // pred_check
          %p728 = pneg %p336
        $region106: #{decoder_forward.1} parent=71 // pred_check_branch
          %730 = sbr.rel (%p728) target = $region108
        $region107: #{decoder_forward.1} parent=71 // pred_region
          %731 = dma.done %s724, 32768
        $region108: #{decoder_forward.1} parent=71 // pred_fallthru
          _
        // Predicated region
        $region109: #{decoder_forward.1} parent=71 // pred_check
          %p732 = pneg %p357
        $region110: #{decoder_forward.1} parent=71 // pred_check_branch
          %734 = sbr.rel (%p732) target = $region112
        $region111: #{decoder_forward.1} parent=71 // pred_region
          %735 = dma.done [#allocation19], 2048
        $region112: #{decoder_forward.1} parent=71 // pred_fallthru
          _
        // Predicated region
        $region113: #{decoder_forward.1} parent=71 // pred_check
          %p736 = pneg %p378
        $region114: #{decoder_forward.1} parent=71 // pred_check_branch
          %738 = sbr.rel (%p736) target = $region116
        $region115: #{decoder_forward.1} parent=71 // pred_region
          %739 = dma.done [#allocation19], 16
        $region116: #{decoder_forward.1} parent=71 // pred_fallthru
          _
        %p740 = scmp.lt.s32.totalorder %s47, 1
        %s741 = scalar_select %p740, %s47, 1
        %s742 = smul.addr %s741, 8
        %s743 = scalar_lea.vmem %s0, %s742
        %p744 = pneg %p76
        %p745 = pneg %p73
        %s746 = sand.u32 %s89, 1
        %s747 = scalar_lea.sflag [#allocation4], %s746
        %s748 = sand.u32 %s89, 1
        %s749 = smul.addr %s748, 8
        %s750 = scalar_lea.vmem [#allocation3], %s749
        %p751 = pneg %p102
        %p752 = pneg %p99
        %p753 = scmp.lt.s32.totalorder %s47, 1
        %s754 = scalar_select %p753, %s47, 1
        %s755 = smul.addr %s754, 8
        %s756 = scalar_lea.vmem %s2, %s755
        %p757 = pneg %p128
        %p758 = pneg %p125
        %s759 = sand.u32 %s43, 1
        %s760 = scalar_lea.sflag [#allocation7], %s759
        %s761 = sand.u32 %s141, 1
        %s762 = smul.addr %s761, 8
        %s763 = scalar_lea.vmem [#allocation6], %s762
        %p764 = pneg %p154
        %p765 = pneg %p151
        %s766 = sand.u32 %s43, 1
        %s767 = scalar_lea.sflag [#allocation7], %s766
        %s768 = sand.u32 %s167, 1
        %s769 = smul.addr %s768, 768
        %s770 = scalar_lea.vmem [#allocation8], %s769
        %p771 = pneg %p180
        %p772 = pneg %p177
        %s773 = sand.u32 %s43, 1
        %s774 = scalar_lea.sflag [#allocation10], %s773
        %s775 = sand.u32 %s193, 1
        %s776 = smul.addr %s775, 256
        %s777 = scalar_lea.vmem [#allocation9], %s776
        %p778 = pneg %p206
        %p779 = pneg %p203
        %s780 = sand.u32 %s43, 1
        %s781 = scalar_lea.sflag [#allocation10], %s780
        %s782 = sand.u32 %s219, 1
        %s783 = smul.addr %s782, 256
        %s784 = scalar_lea.vmem [#allocation11], %s783
        %p785 = pneg %p232
        %p786 = pneg %p229
        %s787 = sand.u32 %s43, 1
        %s788 = scalar_lea.sflag [#allocation13], %s787
        %s789 = sand.u32 %s245, 1
        %s790 = smul.addr %s789, 512
        %s791 = scalar_lea.vmem [#allocation12], %s790
        %p792 = pneg %p258
        %p793 = pneg %p255
        %s794 = sand.u32 %s43, 1
        %s795 = scalar_lea.sflag [#allocation13], %s794
        %s796 = sand.u32 %s271, 1
        %s797 = smul.addr %s796, 256
        %s798 = scalar_lea.vmem [#allocation14], %s797
        %p799 = pneg %p284
        %p800 = pneg %p281
        %s801 = sand.u32 %s43, 1
        %s802 = scalar_lea.sflag [#allocation16], %s801
        %s803 = sand.u32 %s297, 1
        %s804 = smul.addr %s803, 2048
        %s805 = scalar_lea.vmem [#allocation15], %s804
        %p806 = pneg %p310
        %p807 = pneg %p307
        %s808 = sand.u32 %s43, 1
        %s809 = scalar_lea.sflag [#allocation16], %s808
        %s810 = sand.u32 %s323, 1
        %s811 = smul.addr %s810, 2048
        %s812 = scalar_lea.vmem [#allocation17], %s811
        %p813 = pneg %p336
        %p814 = pneg %p333
        %p815 = pneg %p357
        %p816 = pneg %p354
        %p817 = pneg %p378
        %p818 = pneg %p375
        %p819 = pneg %p404
        %p820 = pneg %p401
        %s821 = sand.u32 %s391, 1
        %s822 = scalar_lea.sflag [#allocation5], %s821
        %s823 = sand.u32 %s391, 1
        %s824 = smul.addr %s823, 8
        %s825 = scalar_lea.vmem [#allocation21], %s824
        %p826 = scmp.lt.s32.totalorder %s47, 1
        %s827 = scalar_select %p826, %s47, 1
        %s828 = smul.addr %s827, 8
        %s829 = scalar_lea.vmem %s0, %s828
        %p830 = scmp.lt.s32.totalorder %s47, 1
        %s831 = scalar_select %p830, %s47, 1
        %s832 = smul.addr %s831, 8
        %s833 = scalar_lea.vmem %s2, %s832
        %p834 = scmp.eq.s32.totalorder %s48, 0
        // Predicated region
        $region117: #{decoder_forward.1} parent=71 // pred_check
          %p835 = pneg %p834
        $region118: #{decoder_forward.1} parent=71 // pred_check_branch
          %837 = sbr.rel (%p835) target = $region120
        $region119: #{decoder_forward.1} parent=71 // pred_region
          %v838 = vld [vmem:[%s829] sm:$0xff]
          %839 = vst [vmem:[#allocation2] sm:$0xff] %v838
        $region120: #{decoder_forward.1} parent=71 // pred_fallthru
          _
        %v840 = vld [vmem:[#allocation2] sm:$0xff]
        %v841 = vld [vmem:[%s655] sm:$0xff]
        %v842 = vld [vmem:[%s673] sm:$0xff]
        %v843 = vld [vmem:[%s673 + $0x8] sm:$0xff]
        %v844 = vld [vmem:[%s673 + $0x10] sm:$0xff]
        %v845 = vld [vmem:[%s673 + $0x18] sm:$0xff]
        %v846 = vld [vmem:[%s673 + $0x20] sm:$0xff]
        %v847 = vld [vmem:[%s673 + $0x28] sm:$0xff]
        %v848 = vld [vmem:[%s673 + $0x30] sm:$0xff]
        %v849 = vld [vmem:[%s673 + $0x38] sm:$0xff]
        %v850 = vld [vmem:[%s673 + $0x40] sm:$0xff]
        %v851 = vld [vmem:[%s673 + $0x48] sm:$0xff]
        %v852 = vld [vmem:[%s673 + $0x50] sm:$0xff]
        %v853 = vld [vmem:[%s673 + $0x58] sm:$0xff]
        %v854 = vld [vmem:[%s673 + $0x60] sm:$0xff]
        %v855 = vld [vmem:[%s673 + $0x68] sm:$0xff]
        %v856 = vld [vmem:[%s673 + $0x70] sm:$0xff]
        %v857 = vld [vmem:[%s673 + $0x78] sm:$0xff]
        %v858 = vld [vmem:[%s673 + $0x80] sm:$0xff]
        %v859 = vld [vmem:[%s673 + $0x88] sm:$0xff]
        %v860 = vld [vmem:[%s673 + $0x90] sm:$0xff]
        %v861 = vld [vmem:[%s673 + $0x98] sm:$0xff]
        %v862 = vld [vmem:[%s673 + $0xa0] sm:$0xff]
        %v863 = vld [vmem:[%s673 + $0xa8] sm:$0xff]
        %v864 = vld [vmem:[%s673 + $0xb0] sm:$0xff]
        %v865 = vld [vmem:[%s673 + $0xb8] sm:$0xff]
        %v866 = vld [vmem:[%s673 + $0xc0] sm:$0xff]
        %v867 = vld [vmem:[%s673 + $0xc8] sm:$0xff]
        %v868 = vld [vmem:[%s673 + $0xd0] sm:$0xff]
        %v869 = vld [vmem:[%s673 + $0xd8] sm:$0xff]
        %v870 = vld [vmem:[%s673 + $0xe0] sm:$0xff]
        %v871 = vld [vmem:[%s673 + $0xe8] sm:$0xff]
        %v872 = vld [vmem:[%s673 + $0xf0] sm:$0xff]
        %v873 = vld [vmem:[%s673 + $0xf8] sm:$0xff]
        %v874 = vld [vmem:[%s673 + $0x100] sm:$0xff]
        %v875 = vld [vmem:[%s673 + $0x108] sm:$0xff]
        %v876 = vld [vmem:[%s673 + $0x110] sm:$0xff]
        %v877 = vld [vmem:[%s673 + $0x118] sm:$0xff]
        %v878 = vld [vmem:[%s673 + $0x120] sm:$0xff]
        %v879 = vld [vmem:[%s673 + $0x128] sm:$0xff]
        %v880 = vld [vmem:[%s673 + $0x130] sm:$0xff]
        %v881 = vld [vmem:[%s673 + $0x138] sm:$0xff]
        %v882 = vld [vmem:[%s673 + $0x140] sm:$0xff]
        %v883 = vld [vmem:[%s673 + $0x148] sm:$0xff]
        %v884 = vld [vmem:[%s673 + $0x150] sm:$0xff]
        %v885 = vld [vmem:[%s673 + $0x158] sm:$0xff]
        %v886 = vld [vmem:[%s673 + $0x160] sm:$0xff]
        %v887 = vld [vmem:[%s673 + $0x168] sm:$0xff]
        %v888 = vld [vmem:[%s673 + $0x170] sm:$0xff]
        %v889 = vld [vmem:[%s673 + $0x178] sm:$0xff]
        %v890 = vld [vmem:[%s673 + $0x180] sm:$0xff]
        %v891 = vld [vmem:[%s673 + $0x188] sm:$0xff]
        %v892 = vld [vmem:[%s673 + $0x190] sm:$0xff]
        %v893 = vld [vmem:[%s673 + $0x198] sm:$0xff]
        %v894 = vld [vmem:[%s673 + $0x1a0] sm:$0xff]
        %v895 = vld [vmem:[%s673 + $0x1a8] sm:$0xff]
        %v896 = vld [vmem:[%s673 + $0x1b0] sm:$0xff]
        %v897 = vld [vmem:[%s673 + $0x1b8] sm:$0xff]
        %v898 = vld [vmem:[%s673 + $0x1c0] sm:$0xff]
        %v899 = vld [vmem:[%s673 + $0x1c8] sm:$0xff]
        %v900 = vld [vmem:[%s673 + $0x1d0] sm:$0xff]
        %v901 = vld [vmem:[%s673 + $0x1d8] sm:$0xff]
        %v902 = vld [vmem:[%s673 + $0x1e0] sm:$0xff]
        %v903 = vld [vmem:[%s673 + $0x1e8] sm:$0xff]
        %v904 = vld [vmem:[%s673 + $0x1f0] sm:$0xff]
        %v905 = vld [vmem:[%s673 + $0x1f8] sm:$0xff]
        %v906 = vld [vmem:[%s673 + $0x200] sm:$0xff]
        %v907 = vld [vmem:[%s673 + $0x208] sm:$0xff]
        %v908 = vld [vmem:[%s673 + $0x210] sm:$0xff]
        %v909 = vld [vmem:[%s673 + $0x218] sm:$0xff]
        %v910 = vld [vmem:[%s673 + $0x220] sm:$0xff]
        %v911 = vld [vmem:[%s673 + $0x228] sm:$0xff]
        %v912 = vld [vmem:[%s673 + $0x230] sm:$0xff]
        %v913 = vld [vmem:[%s673 + $0x238] sm:$0xff]
        %v914 = vld [vmem:[%s673 + $0x240] sm:$0xff]
        %v915 = vld [vmem:[%s673 + $0x248] sm:$0xff]
        %v916 = vld [vmem:[%s673 + $0x250] sm:$0xff]
        %v917 = vld [vmem:[%s673 + $0x258] sm:$0xff]
        %v918 = vld [vmem:[%s673 + $0x260] sm:$0xff]
        %v919 = vld [vmem:[%s673 + $0x268] sm:$0xff]
        %v920 = vld [vmem:[%s673 + $0x270] sm:$0xff]
        %v921 = vld [vmem:[%s673 + $0x278] sm:$0xff]
        %v922 = vld [vmem:[%s673 + $0x280] sm:$0xff]
        %v923 = vld [vmem:[%s673 + $0x288] sm:$0xff]
        %v924 = vld [vmem:[%s673 + $0x290] sm:$0xff]
        %v925 = vld [vmem:[%s673 + $0x298] sm:$0xff]
        %v926 = vld [vmem:[%s673 + $0x2a0] sm:$0xff]
        %v927 = vld [vmem:[%s673 + $0x2a8] sm:$0xff]
        %v928 = vld [vmem:[%s673 + $0x2b0] sm:$0xff]
        %v929 = vld [vmem:[%s673 + $0x2b8] sm:$0xff]
        %v930 = vld [vmem:[%s673 + $0x2c0] sm:$0xff]
        %v931 = vld [vmem:[%s673 + $0x2c8] sm:$0xff]
        %v932 = vld [vmem:[%s673 + $0x2d0] sm:$0xff]
        %v933 = vld [vmem:[%s673 + $0x2d8] sm:$0xff]
        %v934 = vld [vmem:[%s673 + $0x2e0] sm:$0xff]
        %v935 = vld [vmem:[%s673 + $0x2e8] sm:$0xff]
        %v936 = vld [vmem:[%s673 + $0x2f0] sm:$0xff]
        %v937 = vld [vmem:[%s673 + $0x2f8] sm:$0xff]
        %938 = vmatprep.subr.mxu0 %v933
        %939 = vmatpush1.msra.mxu0 %v932
        %940 = vmatprep.subr.mxu0 %v927
        %941 = vmatpush1.msra.mxu0 %v926
        %942 = vmatprep.subr.mxu0 %v921
        %943 = vmatpush1.msra.mxu0 %v920
        %944 = vmatprep.subr.mxu0 %v915
        %945 = vmatpush1.msra.mxu0 %v914
        %946 = vmatprep.subr.mxu0 %v909
        %947 = vmatpush1.msra.mxu0 %v908
        %948 = vmatprep.subr.mxu0 %v903
        %949 = vmatpush1.msra.mxu0 %v902
        %950 = vmatprep.subr.mxu0 %v897
        %951 = vmatpush1.msra.mxu0 %v896
        %952 = vmatprep.subr.mxu0 %v891
        %953 = vmatpush1.msra.mxu0 %v890
        %954 = vmatprep.subr.mxu0 %v885
        %955 = vmatpush1.msra.mxu0 %v884
        %956 = vmatprep.subr.mxu0 %v879
        %957 = vmatpush1.msra.mxu0 %v878
        %958 = vmatprep.subr.mxu0 %v873
        %959 = vmatpush1.msra.mxu0 %v872
        %960 = vmatprep.subr.mxu0 %v867
        %961 = vmatpush1.msra.mxu0 %v866
        %962 = vmatprep.subr.mxu0 %v861
        %963 = vmatpush1.msra.mxu0 %v860
        %964 = vmatprep.subr.mxu0 %v855
        %965 = vmatpush1.msra.mxu0 %v854
        %966 = vmatprep.subr.mxu0 %v849
        %967 = vmatpush1.msra.mxu0 %v848
        %968 = vmatprep.subr.mxu0 %v843
        %969 = vmatpush1.msra.mxu0 %v842
        %970 = vmatprep.subr.mxu0 0.0
        %971 = vmatpush2.msra.mxu0 0.0
        %972 = vmatprep.subr.mxu0 0.0
        %973 = vmatpush2.msra.mxu0 0.0
        %974 = vmatprep.subr.mxu0 0.0
        %975 = vmatpush2.msra.mxu0 0.0
        %976 = vmatprep.subr.mxu0 0.0
        %977 = vmatpush2.msra.mxu0 0.0
        %978 = vmatprep.subr.mxu0 0.0
        %979 = vmatpush2.msra.mxu0 0.0
        %980 = vmatprep.subr.mxu0 0.0
        %981 = vmatpush2.msra.mxu0 0.0
        %982 = vmatprep.subr.mxu0 0.0
        %983 = vmatpush2.msra.mxu0 0.0
        %984 = vmatprep.subr.mxu0 0.0
        %985 = vmatpush2.msra.mxu0 0.0
        %986 = vmatprep.subr.mxu0 0.0
        %987 = vmatpush2.msra.mxu0 0.0
        %988 = vmatprep.subr.mxu0 0.0
        %989 = vmatpush2.msra.mxu0 0.0
        %990 = vmatprep.subr.mxu0 0.0
        %991 = vmatpush2.msra.mxu0 0.0
        %992 = vmatprep.subr.mxu0 0.0
        %993 = vmatpush2.msra.mxu0 0.0
        %994 = vmatprep.subr.mxu0 0.0
        %995 = vmatpush2.msra.mxu0 0.0
        %996 = vmatprep.subr.mxu0 0.0
        %997 = vmatpush2.msra.mxu0 0.0
        %998 = vmatprep.subr.mxu0 0.0
        %999 = vmatpush2.msra.mxu0 0.0
        %1000 = vmatprep.subr.mxu0 0.0
        %1001 = vmatpush2.msra.mxu0 0.0
        %1002 = vmatprep.mubr.f32.mxu0 0.0
        %1003 = vmatmul.mubr.f32.gmra.mxu0 %v840
        %v1004 = vpop.f32.mrf.mxu0
        %v1005 = vadd.f32 0.0, %v1004
        %v1006 = vpop.f32.mrf.mxu0
        %v1007 = vadd.f32 0.0, %v1006
        %1008 = vdwg.mxu0
        %1009 = vmatprep.subr.mxu0 %v935
        %1010 = vmatpush1.msra.mxu0 %v934
        %1011 = vmatprep.subr.mxu0 %v929
        %1012 = vmatpush1.msra.mxu0 %v928
        %1013 = vmatprep.subr.mxu0 %v923
        %1014 = vmatpush1.msra.mxu0 %v922
        %1015 = vmatprep.subr.mxu0 %v917
        %1016 = vmatpush1.msra.mxu0 %v916
        %1017 = vmatprep.subr.mxu0 %v911
        %1018 = vmatpush1.msra.mxu0 %v910
        %1019 = vmatprep.subr.mxu0 %v905
        %1020 = vmatpush1.msra.mxu0 %v904
        %1021 = vmatprep.subr.mxu0 %v899
        %1022 = vmatpush1.msra.mxu0 %v898
        %1023 = vmatprep.subr.mxu0 %v893
        %1024 = vmatpush1.msra.mxu0 %v892
        %1025 = vmatprep.subr.mxu0 %v887
        %1026 = vmatpush1.msra.mxu0 %v886
        %1027 = vmatprep.subr.mxu0 %v881
        %1028 = vmatpush1.msra.mxu0 %v880
        %1029 = vmatprep.subr.mxu0 %v875
        %1030 = vmatpush1.msra.mxu0 %v874
        %1031 = vmatprep.subr.mxu0 %v869
        %1032 = vmatpush1.msra.mxu0 %v868
        %1033 = vmatprep.subr.mxu0 %v863
        %1034 = vmatpush1.msra.mxu0 %v862
        %1035 = vmatprep.subr.mxu0 %v857
        %1036 = vmatpush1.msra.mxu0 %v856
        %1037 = vmatprep.subr.mxu0 %v851
        %1038 = vmatpush1.msra.mxu0 %v850
        %1039 = vmatprep.subr.mxu0 %v845
        %1040 = vmatpush1.msra.mxu0 %v844
        %1041 = vmatprep.subr.mxu0 0.0
        %1042 = vmatpush2.msra.mxu0 0.0
        %1043 = vmatprep.subr.mxu0 0.0
        %1044 = vmatpush2.msra.mxu0 0.0
        %1045 = vmatprep.subr.mxu0 0.0
        %1046 = vmatpush2.msra.mxu0 0.0
        %1047 = vmatprep.subr.mxu0 0.0
        %1048 = vmatpush2.msra.mxu0 0.0
        %1049 = vmatprep.subr.mxu0 0.0
        %1050 = vmatpush2.msra.mxu0 0.0
        %1051 = vmatprep.subr.mxu0 0.0
        %1052 = vmatpush2.msra.mxu0 0.0
        %1053 = vmatprep.subr.mxu0 0.0
        %1054 = vmatpush2.msra.mxu0 0.0
        %1055 = vmatprep.subr.mxu0 0.0
        %1056 = vmatpush2.msra.mxu0 0.0
        %1057 = vmatprep.subr.mxu0 0.0
        %1058 = vmatpush2.msra.mxu0 0.0
        %1059 = vmatprep.subr.mxu0 0.0
        %1060 = vmatpush2.msra.mxu0 0.0
        %1061 = vmatprep.subr.mxu0 0.0
        %1062 = vmatpush2.msra.mxu0 0.0
        %1063 = vmatprep.subr.mxu0 0.0
        %1064 = vmatpush2.msra.mxu0 0.0
        %1065 = vmatprep.subr.mxu0 0.0
        %1066 = vmatpush2.msra.mxu0 0.0
        %1067 = vmatprep.subr.mxu0 0.0
        %1068 = vmatpush2.msra.mxu0 0.0
        %1069 = vmatprep.subr.mxu0 0.0
        %1070 = vmatpush2.msra.mxu0 0.0
        %1071 = vmatprep.subr.mxu0 0.0
        %1072 = vmatpush2.msra.mxu0 0.0
        %1073 = vmatprep.mubr.f32.mxu0 0.0
        %1074 = vmatmul.mubr.f32.gmra.mxu0 %v840
        %v1075 = vpop.f32.mrf.mxu0
        %v1076 = vadd.f32 0.0, %v1075
        %v1077 = vpop.f32.mrf.mxu0
        %v1078 = vadd.f32 0.0, %v1077
        %1079 = vdwg.mxu0
        %1080 = vmatprep.subr.mxu0 %v937
        %1081 = vmatpush1.msra.mxu0 %v936
        %1082 = vmatprep.subr.mxu0 %v931
        %1083 = vmatpush1.msra.mxu0 %v930
        %1084 = vmatprep.subr.mxu0 %v925
        %1085 = vmatpush1.msra.mxu0 %v924
        %1086 = vmatprep.subr.mxu0 %v919
        %1087 = vmatpush1.msra.mxu0 %v918
        %1088 = vmatprep.subr.mxu0 %v913
        %1089 = vmatpush1.msra.mxu0 %v912
        %1090 = vmatprep.subr.mxu0 %v907
        %1091 = vmatpush1.msra.mxu0 %v906
        %1092 = vmatprep.subr.mxu0 %v901
        %1093 = vmatpush1.msra.mxu0 %v900
        %1094 = vmatprep.subr.mxu0 %v895
        %1095 = vmatpush1.msra.mxu0 %v894
        %1096 = vmatprep.subr.mxu0 %v889
        %1097 = vmatpush1.msra.mxu0 %v888
        %1098 = vmatprep.subr.mxu0 %v883
        %1099 = vmatpush1.msra.mxu0 %v882
        %1100 = vmatprep.subr.mxu0 %v877
        %1101 = vmatpush1.msra.mxu0 %v876
        %1102 = vmatprep.subr.mxu0 %v871
        %1103 = vmatpush1.msra.mxu0 %v870
        %1104 = vmatprep.subr.mxu0 %v865
        %1105 = vmatpush1.msra.mxu0 %v864
        %1106 = vmatprep.subr.mxu0 %v859
        %1107 = vmatpush1.msra.mxu0 %v858
        %1108 = vmatprep.subr.mxu0 %v853
        %1109 = vmatpush1.msra.mxu0 %v852
        %1110 = vmatprep.subr.mxu0 %v847
        %1111 = vmatpush1.msra.mxu0 %v846
        %1112 = vmatprep.subr.mxu0 0.0
        %1113 = vmatpush2.msra.mxu0 0.0
        %1114 = vmatprep.subr.mxu0 0.0
        %1115 = vmatpush2.msra.mxu0 0.0
        %1116 = vmatprep.subr.mxu0 0.0
        %1117 = vmatpush2.msra.mxu0 0.0
        %1118 = vmatprep.subr.mxu0 0.0
        %1119 = vmatpush2.msra.mxu0 0.0
        %1120 = vmatprep.subr.mxu0 0.0
        %1121 = vmatpush2.msra.mxu0 0.0
        %1122 = vmatprep.subr.mxu0 0.0
        %1123 = vmatpush2.msra.mxu0 0.0
        %1124 = vmatprep.subr.mxu0 0.0
        %1125 = vmatpush2.msra.mxu0 0.0
        %1126 = vmatprep.subr.mxu0 0.0
        %1127 = vmatpush2.msra.mxu0 0.0
        %1128 = vmatprep.subr.mxu0 0.0
        %1129 = vmatpush2.msra.mxu0 0.0
        %1130 = vmatprep.subr.mxu0 0.0
        %1131 = vmatpush2.msra.mxu0 0.0
        %1132 = vmatprep.subr.mxu0 0.0
        %1133 = vmatpush2.msra.mxu0 0.0
        %1134 = vmatprep.subr.mxu0 0.0
        %1135 = vmatpush2.msra.mxu0 0.0
        %1136 = vmatprep.subr.mxu0 0.0
        %1137 = vmatpush2.msra.mxu0 0.0
        %1138 = vmatprep.subr.mxu0 0.0
        %1139 = vmatpush2.msra.mxu0 0.0
        %1140 = vmatprep.subr.mxu0 0.0
        %1141 = vmatpush2.msra.mxu0 0.0
        %1142 = vmatprep.subr.mxu0 0.0
        %1143 = vmatpush2.msra.mxu0 0.0
        %1144 = vmatprep.mubr.f32.mxu0 0.0
        %1145 = vmatmul.mubr.f32.gmra.mxu0 %v840
        %v1146 = vpop.f32.mrf.mxu0
        %v1147 = vadd.f32 0.0, %v1146
        %v1148 = vpop.f32.mrf.mxu0
        %v1149 = vadd.f32 0.0, %v1148
        %1150 = vdwg.mxu0
        %v1151 = vld [vmem:[%s833] sm:$0xff]
        %vm1152 = vcmask 523264
        %v1154 = vsel %vm1152, %v1005, 0
        %v1157 = vsel %vm1152, %v1076, 0
        %1159 = vmatprep.subr.mxu0 0.0
        %1160 = vmatpush1.xpose.msra.mxu0 0.0
        %1161 = vmatprep.subr.mxu0 0.0
        %1162 = vmatpush1.xpose.msra.mxu0 0.0
        %1163 = vmatprep.subr.mxu0 0.0
        %1164 = vmatpush1.xpose.msra.mxu0 0.0
        %1165 = vmatprep.subr.mxu0 0.0
        %1166 = vmatpush1.xpose.msra.mxu0 0.0
        %1167 = vmatprep.subr.mxu0 0.0
        %1168 = vmatpush1.xpose.msra.mxu0 0.0
        %1169 = vmatprep.subr.mxu0 0.0
        %1170 = vmatpush1.xpose.msra.mxu0 0.0
        %1171 = vmatprep.subr.mxu0 0.0
        %1172 = vmatpush1.xpose.msra.mxu0 0.0
        %1173 = vmatprep.subr.mxu0 0.0
        %1174 = vmatpush1.xpose.msra.mxu0 0.0
        %1175 = vmatprep.subr.mxu0 0.0
        %1176 = vmatpush1.xpose.msra.mxu0 0.0
        %1177 = vmatprep.subr.mxu0 0.0
        %1178 = vmatpush1.xpose.msra.mxu0 0.0
        %1179 = vmatprep.subr.mxu0 0.0
        %1180 = vmatpush1.xpose.msra.mxu0 0.0
        %1181 = vmatprep.subr.mxu0 0.0
        %1182 = vmatpush1.xpose.msra.mxu0 0.0
        %1183 = vmatprep.subr.mxu0 0.0
        %1184 = vmatpush1.xpose.msra.mxu0 0.0
        %1185 = vmatprep.subr.mxu0 0.0
        %1186 = vmatpush1.xpose.msra.mxu0 0.0
        %1187 = vmatprep.subr.mxu0 0.0
        %1188 = vmatpush1.xpose.msra.mxu0 0.0
        %1189 = vmatprep.subr.mxu0 0.0
        %1190 = vmatpush1.xpose.msra.mxu0 %v1157
        %1191 = vmatprep.subr.mxu0 0.0
        %1192 = vmatpush2.xpose.msra.mxu0 0.0
        %1193 = vmatprep.subr.mxu0 0.0
        %1194 = vmatpush2.xpose.msra.mxu0 0.0
        %1195 = vmatprep.subr.mxu0 0.0
        %1196 = vmatpush2.xpose.msra.mxu0 0.0
        %1197 = vmatprep.subr.mxu0 0.0
        %1198 = vmatpush2.xpose.msra.mxu0 0.0
        %1199 = vmatprep.subr.mxu0 0.0
        %1200 = vmatpush2.xpose.msra.mxu0 0.0
        %1201 = vmatprep.subr.mxu0 0.0
        %1202 = vmatpush2.xpose.msra.mxu0 0.0
        %1203 = vmatprep.subr.mxu0 0.0
        %1204 = vmatpush2.xpose.msra.mxu0 0.0
        %1205 = vmatprep.subr.mxu0 0.0
        %1206 = vmatpush2.xpose.msra.mxu0 0.0
        %1207 = vmatprep.subr.mxu0 0.0
        %1208 = vmatpush2.xpose.msra.mxu0 0.0
        %1209 = vmatprep.subr.mxu0 0.0
        %1210 = vmatpush2.xpose.msra.mxu0 0.0
        %1211 = vmatprep.subr.mxu0 0.0
        %1212 = vmatpush2.xpose.msra.mxu0 0.0
        %1213 = vmatprep.subr.mxu0 0.0
        %1214 = vmatpush2.xpose.msra.mxu0 0.0
        %1215 = vmatprep.subr.mxu0 0.0
        %1216 = vmatpush2.xpose.msra.mxu0 0.0
        %1217 = vmatprep.subr.mxu0 0.0
        %1218 = vmatpush2.xpose.msra.mxu0 0.0
        %1219 = vmatprep.subr.mxu0 0.0
        %1220 = vmatpush2.xpose.msra.mxu0 0.0
        %1221 = vmatprep.subr.mxu0 0.0
        %1222 = vmatpush2.xpose.msra.mxu0 0.0
        %1223 = vmatprep.mubr.f32.mxu0 0.0
        %1224 = vmatmul.mubr.f32.gmra.mxu0 %v1154
        %v1225 = vpop.f32.mrf.mxu0
        %v1226 = vadd.f32 0.0, %v1225
        %v1227 = vpop.f32.mrf.mxu0
        %1228 = vdwg.mxu0
        %v1229 = vmul.f32 %v1226, 0.125
        %v1230 = vadd.f32 %v1229, %v1151
        %vm1231 = vcmask 64512
        %v1232 = vsel %vm1231, %v1230, -inf
        %1233 = vmax.xlane.f32.xlu0 %v1232
        %v1234 = vpop.xlane.xlu0 %1233
        %v1235 = vsub.f32 %v1230, %v1234
        %v1236 = vmul.f32 %v1235, 1.442695
        %v1237 = vpow.pop %v1236
        %v1238 = vsel %vm1231, %v1237, 0.0
        %1239 = vadd.xlane.f32.xlu0 %v1238
        %v1240 = vpop.xlane.xlu0 %1239
        %v1241 = vrcp.pop %v1240
        %v1243 = vsel %vm1231, %v1237, 0
        %1245 = vmatprep.subr.mxu0 0.0
        %1246 = vmatpush1.msra.mxu0 0.0
        %1247 = vmatprep.subr.mxu0 0.0
        %1248 = vmatpush1.msra.mxu0 0.0
        %1249 = vmatprep.subr.mxu0 0.0
        %1250 = vmatpush1.msra.mxu0 0.0
        %1251 = vmatprep.subr.mxu0 0.0
        %1252 = vmatpush1.msra.mxu0 0.0
        %1253 = vmatprep.subr.mxu0 0.0
        %1254 = vmatpush1.msra.mxu0 0.0
        %1255 = vmatprep.subr.mxu0 0.0
        %1256 = vmatpush1.msra.mxu0 0.0
        %1257 = vmatprep.subr.mxu0 0.0
        %1258 = vmatpush1.msra.mxu0 0.0
        %1259 = vmatprep.subr.mxu0 0.0
        %1260 = vmatpush1.msra.mxu0 0.0
        %1261 = vmatprep.subr.mxu0 0.0
        %1262 = vmatpush1.msra.mxu0 0.0
        %1263 = vmatprep.subr.mxu0 0.0
        %1264 = vmatpush1.msra.mxu0 0.0
        %1265 = vmatprep.subr.mxu0 0.0
        %1266 = vmatpush1.msra.mxu0 0.0
        %1267 = vmatprep.subr.mxu0 0.0
        %1268 = vmatpush1.msra.mxu0 0.0
        %1269 = vmatprep.subr.mxu0 0.0
        %1270 = vmatpush1.msra.mxu0 0.0
        %1271 = vmatprep.subr.mxu0 0.0
        %1272 = vmatpush1.msra.mxu0 0.0
        %1273 = vmatprep.subr.mxu0 0.0
        %1274 = vmatpush1.msra.mxu0 0.0
        %1275 = vmatprep.subr.mxu0 0.0
        %1276 = vmatpush1.msra.mxu0 %v1147
        %1277 = vmatprep.subr.mxu0 0.0
        %1278 = vmatpush2.msra.mxu0 0.0
        %1279 = vmatprep.subr.mxu0 0.0
        %1280 = vmatpush2.msra.mxu0 0.0
        %1281 = vmatprep.subr.mxu0 0.0
        %1282 = vmatpush2.msra.mxu0 0.0
        %1283 = vmatprep.subr.mxu0 0.0
        %1284 = vmatpush2.msra.mxu0 0.0
        %1285 = vmatprep.subr.mxu0 0.0
        %1286 = vmatpush2.msra.mxu0 0.0
        %1287 = vmatprep.subr.mxu0 0.0
        %1288 = vmatpush2.msra.mxu0 0.0
        %1289 = vmatprep.subr.mxu0 0.0
        %1290 = vmatpush2.msra.mxu0 0.0
        %1291 = vmatprep.subr.mxu0 0.0
        %1292 = vmatpush2.msra.mxu0 0.0
        %1293 = vmatprep.subr.mxu0 0.0
        %1294 = vmatpush2.msra.mxu0 0.0
        %1295 = vmatprep.subr.mxu0 0.0
        %1296 = vmatpush2.msra.mxu0 0.0
        %1297 = vmatprep.subr.mxu0 0.0
        %1298 = vmatpush2.msra.mxu0 0.0
        %1299 = vmatprep.subr.mxu0 0.0
        %1300 = vmatpush2.msra.mxu0 0.0
        %1301 = vmatprep.subr.mxu0 0.0
        %1302 = vmatpush2.msra.mxu0 0.0
        %1303 = vmatprep.subr.mxu0 0.0
        %1304 = vmatpush2.msra.mxu0 0.0
        %1305 = vmatprep.subr.mxu0 0.0
        %1306 = vmatpush2.msra.mxu0 0.0
        %1307 = vmatprep.subr.mxu0 0.0
        %1308 = vmatpush2.msra.mxu0 0.0
        %1309 = vmatprep.mubr.f32.mxu0 0.0
        %1310 = vmatmul.mubr.f32.gmra.mxu0 %v1243
        %v1311 = vpop.f32.mrf.mxu0
        %v1312 = vadd.f32 0.0, %v1311
        %v1313 = vpop.f32.mrf.mxu0
        %1314 = vdwg.mxu0
        %v1315 = vmul.f32 %v1312, %v1241
        %1316 = vrot.lane.b32.xlu0 %v1005, 64
        %v1317 = vpop.permute.xlu0 %1316
        %1318 = vrot.lane.b32.xlu0 %v1076, 64
        %v1319 = vpop.permute.xlu0 %1318
        %v1320 = vsel %vm1152, %v1317, 0
        %v1322 = vsel %vm1152, %v1319, 0
        %1324 = vmatprep.subr.mxu0 0.0
        %1325 = vmatpush1.xpose.msra.mxu0 0.0
        %1326 = vmatprep.subr.mxu0 0.0
        %1327 = vmatpush1.xpose.msra.mxu0 0.0
        %1328 = vmatprep.subr.mxu0 0.0
        %1329 = vmatpush1.xpose.msra.mxu0 0.0
        %1330 = vmatprep.subr.mxu0 0.0
        %1331 = vmatpush1.xpose.msra.mxu0 0.0
        %1332 = vmatprep.subr.mxu0 0.0
        %1333 = vmatpush1.xpose.msra.mxu0 0.0
        %1334 = vmatprep.subr.mxu0 0.0
        %1335 = vmatpush1.xpose.msra.mxu0 0.0
        %1336 = vmatprep.subr.mxu0 0.0
        %1337 = vmatpush1.xpose.msra.mxu0 0.0
        %1338 = vmatprep.subr.mxu0 0.0
        %1339 = vmatpush1.xpose.msra.mxu0 0.0
        %1340 = vmatprep.subr.mxu0 0.0
        %1341 = vmatpush1.xpose.msra.mxu0 0.0
        %1342 = vmatprep.subr.mxu0 0.0
        %1343 = vmatpush1.xpose.msra.mxu0 0.0
        %1344 = vmatprep.subr.mxu0 0.0
        %1345 = vmatpush1.xpose.msra.mxu0 0.0
        %1346 = vmatprep.subr.mxu0 0.0
        %1347 = vmatpush1.xpose.msra.mxu0 0.0
        %1348 = vmatprep.subr.mxu0 0.0
        %1349 = vmatpush1.xpose.msra.mxu0 0.0
        %1350 = vmatprep.subr.mxu0 0.0
        %1351 = vmatpush1.xpose.msra.mxu0 0.0
        %1352 = vmatprep.subr.mxu0 0.0
        %1353 = vmatpush1.xpose.msra.mxu0 0.0
        %1354 = vmatprep.subr.mxu0 0.0
        %1355 = vmatpush1.xpose.msra.mxu0 %v1322
        %1356 = vmatprep.subr.mxu0 0.0
        %1357 = vmatpush2.xpose.msra.mxu0 0.0
        %1358 = vmatprep.subr.mxu0 0.0
        %1359 = vmatpush2.xpose.msra.mxu0 0.0
        %1360 = vmatprep.subr.mxu0 0.0
        %1361 = vmatpush2.xpose.msra.mxu0 0.0
        %1362 = vmatprep.subr.mxu0 0.0
        %1363 = vmatpush2.xpose.msra.mxu0 0.0
        %1364 = vmatprep.subr.mxu0 0.0
        %1365 = vmatpush2.xpose.msra.mxu0 0.0
        %1366 = vmatprep.subr.mxu0 0.0
        %1367 = vmatpush2.xpose.msra.mxu0 0.0
        %1368 = vmatprep.subr.mxu0 0.0
        %1369 = vmatpush2.xpose.msra.mxu0 0.0
        %1370 = vmatprep.subr.mxu0 0.0
        %1371 = vmatpush2.xpose.msra.mxu0 0.0
        %1372 = vmatprep.subr.mxu0 0.0
        %1373 = vmatpush2.xpose.msra.mxu0 0.0
        %1374 = vmatprep.subr.mxu0 0.0
        %1375 = vmatpush2.xpose.msra.mxu0 0.0
        %1376 = vmatprep.subr.mxu0 0.0
        %1377 = vmatpush2.xpose.msra.mxu0 0.0
        %1378 = vmatprep.subr.mxu0 0.0
        %1379 = vmatpush2.xpose.msra.mxu0 0.0
        %1380 = vmatprep.subr.mxu0 0.0
        %1381 = vmatpush2.xpose.msra.mxu0 0.0
        %1382 = vmatprep.subr.mxu0 0.0
        %1383 = vmatpush2.xpose.msra.mxu0 0.0
        %1384 = vmatprep.subr.mxu0 0.0
        %1385 = vmatpush2.xpose.msra.mxu0 0.0
        %1386 = vmatprep.subr.mxu0 0.0
        %1387 = vmatpush2.xpose.msra.mxu0 0.0
        %1388 = vmatprep.mubr.f32.mxu0 0.0
        %1389 = vmatmul.mubr.f32.gmra.mxu0 %v1320
        %v1390 = vpop.f32.mrf.mxu0
        %v1391 = vadd.f32 0.0, %v1390
        %v1392 = vpop.f32.mrf.mxu0
        %1393 = vdwg.mxu0
        %v1394 = vmul.f32 %v1391, 0.125
        %v1395 = vadd.f32 %v1394, %v1151
        %v1396 = vsel %vm1231, %v1395, -inf
        %1397 = vmax.xlane.f32.xlu0 %v1396
        %v1398 = vpop.xlane.xlu0 %1397
        %v1399 = vsub.f32 %v1395, %v1398
        %v1400 = vmul.f32 %v1399, 1.442695
        %v1401 = vpow.pop %v1400
        %v1402 = vsel %vm1231, %v1401, 0.0
        %1403 = vadd.xlane.f32.xlu0 %v1402
        %v1404 = vpop.xlane.xlu0 %1403
        %v1405 = vrcp.pop %v1404
        %1407 = vrot.lane.b32.xlu0 %v1147, 64
        %v1408 = vpop.permute.xlu0 %1407
        %v1411 = vsel %vm1231, %v1401, 0
        %1413 = vmatprep.subr.mxu0 0.0
        %1414 = vmatpush1.msra.mxu0 0.0
        %1415 = vmatprep.subr.mxu0 0.0
        %1416 = vmatpush1.msra.mxu0 0.0
        %1417 = vmatprep.subr.mxu0 0.0
        %1418 = vmatpush1.msra.mxu0 0.0
        %1419 = vmatprep.subr.mxu0 0.0
        %1420 = vmatpush1.msra.mxu0 0.0
        %1421 = vmatprep.subr.mxu0 0.0
        %1422 = vmatpush1.msra.mxu0 0.0
        %1423 = vmatprep.subr.mxu0 0.0
        %1424 = vmatpush1.msra.mxu0 0.0
        %1425 = vmatprep.subr.mxu0 0.0
        %1426 = vmatpush1.msra.mxu0 0.0
        %1427 = vmatprep.subr.mxu0 0.0
        %1428 = vmatpush1.msra.mxu0 0.0
        %1429 = vmatprep.subr.mxu0 0.0
        %1430 = vmatpush1.msra.mxu0 0.0
        %1431 = vmatprep.subr.mxu0 0.0
        %1432 = vmatpush1.msra.mxu0 0.0
        %1433 = vmatprep.subr.mxu0 0.0
        %1434 = vmatpush1.msra.mxu0 0.0
        %1435 = vmatprep.subr.mxu0 0.0
        %1436 = vmatpush1.msra.mxu0 0.0
        %1437 = vmatprep.subr.mxu0 0.0
        %1438 = vmatpush1.msra.mxu0 0.0
        %1439 = vmatprep.subr.mxu0 0.0
        %1440 = vmatpush1.msra.mxu0 0.0
        %1441 = vmatprep.subr.mxu0 0.0
        %1442 = vmatpush1.msra.mxu0 0.0
        %1443 = vmatprep.subr.mxu0 0.0
        %1444 = vmatpush1.msra.mxu0 %v1408
        %1445 = vmatprep.subr.mxu0 0.0
        %1446 = vmatpush2.msra.mxu0 0.0
        %1447 = vmatprep.subr.mxu0 0.0
        %1448 = vmatpush2.msra.mxu0 0.0
        %1449 = vmatprep.subr.mxu0 0.0
        %1450 = vmatpush2.msra.mxu0 0.0
        %1451 = vmatprep.subr.mxu0 0.0
        %1452 = vmatpush2.msra.mxu0 0.0
        %1453 = vmatprep.subr.mxu0 0.0
        %1454 = vmatpush2.msra.mxu0 0.0
        %1455 = vmatprep.subr.mxu0 0.0
        %1456 = vmatpush2.msra.mxu0 0.0
        %1457 = vmatprep.subr.mxu0 0.0
        %1458 = vmatpush2.msra.mxu0 0.0
        %1459 = vmatprep.subr.mxu0 0.0
        %1460 = vmatpush2.msra.mxu0 0.0
        %1461 = vmatprep.subr.mxu0 0.0
        %1462 = vmatpush2.msra.mxu0 0.0
        %1463 = vmatprep.subr.mxu0 0.0
        %1464 = vmatpush2.msra.mxu0 0.0
        %1465 = vmatprep.subr.mxu0 0.0
        %1466 = vmatpush2.msra.mxu0 0.0
        %1467 = vmatprep.subr.mxu0 0.0
        %1468 = vmatpush2.msra.mxu0 0.0
        %1469 = vmatprep.subr.mxu0 0.0
        %1470 = vmatpush2.msra.mxu0 0.0
        %1471 = vmatprep.subr.mxu0 0.0
        %1472 = vmatpush2.msra.mxu0 0.0
        %1473 = vmatprep.subr.mxu0 0.0
        %1474 = vmatpush2.msra.mxu0 0.0
        %1475 = vmatprep.subr.mxu0 0.0
        %1476 = vmatpush2.msra.mxu0 0.0
        %1477 = vmatprep.mubr.f32.mxu0 0.0
        %1478 = vmatmul.mubr.f32.gmra.mxu0 %v1411
        %v1479 = vpop.f32.mrf.mxu0
        %v1480 = vadd.f32 0.0, %v1479
        %v1481 = vpop.f32.mrf.mxu0
        %1482 = vdwg.mxu0
        %v1483 = vmul.f32 %v1480, %v1405
        %v1485 = vsel %vm1152, %v1007, 0
        %v1488 = vsel %vm1152, %v1078, 0
        %1490 = vmatprep.subr.mxu0 0.0
        %1491 = vmatpush1.xpose.msra.mxu0 0.0
        %1492 = vmatprep.subr.mxu0 0.0
        %1493 = vmatpush1.xpose.msra.mxu0 0.0
        %1494 = vmatprep.subr.mxu0 0.0
        %1495 = vmatpush1.xpose.msra.mxu0 0.0
        %1496 = vmatprep.subr.mxu0 0.0
        %1497 = vmatpush1.xpose.msra.mxu0 0.0
        %1498 = vmatprep.subr.mxu0 0.0
        %1499 = vmatpush1.xpose.msra.mxu0 0.0
        %1500 = vmatprep.subr.mxu0 0.0
        %1501 = vmatpush1.xpose.msra.mxu0 0.0
        %1502 = vmatprep.subr.mxu0 0.0
        %1503 = vmatpush1.xpose.msra.mxu0 0.0
        %1504 = vmatprep.subr.mxu0 0.0
        %1505 = vmatpush1.xpose.msra.mxu0 0.0
        %1506 = vmatprep.subr.mxu0 0.0
        %1507 = vmatpush1.xpose.msra.mxu0 0.0
        %1508 = vmatprep.subr.mxu0 0.0
        %1509 = vmatpush1.xpose.msra.mxu0 0.0
        %1510 = vmatprep.subr.mxu0 0.0
        %1511 = vmatpush1.xpose.msra.mxu0 0.0
        %1512 = vmatprep.subr.mxu0 0.0
        %1513 = vmatpush1.xpose.msra.mxu0 0.0
        %1514 = vmatprep.subr.mxu0 0.0
        %1515 = vmatpush1.xpose.msra.mxu0 0.0
        %1516 = vmatprep.subr.mxu0 0.0
        %1517 = vmatpush1.xpose.msra.mxu0 0.0
        %1518 = vmatprep.subr.mxu0 0.0
        %1519 = vmatpush1.xpose.msra.mxu0 0.0
        %1520 = vmatprep.subr.mxu0 0.0
        %1521 = vmatpush1.xpose.msra.mxu0 %v1488
        %1522 = vmatprep.subr.mxu0 0.0
        %1523 = vmatpush2.xpose.msra.mxu0 0.0
        %1524 = vmatprep.subr.mxu0 0.0
        %1525 = vmatpush2.xpose.msra.mxu0 0.0
        %1526 = vmatprep.subr.mxu0 0.0
        %1527 = vmatpush2.xpose.msra.mxu0 0.0
        %1528 = vmatprep.subr.mxu0 0.0
        %1529 = vmatpush2.xpose.msra.mxu0 0.0
        %1530 = vmatprep.subr.mxu0 0.0
        %1531 = vmatpush2.xpose.msra.mxu0 0.0
        %1532 = vmatprep.subr.mxu0 0.0
        %1533 = vmatpush2.xpose.msra.mxu0 0.0
        %1534 = vmatprep.subr.mxu0 0.0
        %1535 = vmatpush2.xpose.msra.mxu0 0.0
        %1536 = vmatprep.subr.mxu0 0.0
        %1537 = vmatpush2.xpose.msra.mxu0 0.0
        %1538 = vmatprep.subr.mxu0 0.0
        %1539 = vmatpush2.xpose.msra.mxu0 0.0
        %1540 = vmatprep.subr.mxu0 0.0
        %1541 = vmatpush2.xpose.msra.mxu0 0.0
        %1542 = vmatprep.subr.mxu0 0.0
        %1543 = vmatpush2.xpose.msra.mxu0 0.0
        %1544 = vmatprep.subr.mxu0 0.0
        %1545 = vmatpush2.xpose.msra.mxu0 0.0
        %1546 = vmatprep.subr.mxu0 0.0
        %1547 = vmatpush2.xpose.msra.mxu0 0.0
        %1548 = vmatprep.subr.mxu0 0.0
        %1549 = vmatpush2.xpose.msra.mxu0 0.0
        %1550 = vmatprep.subr.mxu0 0.0
        %1551 = vmatpush2.xpose.msra.mxu0 0.0
        %1552 = vmatprep.subr.mxu0 0.0
        %1553 = vmatpush2.xpose.msra.mxu0 0.0
        %1554 = vmatprep.mubr.f32.mxu0 0.0
        %1555 = vmatmul.mubr.f32.gmra.mxu0 %v1485
        %v1556 = vpop.f32.mrf.mxu0
        %v1557 = vadd.f32 0.0, %v1556
        %v1558 = vpop.f32.mrf.mxu0
        %1559 = vdwg.mxu0
        %v1560 = vmul.f32 %v1557, 0.125
        %v1561 = vadd.f32 %v1560, %v1151
        %v1562 = vsel %vm1231, %v1561, -inf
        %1563 = vmax.xlane.f32.xlu0 %v1562
        %v1564 = vpop.xlane.xlu0 %1563
        %v1565 = vsub.f32 %v1561, %v1564
        %v1566 = vmul.f32 %v1565, 1.442695
        %v1567 = vpow.pop %v1566
        %v1568 = vsel %vm1231, %v1567, 0.0
        %1569 = vadd.xlane.f32.xlu0 %v1568
        %v1570 = vpop.xlane.xlu0 %1569
        %v1571 = vrcp.pop %v1570
        %v1573 = vsel %vm1231, %v1567, 0
        %1575 = vmatprep.subr.mxu0 0.0
        %1576 = vmatpush1.msra.mxu0 0.0
        %1577 = vmatprep.subr.mxu0 0.0
        %1578 = vmatpush1.msra.mxu0 0.0
        %1579 = vmatprep.subr.mxu0 0.0
        %1580 = vmatpush1.msra.mxu0 0.0
        %1581 = vmatprep.subr.mxu0 0.0
        %1582 = vmatpush1.msra.mxu0 0.0
        %1583 = vmatprep.subr.mxu0 0.0
        %1584 = vmatpush1.msra.mxu0 0.0
        %1585 = vmatprep.subr.mxu0 0.0
        %1586 = vmatpush1.msra.mxu0 0.0
        %1587 = vmatprep.subr.mxu0 0.0
        %1588 = vmatpush1.msra.mxu0 0.0
        %1589 = vmatprep.subr.mxu0 0.0
        %1590 = vmatpush1.msra.mxu0 0.0
        %1591 = vmatprep.subr.mxu0 0.0
        %1592 = vmatpush1.msra.mxu0 0.0
        %1593 = vmatprep.subr.mxu0 0.0
        %1594 = vmatpush1.msra.mxu0 0.0
        %1595 = vmatprep.subr.mxu0 0.0
        %1596 = vmatpush1.msra.mxu0 0.0
        %1597 = vmatprep.subr.mxu0 0.0
        %1598 = vmatpush1.msra.mxu0 0.0
        %1599 = vmatprep.subr.mxu0 0.0
        %1600 = vmatpush1.msra.mxu0 0.0
        %1601 = vmatprep.subr.mxu0 0.0
        %1602 = vmatpush1.msra.mxu0 0.0
        %1603 = vmatprep.subr.mxu0 0.0
        %1604 = vmatpush1.msra.mxu0 0.0
        %1605 = vmatprep.subr.mxu0 0.0
        %1606 = vmatpush1.msra.mxu0 %v1149
        %1607 = vmatprep.subr.mxu0 0.0
        %1608 = vmatpush2.msra.mxu0 0.0
        %1609 = vmatprep.subr.mxu0 0.0
        %1610 = vmatpush2.msra.mxu0 0.0
        %1611 = vmatprep.subr.mxu0 0.0
        %1612 = vmatpush2.msra.mxu0 0.0
        %1613 = vmatprep.subr.mxu0 0.0
        %1614 = vmatpush2.msra.mxu0 0.0
        %1615 = vmatprep.subr.mxu0 0.0
        %1616 = vmatpush2.msra.mxu0 0.0
        %1617 = vmatprep.subr.mxu0 0.0
        %1618 = vmatpush2.msra.mxu0 0.0
        %1619 = vmatprep.subr.mxu0 0.0
        %1620 = vmatpush2.msra.mxu0 0.0
        %1621 = vmatprep.subr.mxu0 0.0
        %1622 = vmatpush2.msra.mxu0 0.0
        %1623 = vmatprep.subr.mxu0 0.0
        %1624 = vmatpush2.msra.mxu0 0.0
        %1625 = vmatprep.subr.mxu0 0.0
        %1626 = vmatpush2.msra.mxu0 0.0
        %1627 = vmatprep.subr.mxu0 0.0
        %1628 = vmatpush2.msra.mxu0 0.0
        %1629 = vmatprep.subr.mxu0 0.0
        %1630 = vmatpush2.msra.mxu0 0.0
        %1631 = vmatprep.subr.mxu0 0.0
        %1632 = vmatpush2.msra.mxu0 0.0
        %1633 = vmatprep.subr.mxu0 0.0
        %1634 = vmatpush2.msra.mxu0 0.0
        %1635 = vmatprep.subr.mxu0 0.0
        %1636 = vmatpush2.msra.mxu0 0.0
        %1637 = vmatprep.subr.mxu0 0.0
        %1638 = vmatpush2.msra.mxu0 0.0
        %1639 = vmatprep.mubr.f32.mxu0 0.0
        %1640 = vmatmul.mubr.f32.gmra.mxu0 %v1573
        %v1641 = vpop.f32.mrf.mxu0
        %v1642 = vadd.f32 0.0, %v1641
        %v1643 = vpop.f32.mrf.mxu0
        %1644 = vdwg.mxu0
        %v1645 = vmul.f32 %v1642, %v1571
        %1646 = vrot.lane.b32.xlu0 %v1007, 64
        %v1647 = vpop.permute.xlu0 %1646
        %1648 = vrot.lane.b32.xlu0 %v1078, 64
        %v1649 = vpop.permute.xlu0 %1648
        %v1650 = vsel %vm1152, %v1647, 0
        %v1652 = vsel %vm1152, %v1649, 0
        %1654 = vmatprep.subr.mxu0 0.0
        %1655 = vmatpush1.xpose.msra.mxu0 0.0
        %1656 = vmatprep.subr.mxu0 0.0
        %1657 = vmatpush1.xpose.msra.mxu0 0.0
        %1658 = vmatprep.subr.mxu0 0.0
        %1659 = vmatpush1.xpose.msra.mxu0 0.0
        %1660 = vmatprep.subr.mxu0 0.0
        %1661 = vmatpush1.xpose.msra.mxu0 0.0
        %1662 = vmatprep.subr.mxu0 0.0
        %1663 = vmatpush1.xpose.msra.mxu0 0.0
        %1664 = vmatprep.subr.mxu0 0.0
        %1665 = vmatpush1.xpose.msra.mxu0 0.0
        %1666 = vmatprep.subr.mxu0 0.0
        %1667 = vmatpush1.xpose.msra.mxu0 0.0
        %1668 = vmatprep.subr.mxu0 0.0
        %1669 = vmatpush1.xpose.msra.mxu0 0.0
        %1670 = vmatprep.subr.mxu0 0.0
        %1671 = vmatpush1.xpose.msra.mxu0 0.0
        %1672 = vmatprep.subr.mxu0 0.0
        %1673 = vmatpush1.xpose.msra.mxu0 0.0
        %1674 = vmatprep.subr.mxu0 0.0
        %1675 = vmatpush1.xpose.msra.mxu0 0.0
        %1676 = vmatprep.subr.mxu0 0.0
        %1677 = vmatpush1.xpose.msra.mxu0 0.0
        %1678 = vmatprep.subr.mxu0 0.0
        %1679 = vmatpush1.xpose.msra.mxu0 0.0
        %1680 = vmatprep.subr.mxu0 0.0
        %1681 = vmatpush1.xpose.msra.mxu0 0.0
        %1682 = vmatprep.subr.mxu0 0.0
        %1683 = vmatpush1.xpose.msra.mxu0 0.0
        %1684 = vmatprep.subr.mxu0 0.0
        %1685 = vmatpush1.xpose.msra.mxu0 %v1652
        %1686 = vmatprep.subr.mxu0 0.0
        %1687 = vmatpush2.xpose.msra.mxu0 0.0
        %1688 = vmatprep.subr.mxu0 0.0
        %1689 = vmatpush2.xpose.msra.mxu0 0.0
        %1690 = vmatprep.subr.mxu0 0.0
        %1691 = vmatpush2.xpose.msra.mxu0 0.0
        %1692 = vmatprep.subr.mxu0 0.0
        %1693 = vmatpush2.xpose.msra.mxu0 0.0
        %1694 = vmatprep.subr.mxu0 0.0
        %1695 = vmatpush2.xpose.msra.mxu0 0.0
        %1696 = vmatprep.subr.mxu0 0.0
        %1697 = vmatpush2.xpose.msra.mxu0 0.0
        %1698 = vmatprep.subr.mxu0 0.0
        %1699 = vmatpush2.xpose.msra.mxu0 0.0
        %1700 = vmatprep.subr.mxu0 0.0
        %1701 = vmatpush2.xpose.msra.mxu0 0.0
        %1702 = vmatprep.subr.mxu0 0.0
        %1703 = vmatpush2.xpose.msra.mxu0 0.0
        %1704 = vmatprep.subr.mxu0 0.0
        %1705 = vmatpush2.xpose.msra.mxu0 0.0
        %1706 = vmatprep.subr.mxu0 0.0
        %1707 = vmatpush2.xpose.msra.mxu0 0.0
        %1708 = vmatprep.subr.mxu0 0.0
        %1709 = vmatpush2.xpose.msra.mxu0 0.0
        %1710 = vmatprep.subr.mxu0 0.0
        %1711 = vmatpush2.xpose.msra.mxu0 0.0
        %1712 = vmatprep.subr.mxu0 0.0
        %1713 = vmatpush2.xpose.msra.mxu0 0.0
        %1714 = vmatprep.subr.mxu0 0.0
        %1715 = vmatpush2.xpose.msra.mxu0 0.0
        %1716 = vmatprep.subr.mxu0 0.0
        %1717 = vmatpush2.xpose.msra.mxu0 0.0
        %1718 = vmatprep.mubr.f32.mxu0 0.0
        %1719 = vmatmul.mubr.f32.gmra.mxu0 %v1650
        %v1720 = vpop.f32.mrf.mxu0
        %v1721 = vadd.f32 0.0, %v1720
        %v1722 = vpop.f32.mrf.mxu0
        %1723 = vdwg.mxu0
        %v1724 = vmul.f32 %v1721, 0.125
        %v1725 = vadd.f32 %v1724, %v1151
        %v1726 = vsel %vm1231, %v1725, -inf
        %1727 = vmax.xlane.f32.xlu0 %v1726
        %v1728 = vpop.xlane.xlu0 %1727
        %v1729 = vsub.f32 %v1725, %v1728
        %v1730 = vmul.f32 %v1729, 1.442695
        %v1731 = vpow.pop %v1730
        %v1732 = vsel %vm1231, %v1731, 0.0
        %1733 = vadd.xlane.f32.xlu0 %v1732
        %v1734 = vpop.xlane.xlu0 %1733
        %v1735 = vrcp.pop %v1734
        %1737 = vrot.lane.b32.xlu0 %v1149, 64
        %v1738 = vpop.permute.xlu0 %1737
        %v1741 = vsel %vm1231, %v1731, 0
        %1743 = vmatprep.subr.mxu0 0.0
        %1744 = vmatpush1.msra.mxu0 0.0
        %1745 = vmatprep.subr.mxu0 0.0
        %1746 = vmatpush1.msra.mxu0 0.0
        %1747 = vmatprep.subr.mxu0 0.0
        %1748 = vmatpush1.msra.mxu0 0.0
        %1749 = vmatprep.subr.mxu0 0.0
        %1750 = vmatpush1.msra.mxu0 0.0
        %1751 = vmatprep.subr.mxu0 0.0
        %1752 = vmatpush1.msra.mxu0 0.0
        %1753 = vmatprep.subr.mxu0 0.0
        %1754 = vmatpush1.msra.mxu0 0.0
        %1755 = vmatprep.subr.mxu0 0.0
        %1756 = vmatpush1.msra.mxu0 0.0
        %1757 = vmatprep.subr.mxu0 0.0
        %1758 = vmatpush1.msra.mxu0 0.0
        %1759 = vmatprep.subr.mxu0 0.0
        %1760 = vmatpush1.msra.mxu0 0.0
        %1761 = vmatprep.subr.mxu0 0.0
        %1762 = vmatpush1.msra.mxu0 0.0
        %1763 = vmatprep.subr.mxu0 0.0
        %1764 = vmatpush1.msra.mxu0 0.0
        %1765 = vmatprep.subr.mxu0 0.0
        %1766 = vmatpush1.msra.mxu0 0.0
        %1767 = vmatprep.subr.mxu0 0.0
        %1768 = vmatpush1.msra.mxu0 0.0
        %1769 = vmatprep.subr.mxu0 0.0
        %1770 = vmatpush1.msra.mxu0 0.0
        %1771 = vmatprep.subr.mxu0 0.0
        %1772 = vmatpush1.msra.mxu0 0.0
        %1773 = vmatprep.subr.mxu0 0.0
        %1774 = vmatpush1.msra.mxu0 %v1738
        %1775 = vmatprep.subr.mxu0 0.0
        %1776 = vmatpush2.msra.mxu0 0.0
        %1777 = vmatprep.subr.mxu0 0.0
        %1778 = vmatpush2.msra.mxu0 0.0
        %1779 = vmatprep.subr.mxu0 0.0
        %1780 = vmatpush2.msra.mxu0 0.0
        %1781 = vmatprep.subr.mxu0 0.0
        %1782 = vmatpush2.msra.mxu0 0.0
        %1783 = vmatprep.subr.mxu0 0.0
        %1784 = vmatpush2.msra.mxu0 0.0
        %1785 = vmatprep.subr.mxu0 0.0
        %1786 = vmatpush2.msra.mxu0 0.0
        %1787 = vmatprep.subr.mxu0 0.0
        %1788 = vmatpush2.msra.mxu0 0.0
        %1789 = vmatprep.subr.mxu0 0.0
        %1790 = vmatpush2.msra.mxu0 0.0
        %1791 = vmatprep.subr.mxu0 0.0
        %1792 = vmatpush2.msra.mxu0 0.0
        %1793 = vmatprep.subr.mxu0 0.0
        %1794 = vmatpush2.msra.mxu0 0.0
        %1795 = vmatprep.subr.mxu0 0.0
        %1796 = vmatpush2.msra.mxu0 0.0
        %1797 = vmatprep.subr.mxu0 0.0
        %1798 = vmatpush2.msra.mxu0 0.0
        %1799 = vmatprep.subr.mxu0 0.0
        %1800 = vmatpush2.msra.mxu0 0.0
        %1801 = vmatprep.subr.mxu0 0.0
        %1802 = vmatpush2.msra.mxu0 0.0
        %1803 = vmatprep.subr.mxu0 0.0
        %1804 = vmatpush2.msra.mxu0 0.0
        %1805 = vmatprep.subr.mxu0 0.0
        %1806 = vmatpush2.msra.mxu0 0.0
        %1807 = vmatprep.mubr.f32.mxu0 0.0
        %1808 = vmatmul.mubr.f32.gmra.mxu0 %v1741
        %v1809 = vpop.f32.mrf.mxu0
        %v1810 = vadd.f32 0.0, %v1809
        %v1811 = vpop.f32.mrf.mxu0
        %1812 = vdwg.mxu0
        %v1813 = vmul.f32 %v1810, %v1735
        %1815 = vrot.lane.b32.xlu0 %v1483, 64
        %v1816 = vpop.permute.xlu0 %1815
        %1819 = vrot.lane.b32.xlu0 %v1813, 64
        %v1820 = vpop.permute.xlu0 %1819
        %v1822 = vsel %vm1152, %v1315, %v1816
        %v1823 = vsel %vm1152, %v1645, %v1820
        %v1824 = vld [vmem:[%s682] sm:$0xff]
        %v1825 = vld [vmem:[%s682 + $0x8] sm:$0xff]
        %v1826 = vld [vmem:[%s682 + $0x10] sm:$0xff]
        %v1827 = vld [vmem:[%s682 + $0x18] sm:$0xff]
        %v1828 = vld [vmem:[%s682 + $0x20] sm:$0xff]
        %v1829 = vld [vmem:[%s682 + $0x28] sm:$0xff]
        %v1830 = vld [vmem:[%s682 + $0x30] sm:$0xff]
        %v1831 = vld [vmem:[%s682 + $0x38] sm:$0xff]
        %v1832 = vld [vmem:[%s682 + $0x40] sm:$0xff]
        %v1833 = vld [vmem:[%s682 + $0x48] sm:$0xff]
        %v1834 = vld [vmem:[%s682 + $0x50] sm:$0xff]
        %v1835 = vld [vmem:[%s682 + $0x58] sm:$0xff]
        %v1836 = vld [vmem:[%s682 + $0x60] sm:$0xff]
        %v1837 = vld [vmem:[%s682 + $0x68] sm:$0xff]
        %v1838 = vld [vmem:[%s682 + $0x70] sm:$0xff]
        %v1839 = vld [vmem:[%s682 + $0x78] sm:$0xff]
        %v1840 = vld [vmem:[%s682 + $0x80] sm:$0xff]
        %v1841 = vld [vmem:[%s682 + $0x88] sm:$0xff]
        %v1842 = vld [vmem:[%s682 + $0x90] sm:$0xff]
        %v1843 = vld [vmem:[%s682 + $0x98] sm:$0xff]
        %v1844 = vld [vmem:[%s682 + $0xa0] sm:$0xff]
        %v1845 = vld [vmem:[%s682 + $0xa8] sm:$0xff]
        %v1846 = vld [vmem:[%s682 + $0xb0] sm:$0xff]
        %v1847 = vld [vmem:[%s682 + $0xb8] sm:$0xff]
        %v1848 = vld [vmem:[%s682 + $0xc0] sm:$0xff]
        %v1849 = vld [vmem:[%s682 + $0xc8] sm:$0xff]
        %v1850 = vld [vmem:[%s682 + $0xd0] sm:$0xff]
        %v1851 = vld [vmem:[%s682 + $0xd8] sm:$0xff]
        %v1852 = vld [vmem:[%s682 + $0xe0] sm:$0xff]
        %v1853 = vld [vmem:[%s682 + $0xe8] sm:$0xff]
        %v1854 = vld [vmem:[%s682 + $0xf0] sm:$0xff]
        %v1855 = vld [vmem:[%s682 + $0xf8] sm:$0xff]
        %1856 = vmatprep.subr.mxu0 0.0
        %1857 = vmatpush1.msra.mxu0 %v1839
        %1858 = vmatprep.subr.mxu0 0.0
        %1859 = vmatpush1.msra.mxu0 %v1838
        %1860 = vmatprep.subr.mxu0 0.0
        %1861 = vmatpush1.msra.mxu0 %v1837
        %1862 = vmatprep.subr.mxu0 0.0
        %1863 = vmatpush1.msra.mxu0 %v1836
        %1864 = vmatprep.subr.mxu0 0.0
        %1865 = vmatpush1.msra.mxu0 %v1835
        %1866 = vmatprep.subr.mxu0 0.0
        %1867 = vmatpush1.msra.mxu0 %v1834
        %1868 = vmatprep.subr.mxu0 0.0
        %1869 = vmatpush1.msra.mxu0 %v1833
        %1870 = vmatprep.subr.mxu0 0.0
        %1871 = vmatpush1.msra.mxu0 %v1832
        %1872 = vmatprep.subr.mxu0 0.0
        %1873 = vmatpush1.msra.mxu0 %v1831
        %1874 = vmatprep.subr.mxu0 0.0
        %1875 = vmatpush1.msra.mxu0 %v1830
        %1876 = vmatprep.subr.mxu0 0.0
        %1877 = vmatpush1.msra.mxu0 %v1829
        %1878 = vmatprep.subr.mxu0 0.0
        %1879 = vmatpush1.msra.mxu0 %v1828
        %1880 = vmatprep.subr.mxu0 0.0
        %1881 = vmatpush1.msra.mxu0 %v1827
        %1882 = vmatprep.subr.mxu0 0.0
        %1883 = vmatpush1.msra.mxu0 %v1826
        %1884 = vmatprep.subr.mxu0 0.0
        %1885 = vmatpush1.msra.mxu0 %v1825
        %1886 = vmatprep.subr.mxu0 0.0
        %1887 = vmatpush1.msra.mxu0 %v1824
        %1888 = vmatprep.subr.mxu0 0.0
        %1889 = vmatpush2.msra.mxu0 %v1855
        %1890 = vmatprep.subr.mxu0 0.0
        %1891 = vmatpush2.msra.mxu0 %v1854
        %1892 = vmatprep.subr.mxu0 0.0
        %1893 = vmatpush2.msra.mxu0 %v1853
        %1894 = vmatprep.subr.mxu0 0.0
        %1895 = vmatpush2.msra.mxu0 %v1852
        %1896 = vmatprep.subr.mxu0 0.0
        %1897 = vmatpush2.msra.mxu0 %v1851
        %1898 = vmatprep.subr.mxu0 0.0
        %1899 = vmatpush2.msra.mxu0 %v1850
        %1900 = vmatprep.subr.mxu0 0.0
        %1901 = vmatpush2.msra.mxu0 %v1849
        %1902 = vmatprep.subr.mxu0 0.0
        %1903 = vmatpush2.msra.mxu0 %v1848
        %1904 = vmatprep.subr.mxu0 0.0
        %1905 = vmatpush2.msra.mxu0 %v1847
        %1906 = vmatprep.subr.mxu0 0.0
        %1907 = vmatpush2.msra.mxu0 %v1846
        %1908 = vmatprep.subr.mxu0 0.0
        %1909 = vmatpush2.msra.mxu0 %v1845
        %1910 = vmatprep.subr.mxu0 0.0
        %1911 = vmatpush2.msra.mxu0 %v1844
        %1912 = vmatprep.subr.mxu0 0.0
        %1913 = vmatpush2.msra.mxu0 %v1843
        %1914 = vmatprep.subr.mxu0 0.0
        %1915 = vmatpush2.msra.mxu0 %v1842
        %1916 = vmatprep.subr.mxu0 0.0
        %1917 = vmatpush2.msra.mxu0 %v1841
        %1918 = vmatprep.subr.mxu0 0.0
        %1919 = vmatpush2.msra.mxu0 %v1840
        %1920 = vmatprep.mubr.f32.mxu0 %v1823
        %1921 = vmatmul.mubr.f32.gmra.mxu0 %v1822
        %v1922 = vpop.f32.mrf.mxu0
        %v1923 = vadd.f32 0.0, %v1922
        %v1924 = vpop.f32.mrf.mxu0
        %1925 = vdwg.mxu0
        %v1926 = vadd.f32 %v840, %v1923
        %1927 = vadd.xlane.f32.xlu0 %v1926
        %v1928 = vpop.xlane.xlu0 %1927
        %v1929 = vrcp.pop 128.0
        %v1930 = vmul.f32 %v1928, %v1929
        %v1931 = vsub.f32 %v1926, %v1930
        %v1932 = vmul.f32 %v1931, %v1931
        %1933 = vadd.xlane.f32.xlu0 %v1932
        %v1934 = vpop.xlane.xlu0 %1933
        %v1935 = vmul.f32 %v1934, %v1929
        %v1936 = vadd.f32 %v1935, 1e-05
        %v1937 = vrsqrt.pop %v1936
        %v1938 = vmul.f32 %v1931, %v1937
        %v1939 = vld [vmem:[%s691] sm:$0xff]
        %v1940 = vld [vmem:[%s691 + $0x8] sm:$0xff]
        %v1941 = vld [vmem:[%s691 + $0x10] sm:$0xff]
        %v1942 = vld [vmem:[%s691 + $0x18] sm:$0xff]
        %v1943 = vld [vmem:[%s691 + $0x20] sm:$0xff]
        %v1944 = vld [vmem:[%s691 + $0x28] sm:$0xff]
        %v1945 = vld [vmem:[%s691 + $0x30] sm:$0xff]
        %v1946 = vld [vmem:[%s691 + $0x38] sm:$0xff]
        %v1947 = vld [vmem:[%s691 + $0x40] sm:$0xff]
        %v1948 = vld [vmem:[%s691 + $0x48] sm:$0xff]
        %v1949 = vld [vmem:[%s691 + $0x50] sm:$0xff]
        %v1950 = vld [vmem:[%s691 + $0x58] sm:$0xff]
        %v1951 = vld [vmem:[%s691 + $0x60] sm:$0xff]
        %v1952 = vld [vmem:[%s691 + $0x68] sm:$0xff]
        %v1953 = vld [vmem:[%s691 + $0x70] sm:$0xff]
        %v1954 = vld [vmem:[%s691 + $0x78] sm:$0xff]
        %v1955 = vld [vmem:[%s691 + $0x80] sm:$0xff]
        %v1956 = vld [vmem:[%s691 + $0x88] sm:$0xff]
        %v1957 = vld [vmem:[%s691 + $0x90] sm:$0xff]
        %v1958 = vld [vmem:[%s691 + $0x98] sm:$0xff]
        %v1959 = vld [vmem:[%s691 + $0xa0] sm:$0xff]
        %v1960 = vld [vmem:[%s691 + $0xa8] sm:$0xff]
        %v1961 = vld [vmem:[%s691 + $0xb0] sm:$0xff]
        %v1962 = vld [vmem:[%s691 + $0xb8] sm:$0xff]
        %v1963 = vld [vmem:[%s691 + $0xc0] sm:$0xff]
        %v1964 = vld [vmem:[%s691 + $0xc8] sm:$0xff]
        %v1965 = vld [vmem:[%s691 + $0xd0] sm:$0xff]
        %v1966 = vld [vmem:[%s691 + $0xd8] sm:$0xff]
        %v1967 = vld [vmem:[%s691 + $0xe0] sm:$0xff]
        %v1968 = vld [vmem:[%s691 + $0xe8] sm:$0xff]
        %v1969 = vld [vmem:[%s691 + $0xf0] sm:$0xff]
        %v1970 = vld [vmem:[%s691 + $0xf8] sm:$0xff]
        %1971 = vmatprep.subr.mxu0 %v1970
        %1972 = vmatpush1.msra.mxu0 %v1969
        %1973 = vmatprep.subr.mxu0 %v1968
        %1974 = vmatpush1.msra.mxu0 %v1967
        %1975 = vmatprep.subr.mxu0 %v1966
        %1976 = vmatpush1.msra.mxu0 %v1965
        %1977 = vmatprep.subr.mxu0 %v1964
        %1978 = vmatpush1.msra.mxu0 %v1963
        %1979 = vmatprep.subr.mxu0 %v1962
        %1980 = vmatpush1.msra.mxu0 %v1961
        %1981 = vmatprep.subr.mxu0 %v1960
        %1982 = vmatpush1.msra.mxu0 %v1959
        %1983 = vmatprep.subr.mxu0 %v1958
        %1984 = vmatpush1.msra.mxu0 %v1957
        %1985 = vmatprep.subr.mxu0 %v1956
        %1986 = vmatpush1.msra.mxu0 %v1955
        %1987 = vmatprep.subr.mxu0 %v1954
        %1988 = vmatpush1.msra.mxu0 %v1953
        %1989 = vmatprep.subr.mxu0 %v1952
        %1990 = vmatpush1.msra.mxu0 %v1951
        %1991 = vmatprep.subr.mxu0 %v1950
        %1992 = vmatpush1.msra.mxu0 %v1949
        %1993 = vmatprep.subr.mxu0 %v1948
        %1994 = vmatpush1.msra.mxu0 %v1947
        %1995 = vmatprep.subr.mxu0 %v1946
        %1996 = vmatpush1.msra.mxu0 %v1945
        %1997 = vmatprep.subr.mxu0 %v1944
        %1998 = vmatpush1.msra.mxu0 %v1943
        %1999 = vmatprep.subr.mxu0 %v1942
        %2000 = vmatpush1.msra.mxu0 %v1941
        %2001 = vmatprep.subr.mxu0 %v1940
        %2002 = vmatpush1.msra.mxu0 %v1939
        %2003 = vmatprep.subr.mxu0 0.0
        %2004 = vmatpush2.msra.mxu0 0.0
        %2005 = vmatprep.subr.mxu0 0.0
        %2006 = vmatpush2.msra.mxu0 0.0
        %2007 = vmatprep.subr.mxu0 0.0
        %2008 = vmatpush2.msra.mxu0 0.0
        %2009 = vmatprep.subr.mxu0 0.0
        %2010 = vmatpush2.msra.mxu0 0.0
        %2011 = vmatprep.subr.mxu0 0.0
        %2012 = vmatpush2.msra.mxu0 0.0
        %2013 = vmatprep.subr.mxu0 0.0
        %2014 = vmatpush2.msra.mxu0 0.0
        %2015 = vmatprep.subr.mxu0 0.0
        %2016 = vmatpush2.msra.mxu0 0.0
        %2017 = vmatprep.subr.mxu0 0.0
        %2018 = vmatpush2.msra.mxu0 0.0
        %2019 = vmatprep.subr.mxu0 0.0
        %2020 = vmatpush2.msra.mxu0 0.0
        %2021 = vmatprep.subr.mxu0 0.0
        %2022 = vmatpush2.msra.mxu0 0.0
        %2023 = vmatprep.subr.mxu0 0.0
        %2024 = vmatpush2.msra.mxu0 0.0
        %2025 = vmatprep.subr.mxu0 0.0
        %2026 = vmatpush2.msra.mxu0 0.0
        %2027 = vmatprep.subr.mxu0 0.0
        %2028 = vmatpush2.msra.mxu0 0.0
        %2029 = vmatprep.subr.mxu0 0.0
        %2030 = vmatpush2.msra.mxu0 0.0
        %2031 = vmatprep.subr.mxu0 0.0
        %2032 = vmatpush2.msra.mxu0 0.0
        %2033 = vmatprep.subr.mxu0 0.0
        %2034 = vmatpush2.msra.mxu0 0.0
        %2035 = vmatprep.mubr.f32.mxu0 0.0
        %2036 = vmatmul.mubr.f32.gmra.mxu0 %v1938
        %v2037 = vpop.f32.mrf.mxu0
        %v2038 = vadd.f32 0.0, %v2037
        %v2039 = vpop.f32.mrf.mxu0
        %v2040 = vadd.f32 0.0, %v2039
        %2041 = vdwg.mxu0
        %v2042 = vld [vmem:[%s700] sm:$0xff]
        %v2043 = vld [vmem:[%s700 + $0x8] sm:$0xff]
        %v2044 = vld [vmem:[%s700 + $0x10] sm:$0xff]
        %v2045 = vld [vmem:[%s700 + $0x18] sm:$0xff]
        %v2046 = vld [vmem:[%s700 + $0x20] sm:$0xff]
        %v2047 = vld [vmem:[%s700 + $0x28] sm:$0xff]
        %v2048 = vld [vmem:[%s700 + $0x30] sm:$0xff]
        %v2049 = vld [vmem:[%s700 + $0x38] sm:$0xff]
        %v2050 = vld [vmem:[%s700 + $0x40] sm:$0xff]
        %v2051 = vld [vmem:[%s700 + $0x48] sm:$0xff]
        %v2052 = vld [vmem:[%s700 + $0x50] sm:$0xff]
        %v2053 = vld [vmem:[%s700 + $0x58] sm:$0xff]
        %v2054 = vld [vmem:[%s700 + $0x60] sm:$0xff]
        %v2055 = vld [vmem:[%s700 + $0x68] sm:$0xff]
        %v2056 = vld [vmem:[%s700 + $0x70] sm:$0xff]
        %v2057 = vld [vmem:[%s700 + $0x78] sm:$0xff]
        %v2058 = vld [vmem:[%s700 + $0x80] sm:$0xff]
        %v2059 = vld [vmem:[%s700 + $0x88] sm:$0xff]
        %v2060 = vld [vmem:[%s700 + $0x90] sm:$0xff]
        %v2061 = vld [vmem:[%s700 + $0x98] sm:$0xff]
        %v2062 = vld [vmem:[%s700 + $0xa0] sm:$0xff]
        %v2063 = vld [vmem:[%s700 + $0xa8] sm:$0xff]
        %v2064 = vld [vmem:[%s700 + $0xb0] sm:$0xff]
        %v2065 = vld [vmem:[%s700 + $0xb8] sm:$0xff]
        %v2066 = vld [vmem:[%s700 + $0xc0] sm:$0xff]
        %v2067 = vld [vmem:[%s700 + $0xc8] sm:$0xff]
        %v2068 = vld [vmem:[%s700 + $0xd0] sm:$0xff]
        %v2069 = vld [vmem:[%s700 + $0xd8] sm:$0xff]
        %v2070 = vld [vmem:[%s700 + $0xe0] sm:$0xff]
        %v2071 = vld [vmem:[%s700 + $0xe8] sm:$0xff]
        %v2072 = vld [vmem:[%s700 + $0xf0] sm:$0xff]
        %v2073 = vld [vmem:[%s700 + $0xf8] sm:$0xff]
        %v2074 = vld [vmem:[%s700 + $0x100] sm:$0xff]
        %v2075 = vld [vmem:[%s700 + $0x108] sm:$0xff]
        %v2076 = vld [vmem:[%s700 + $0x110] sm:$0xff]
        %v2077 = vld [vmem:[%s700 + $0x118] sm:$0xff]
        %v2078 = vld [vmem:[%s700 + $0x120] sm:$0xff]
        %v2079 = vld [vmem:[%s700 + $0x128] sm:$0xff]
        %v2080 = vld [vmem:[%s700 + $0x130] sm:$0xff]
        %v2081 = vld [vmem:[%s700 + $0x138] sm:$0xff]
        %v2082 = vld [vmem:[%s700 + $0x140] sm:$0xff]
        %v2083 = vld [vmem:[%s700 + $0x148] sm:$0xff]
        %v2084 = vld [vmem:[%s700 + $0x150] sm:$0xff]
        %v2085 = vld [vmem:[%s700 + $0x158] sm:$0xff]
        %v2086 = vld [vmem:[%s700 + $0x160] sm:$0xff]
        %v2087 = vld [vmem:[%s700 + $0x168] sm:$0xff]
        %v2088 = vld [vmem:[%s700 + $0x170] sm:$0xff]
        %v2089 = vld [vmem:[%s700 + $0x178] sm:$0xff]
        %v2090 = vld [vmem:[%s700 + $0x180] sm:$0xff]
        %v2091 = vld [vmem:[%s700 + $0x188] sm:$0xff]
        %v2092 = vld [vmem:[%s700 + $0x190] sm:$0xff]
        %v2093 = vld [vmem:[%s700 + $0x198] sm:$0xff]
        %v2094 = vld [vmem:[%s700 + $0x1a0] sm:$0xff]
        %v2095 = vld [vmem:[%s700 + $0x1a8] sm:$0xff]
        %v2096 = vld [vmem:[%s700 + $0x1b0] sm:$0xff]
        %v2097 = vld [vmem:[%s700 + $0x1b8] sm:$0xff]
        %v2098 = vld [vmem:[%s700 + $0x1c0] sm:$0xff]
        %v2099 = vld [vmem:[%s700 + $0x1c8] sm:$0xff]
        %v2100 = vld [vmem:[%s700 + $0x1d0] sm:$0xff]
        %v2101 = vld [vmem:[%s700 + $0x1d8] sm:$0xff]
        %v2102 = vld [vmem:[%s700 + $0x1e0] sm:$0xff]
        %v2103 = vld [vmem:[%s700 + $0x1e8] sm:$0xff]
        %v2104 = vld [vmem:[%s700 + $0x1f0] sm:$0xff]
        %v2105 = vld [vmem:[%s700 + $0x1f8] sm:$0xff]
        %2106 = vmatprep.subr.mxu0 %v2103
        %2107 = vmatpush1.msra.mxu0 %v2102
        %2108 = vmatprep.subr.mxu0 %v2099
        %2109 = vmatpush1.msra.mxu0 %v2098
        %2110 = vmatprep.subr.mxu0 %v2095
        %2111 = vmatpush1.msra.mxu0 %v2094
        %2112 = vmatprep.subr.mxu0 %v2091
        %2113 = vmatpush1.msra.mxu0 %v2090
        %2114 = vmatprep.subr.mxu0 %v2087
        %2115 = vmatpush1.msra.mxu0 %v2086
        %2116 = vmatprep.subr.mxu0 %v2083
        %2117 = vmatpush1.msra.mxu0 %v2082
        %2118 = vmatprep.subr.mxu0 %v2079
        %2119 = vmatpush1.msra.mxu0 %v2078
        %2120 = vmatprep.subr.mxu0 %v2075
        %2121 = vmatpush1.msra.mxu0 %v2074
        %2122 = vmatprep.subr.mxu0 %v2071
        %2123 = vmatpush1.msra.mxu0 %v2070
        %2124 = vmatprep.subr.mxu0 %v2067
        %2125 = vmatpush1.msra.mxu0 %v2066
        %2126 = vmatprep.subr.mxu0 %v2063
        %2127 = vmatpush1.msra.mxu0 %v2062
        %2128 = vmatprep.subr.mxu0 %v2059
        %2129 = vmatpush1.msra.mxu0 %v2058
        %2130 = vmatprep.subr.mxu0 %v2055
        %2131 = vmatpush1.msra.mxu0 %v2054
        %2132 = vmatprep.subr.mxu0 %v2051
        %2133 = vmatpush1.msra.mxu0 %v2050
        %2134 = vmatprep.subr.mxu0 %v2047
        %2135 = vmatpush1.msra.mxu0 %v2046
        %2136 = vmatprep.subr.mxu0 %v2043
        %2137 = vmatpush1.msra.mxu0 %v2042
        %2138 = vmatprep.subr.mxu0 0.0
        %2139 = vmatpush2.msra.mxu0 0.0
        %2140 = vmatprep.subr.mxu0 0.0
        %2141 = vmatpush2.msra.mxu0 0.0
        %2142 = vmatprep.subr.mxu0 0.0
        %2143 = vmatpush2.msra.mxu0 0.0
        %2144 = vmatprep.subr.mxu0 0.0
        %2145 = vmatpush2.msra.mxu0 0.0
        %2146 = vmatprep.subr.mxu0 0.0
        %2147 = vmatpush2.msra.mxu0 0.0
        %2148 = vmatprep.subr.mxu0 0.0
        %2149 = vmatpush2.msra.mxu0 0.0
        %2150 = vmatprep.subr.mxu0 0.0
        %2151 = vmatpush2.msra.mxu0 0.0
        %2152 = vmatprep.subr.mxu0 0.0
        %2153 = vmatpush2.msra.mxu0 0.0
        %2154 = vmatprep.subr.mxu0 0.0
        %2155 = vmatpush2.msra.mxu0 0.0
        %2156 = vmatprep.subr.mxu0 0.0
        %2157 = vmatpush2.msra.mxu0 0.0
        %2158 = vmatprep.subr.mxu0 0.0
        %2159 = vmatpush2.msra.mxu0 0.0
        %2160 = vmatprep.subr.mxu0 0.0
        %2161 = vmatpush2.msra.mxu0 0.0
        %2162 = vmatprep.subr.mxu0 0.0
        %2163 = vmatpush2.msra.mxu0 0.0
        %2164 = vmatprep.subr.mxu0 0.0
        %2165 = vmatpush2.msra.mxu0 0.0
        %2166 = vmatprep.subr.mxu0 0.0
        %2167 = vmatpush2.msra.mxu0 0.0
        %2168 = vmatprep.subr.mxu0 0.0
        %2169 = vmatpush2.msra.mxu0 0.0
        %2170 = vmatprep.mubr.f32.mxu0 0.0
        %2171 = vmatmul.mubr.f32.gmra.mxu0 %v841
        %v2172 = vpop.f32.mrf.mxu0
        %v2173 = vadd.f32 0.0, %v2172
        %v2174 = vpop.f32.mrf.mxu0
        %v2175 = vadd.f32 0.0, %v2174
        %2176 = vdwg.mxu0
        %2177 = vmatprep.subr.mxu0 %v2105
        %2178 = vmatpush1.msra.mxu0 %v2104
        %2179 = vmatprep.subr.mxu0 %v2101
        %2180 = vmatpush1.msra.mxu0 %v2100
        %2181 = vmatprep.subr.mxu0 %v2097
        %2182 = vmatpush1.msra.mxu0 %v2096
        %2183 = vmatprep.subr.mxu0 %v2093
        %2184 = vmatpush1.msra.mxu0 %v2092
        %2185 = vmatprep.subr.mxu0 %v2089
        %2186 = vmatpush1.msra.mxu0 %v2088
        %2187 = vmatprep.subr.mxu0 %v2085
        %2188 = vmatpush1.msra.mxu0 %v2084
        %2189 = vmatprep.subr.mxu0 %v2081
        %2190 = vmatpush1.msra.mxu0 %v2080
        %2191 = vmatprep.subr.mxu0 %v2077
        %2192 = vmatpush1.msra.mxu0 %v2076
        %2193 = vmatprep.subr.mxu0 %v2073
        %2194 = vmatpush1.msra.mxu0 %v2072
        %2195 = vmatprep.subr.mxu0 %v2069
        %2196 = vmatpush1.msra.mxu0 %v2068
        %2197 = vmatprep.subr.mxu0 %v2065
        %2198 = vmatpush1.msra.mxu0 %v2064
        %2199 = vmatprep.subr.mxu0 %v2061
        %2200 = vmatpush1.msra.mxu0 %v2060
        %2201 = vmatprep.subr.mxu0 %v2057
        %2202 = vmatpush1.msra.mxu0 %v2056
        %2203 = vmatprep.subr.mxu0 %v2053
        %2204 = vmatpush1.msra.mxu0 %v2052
        %2205 = vmatprep.subr.mxu0 %v2049
        %2206 = vmatpush1.msra.mxu0 %v2048
        %2207 = vmatprep.subr.mxu0 %v2045
        %2208 = vmatpush1.msra.mxu0 %v2044
        %2209 = vmatprep.subr.mxu0 0.0
        %2210 = vmatpush2.msra.mxu0 0.0
        %2211 = vmatprep.subr.mxu0 0.0
        %2212 = vmatpush2.msra.mxu0 0.0
        %2213 = vmatprep.subr.mxu0 0.0
        %2214 = vmatpush2.msra.mxu0 0.0
        %2215 = vmatprep.subr.mxu0 0.0
        %2216 = vmatpush2.msra.mxu0 0.0
        %2217 = vmatprep.subr.mxu0 0.0
        %2218 = vmatpush2.msra.mxu0 0.0
        %2219 = vmatprep.subr.mxu0 0.0
        %2220 = vmatpush2.msra.mxu0 0.0
        %2221 = vmatprep.subr.mxu0 0.0
        %2222 = vmatpush2.msra.mxu0 0.0
        %2223 = vmatprep.subr.mxu0 0.0
        %2224 = vmatpush2.msra.mxu0 0.0
        %2225 = vmatprep.subr.mxu0 0.0
        %2226 = vmatpush2.msra.mxu0 0.0
        %2227 = vmatprep.subr.mxu0 0.0
        %2228 = vmatpush2.msra.mxu0 0.0
        %2229 = vmatprep.subr.mxu0 0.0
        %2230 = vmatpush2.msra.mxu0 0.0
        %2231 = vmatprep.subr.mxu0 0.0
        %2232 = vmatpush2.msra.mxu0 0.0
        %2233 = vmatprep.subr.mxu0 0.0
        %2234 = vmatpush2.msra.mxu0 0.0
        %2235 = vmatprep.subr.mxu0 0.0
        %2236 = vmatpush2.msra.mxu0 0.0
        %2237 = vmatprep.subr.mxu0 0.0
        %2238 = vmatpush2.msra.mxu0 0.0
        %2239 = vmatprep.subr.mxu0 0.0
        %2240 = vmatpush2.msra.mxu0 0.0
        %2241 = vmatprep.mubr.f32.mxu0 0.0
        %2242 = vmatmul.mubr.f32.gmra.mxu0 %v841
        %v2243 = vpop.f32.mrf.mxu0
        %v2244 = vadd.f32 0.0, %v2243
        %v2245 = vpop.f32.mrf.mxu0
        %v2246 = vadd.f32 0.0, %v2245
        %2247 = vdwg.mxu0
        %v2248 = vld [vmem:[%s664] sm:$0xff]
        %v2250 = vsel %vm1152, %v2038, 0
        %v2253 = vsel %vm1152, %v2173, 0
        %2255 = vmatprep.subr.mxu0 0.0
        %2256 = vmatpush1.xpose.msra.mxu0 0.0
        %2257 = vmatprep.subr.mxu0 0.0
        %2258 = vmatpush1.xpose.msra.mxu0 0.0
        %2259 = vmatprep.subr.mxu0 0.0
        %2260 = vmatpush1.xpose.msra.mxu0 0.0
        %2261 = vmatprep.subr.mxu0 0.0
        %2262 = vmatpush1.xpose.msra.mxu0 0.0
        %2263 = vmatprep.subr.mxu0 0.0
        %2264 = vmatpush1.xpose.msra.mxu0 0.0
        %2265 = vmatprep.subr.mxu0 0.0
        %2266 = vmatpush1.xpose.msra.mxu0 0.0
        %2267 = vmatprep.subr.mxu0 0.0
        %2268 = vmatpush1.xpose.msra.mxu0 0.0
        %2269 = vmatprep.subr.mxu0 0.0
        %2270 = vmatpush1.xpose.msra.mxu0 0.0
        %2271 = vmatprep.subr.mxu0 0.0
        %2272 = vmatpush1.xpose.msra.mxu0 0.0
        %2273 = vmatprep.subr.mxu0 0.0
        %2274 = vmatpush1.xpose.msra.mxu0 0.0
        %2275 = vmatprep.subr.mxu0 0.0
        %2276 = vmatpush1.xpose.msra.mxu0 0.0
        %2277 = vmatprep.subr.mxu0 0.0
        %2278 = vmatpush1.xpose.msra.mxu0 0.0
        %2279 = vmatprep.subr.mxu0 0.0
        %2280 = vmatpush1.xpose.msra.mxu0 0.0
        %2281 = vmatprep.subr.mxu0 0.0
        %2282 = vmatpush1.xpose.msra.mxu0 0.0
        %2283 = vmatprep.subr.mxu0 0.0
        %2284 = vmatpush1.xpose.msra.mxu0 0.0
        %2285 = vmatprep.subr.mxu0 0.0
        %2286 = vmatpush1.xpose.msra.mxu0 %v2253
        %2287 = vmatprep.subr.mxu0 0.0
        %2288 = vmatpush2.xpose.msra.mxu0 0.0
        %2289 = vmatprep.subr.mxu0 0.0
        %2290 = vmatpush2.xpose.msra.mxu0 0.0
        %2291 = vmatprep.subr.mxu0 0.0
        %2292 = vmatpush2.xpose.msra.mxu0 0.0
        %2293 = vmatprep.subr.mxu0 0.0
        %2294 = vmatpush2.xpose.msra.mxu0 0.0
        %2295 = vmatprep.subr.mxu0 0.0
        %2296 = vmatpush2.xpose.msra.mxu0 0.0
        %2297 = vmatprep.subr.mxu0 0.0
        %2298 = vmatpush2.xpose.msra.mxu0 0.0
        %2299 = vmatprep.subr.mxu0 0.0
        %2300 = vmatpush2.xpose.msra.mxu0 0.0
        %2301 = vmatprep.subr.mxu0 0.0
        %2302 = vmatpush2.xpose.msra.mxu0 0.0
        %2303 = vmatprep.subr.mxu0 0.0
        %2304 = vmatpush2.xpose.msra.mxu0 0.0
        %2305 = vmatprep.subr.mxu0 0.0
        %2306 = vmatpush2.xpose.msra.mxu0 0.0
        %2307 = vmatprep.subr.mxu0 0.0
        %2308 = vmatpush2.xpose.msra.mxu0 0.0
        %2309 = vmatprep.subr.mxu0 0.0
        %2310 = vmatpush2.xpose.msra.mxu0 0.0
        %2311 = vmatprep.subr.mxu0 0.0
        %2312 = vmatpush2.xpose.msra.mxu0 0.0
        %2313 = vmatprep.subr.mxu0 0.0
        %2314 = vmatpush2.xpose.msra.mxu0 0.0
        %2315 = vmatprep.subr.mxu0 0.0
        %2316 = vmatpush2.xpose.msra.mxu0 0.0
        %2317 = vmatprep.subr.mxu0 0.0
        %2318 = vmatpush2.xpose.msra.mxu0 0.0
        %2319 = vmatprep.mubr.f32.mxu0 0.0
        %2320 = vmatmul.mubr.f32.gmra.mxu0 %v2250
        %v2321 = vpop.f32.mrf.mxu0
        %v2322 = vadd.f32 0.0, %v2321
        %v2323 = vpop.f32.mrf.mxu0
        %2324 = vdwg.mxu0
        %v2325 = vmul.f32 %v2322, 0.125
        %v2326 = vadd.f32 %v2325, %v2248
        %v2327 = vsel %vm1231, %v2326, -inf
        %2328 = vmax.xlane.f32.xlu0 %v2327
        %v2329 = vpop.xlane.xlu0 %2328
        %v2330 = vsub.f32 %v2326, %v2329
        %v2331 = vmul.f32 %v2330, 1.442695
        %v2332 = vpow.pop %v2331
        %v2333 = vsel %vm1231, %v2332, 0.0
        %2334 = vadd.xlane.f32.xlu0 %v2333
        %v2335 = vpop.xlane.xlu0 %2334
        %v2336 = vrcp.pop %v2335
        %v2338 = vsel %vm1231, %v2332, 0
        %2340 = vmatprep.subr.mxu0 0.0
        %2341 = vmatpush1.msra.mxu0 0.0
        %2342 = vmatprep.subr.mxu0 0.0
        %2343 = vmatpush1.msra.mxu0 0.0
        %2344 = vmatprep.subr.mxu0 0.0
        %2345 = vmatpush1.msra.mxu0 0.0
        %2346 = vmatprep.subr.mxu0 0.0
        %2347 = vmatpush1.msra.mxu0 0.0
        %2348 = vmatprep.subr.mxu0 0.0
        %2349 = vmatpush1.msra.mxu0 0.0
        %2350 = vmatprep.subr.mxu0 0.0
        %2351 = vmatpush1.msra.mxu0 0.0
        %2352 = vmatprep.subr.mxu0 0.0
        %2353 = vmatpush1.msra.mxu0 0.0
        %2354 = vmatprep.subr.mxu0 0.0
        %2355 = vmatpush1.msra.mxu0 0.0
        %2356 = vmatprep.subr.mxu0 0.0
        %2357 = vmatpush1.msra.mxu0 0.0
        %2358 = vmatprep.subr.mxu0 0.0
        %2359 = vmatpush1.msra.mxu0 0.0
        %2360 = vmatprep.subr.mxu0 0.0
        %2361 = vmatpush1.msra.mxu0 0.0
        %2362 = vmatprep.subr.mxu0 0.0
        %2363 = vmatpush1.msra.mxu0 0.0
        %2364 = vmatprep.subr.mxu0 0.0
        %2365 = vmatpush1.msra.mxu0 0.0
        %2366 = vmatprep.subr.mxu0 0.0
        %2367 = vmatpush1.msra.mxu0 0.0
        %2368 = vmatprep.subr.mxu0 0.0
        %2369 = vmatpush1.msra.mxu0 0.0
        %2370 = vmatprep.subr.mxu0 0.0
        %2371 = vmatpush1.msra.mxu0 %v2244
        %2372 = vmatprep.subr.mxu0 0.0
        %2373 = vmatpush2.msra.mxu0 0.0
        %2374 = vmatprep.subr.mxu0 0.0
        %2375 = vmatpush2.msra.mxu0 0.0
        %2376 = vmatprep.subr.mxu0 0.0
        %2377 = vmatpush2.msra.mxu0 0.0
        %2378 = vmatprep.subr.mxu0 0.0
        %2379 = vmatpush2.msra.mxu0 0.0
        %2380 = vmatprep.subr.mxu0 0.0
        %2381 = vmatpush2.msra.mxu0 0.0
        %2382 = vmatprep.subr.mxu0 0.0
        %2383 = vmatpush2.msra.mxu0 0.0
        %2384 = vmatprep.subr.mxu0 0.0
        %2385 = vmatpush2.msra.mxu0 0.0
        %2386 = vmatprep.subr.mxu0 0.0
        %2387 = vmatpush2.msra.mxu0 0.0
        %2388 = vmatprep.subr.mxu0 0.0
        %2389 = vmatpush2.msra.mxu0 0.0
        %2390 = vmatprep.subr.mxu0 0.0
        %2391 = vmatpush2.msra.mxu0 0.0
        %2392 = vmatprep.subr.mxu0 0.0
        %2393 = vmatpush2.msra.mxu0 0.0
        %2394 = vmatprep.subr.mxu0 0.0
        %2395 = vmatpush2.msra.mxu0 0.0
        %2396 = vmatprep.subr.mxu0 0.0
        %2397 = vmatpush2.msra.mxu0 0.0
        %2398 = vmatprep.subr.mxu0 0.0
        %2399 = vmatpush2.msra.mxu0 0.0
        %2400 = vmatprep.subr.mxu0 0.0
        %2401 = vmatpush2.msra.mxu0 0.0
        %2402 = vmatprep.subr.mxu0 0.0
        %2403 = vmatpush2.msra.mxu0 0.0
        %2404 = vmatprep.mubr.f32.mxu0 0.0
        %2405 = vmatmul.mubr.f32.gmra.mxu0 %v2338
        %v2406 = vpop.f32.mrf.mxu0
        %v2407 = vadd.f32 0.0, %v2406
        %v2408 = vpop.f32.mrf.mxu0
        %2409 = vdwg.mxu0
        %v2410 = vmul.f32 %v2407, %v2336
        %2411 = vrot.lane.b32.xlu0 %v2038, 64
        %v2412 = vpop.permute.xlu0 %2411
        %2413 = vrot.lane.b32.xlu0 %v2173, 64
        %v2414 = vpop.permute.xlu0 %2413
        %v2415 = vsel %vm1152, %v2412, 0
        %v2417 = vsel %vm1152, %v2414, 0
        %2419 = vmatprep.subr.mxu0 0.0
        %2420 = vmatpush1.xpose.msra.mxu0 0.0
        %2421 = vmatprep.subr.mxu0 0.0
        %2422 = vmatpush1.xpose.msra.mxu0 0.0
        %2423 = vmatprep.subr.mxu0 0.0
        %2424 = vmatpush1.xpose.msra.mxu0 0.0
        %2425 = vmatprep.subr.mxu0 0.0
        %2426 = vmatpush1.xpose.msra.mxu0 0.0
        %2427 = vmatprep.subr.mxu0 0.0
        %2428 = vmatpush1.xpose.msra.mxu0 0.0
        %2429 = vmatprep.subr.mxu0 0.0
        %2430 = vmatpush1.xpose.msra.mxu0 0.0
        %2431 = vmatprep.subr.mxu0 0.0
        %2432 = vmatpush1.xpose.msra.mxu0 0.0
        %2433 = vmatprep.subr.mxu0 0.0
        %2434 = vmatpush1.xpose.msra.mxu0 0.0
        %2435 = vmatprep.subr.mxu0 0.0
        %2436 = vmatpush1.xpose.msra.mxu0 0.0
        %2437 = vmatprep.subr.mxu0 0.0
        %2438 = vmatpush1.xpose.msra.mxu0 0.0
        %2439 = vmatprep.subr.mxu0 0.0
        %2440 = vmatpush1.xpose.msra.mxu0 0.0
        %2441 = vmatprep.subr.mxu0 0.0
        %2442 = vmatpush1.xpose.msra.mxu0 0.0
        %2443 = vmatprep.subr.mxu0 0.0
        %2444 = vmatpush1.xpose.msra.mxu0 0.0
        %2445 = vmatprep.subr.mxu0 0.0
        %2446 = vmatpush1.xpose.msra.mxu0 0.0
        %2447 = vmatprep.subr.mxu0 0.0
        %2448 = vmatpush1.xpose.msra.mxu0 0.0
        %2449 = vmatprep.subr.mxu0 0.0
        %2450 = vmatpush1.xpose.msra.mxu0 %v2417
        %2451 = vmatprep.subr.mxu0 0.0
        %2452 = vmatpush2.xpose.msra.mxu0 0.0
        %2453 = vmatprep.subr.mxu0 0.0
        %2454 = vmatpush2.xpose.msra.mxu0 0.0
        %2455 = vmatprep.subr.mxu0 0.0
        %2456 = vmatpush2.xpose.msra.mxu0 0.0
        %2457 = vmatprep.subr.mxu0 0.0
        %2458 = vmatpush2.xpose.msra.mxu0 0.0
        %2459 = vmatprep.subr.mxu0 0.0
        %2460 = vmatpush2.xpose.msra.mxu0 0.0
        %2461 = vmatprep.subr.mxu0 0.0
        %2462 = vmatpush2.xpose.msra.mxu0 0.0
        %2463 = vmatprep.subr.mxu0 0.0
        %2464 = vmatpush2.xpose.msra.mxu0 0.0
        %2465 = vmatprep.subr.mxu0 0.0
        %2466 = vmatpush2.xpose.msra.mxu0 0.0
        %2467 = vmatprep.subr.mxu0 0.0
        %2468 = vmatpush2.xpose.msra.mxu0 0.0
        %2469 = vmatprep.subr.mxu0 0.0
        %2470 = vmatpush2.xpose.msra.mxu0 0.0
        %2471 = vmatprep.subr.mxu0 0.0
        %2472 = vmatpush2.xpose.msra.mxu0 0.0
        %2473 = vmatprep.subr.mxu0 0.0
        %2474 = vmatpush2.xpose.msra.mxu0 0.0
        %2475 = vmatprep.subr.mxu0 0.0
        %2476 = vmatpush2.xpose.msra.mxu0 0.0
        %2477 = vmatprep.subr.mxu0 0.0
        %2478 = vmatpush2.xpose.msra.mxu0 0.0
        %2479 = vmatprep.subr.mxu0 0.0
        %2480 = vmatpush2.xpose.msra.mxu0 0.0
        %2481 = vmatprep.subr.mxu0 0.0
        %2482 = vmatpush2.xpose.msra.mxu0 0.0
        %2483 = vmatprep.mubr.f32.mxu0 0.0
        %2484 = vmatmul.mubr.f32.gmra.mxu0 %v2415
        %v2485 = vpop.f32.mrf.mxu0
        %v2486 = vadd.f32 0.0, %v2485
        %v2487 = vpop.f32.mrf.mxu0
        %2488 = vdwg.mxu0
        %v2489 = vmul.f32 %v2486, 0.125
        %v2490 = vadd.f32 %v2489, %v2248
        %v2491 = vsel %vm1231, %v2490, -inf
        %2492 = vmax.xlane.f32.xlu0 %v2491
        %v2493 = vpop.xlane.xlu0 %2492
        %v2494 = vsub.f32 %v2490, %v2493
        %v2495 = vmul.f32 %v2494, 1.442695
        %v2496 = vpow.pop %v2495
        %v2497 = vsel %vm1231, %v2496, 0.0
        %2498 = vadd.xlane.f32.xlu0 %v2497
        %v2499 = vpop.xlane.xlu0 %2498
        %v2500 = vrcp.pop %v2499
        %2502 = vrot.lane.b32.xlu0 %v2244, 64
        %v2503 = vpop.permute.xlu0 %2502
        %v2506 = vsel %vm1231, %v2496, 0
        %2508 = vmatprep.subr.mxu0 0.0
        %2509 = vmatpush1.msra.mxu0 0.0
        %2510 = vmatprep.subr.mxu0 0.0
        %2511 = vmatpush1.msra.mxu0 0.0
        %2512 = vmatprep.subr.mxu0 0.0
        %2513 = vmatpush1.msra.mxu0 0.0
        %2514 = vmatprep.subr.mxu0 0.0
        %2515 = vmatpush1.msra.mxu0 0.0
        %2516 = vmatprep.subr.mxu0 0.0
        %2517 = vmatpush1.msra.mxu0 0.0
        %2518 = vmatprep.subr.mxu0 0.0
        %2519 = vmatpush1.msra.mxu0 0.0
        %2520 = vmatprep.subr.mxu0 0.0
        %2521 = vmatpush1.msra.mxu0 0.0
        %2522 = vmatprep.subr.mxu0 0.0
        %2523 = vmatpush1.msra.mxu0 0.0
        %2524 = vmatprep.subr.mxu0 0.0
        %2525 = vmatpush1.msra.mxu0 0.0
        %2526 = vmatprep.subr.mxu0 0.0
        %2527 = vmatpush1.msra.mxu0 0.0
        %2528 = vmatprep.subr.mxu0 0.0
        %2529 = vmatpush1.msra.mxu0 0.0
        %2530 = vmatprep.subr.mxu0 0.0
        %2531 = vmatpush1.msra.mxu0 0.0
        %2532 = vmatprep.subr.mxu0 0.0
        %2533 = vmatpush1.msra.mxu0 0.0
        %2534 = vmatprep.subr.mxu0 0.0
        %2535 = vmatpush1.msra.mxu0 0.0
        %2536 = vmatprep.subr.mxu0 0.0
        %2537 = vmatpush1.msra.mxu0 0.0
        %2538 = vmatprep.subr.mxu0 0.0
        %2539 = vmatpush1.msra.mxu0 %v2503
        %2540 = vmatprep.subr.mxu0 0.0
        %2541 = vmatpush2.msra.mxu0 0.0
        %2542 = vmatprep.subr.mxu0 0.0
        %2543 = vmatpush2.msra.mxu0 0.0
        %2544 = vmatprep.subr.mxu0 0.0
        %2545 = vmatpush2.msra.mxu0 0.0
        %2546 = vmatprep.subr.mxu0 0.0
        %2547 = vmatpush2.msra.mxu0 0.0
        %2548 = vmatprep.subr.mxu0 0.0
        %2549 = vmatpush2.msra.mxu0 0.0
        %2550 = vmatprep.subr.mxu0 0.0
        %2551 = vmatpush2.msra.mxu0 0.0
        %2552 = vmatprep.subr.mxu0 0.0
        %2553 = vmatpush2.msra.mxu0 0.0
        %2554 = vmatprep.subr.mxu0 0.0
        %2555 = vmatpush2.msra.mxu0 0.0
        %2556 = vmatprep.subr.mxu0 0.0
        %2557 = vmatpush2.msra.mxu0 0.0
        %2558 = vmatprep.subr.mxu0 0.0
        %2559 = vmatpush2.msra.mxu0 0.0
        %2560 = vmatprep.subr.mxu0 0.0
        %2561 = vmatpush2.msra.mxu0 0.0
        %2562 = vmatprep.subr.mxu0 0.0
        %2563 = vmatpush2.msra.mxu0 0.0
        %2564 = vmatprep.subr.mxu0 0.0
        %2565 = vmatpush2.msra.mxu0 0.0
        %2566 = vmatprep.subr.mxu0 0.0
        %2567 = vmatpush2.msra.mxu0 0.0
        %2568 = vmatprep.subr.mxu0 0.0
        %2569 = vmatpush2.msra.mxu0 0.0
        %2570 = vmatprep.subr.mxu0 0.0
        %2571 = vmatpush2.msra.mxu0 0.0
        %2572 = vmatprep.mubr.f32.mxu0 0.0
        %2573 = vmatmul.mubr.f32.gmra.mxu0 %v2506
        %v2574 = vpop.f32.mrf.mxu0
        %v2575 = vadd.f32 0.0, %v2574
        %v2576 = vpop.f32.mrf.mxu0
        %2577 = vdwg.mxu0
        %v2578 = vmul.f32 %v2575, %v2500
        %v2580 = vsel %vm1152, %v2040, 0
        %v2583 = vsel %vm1152, %v2175, 0
        %2585 = vmatprep.subr.mxu0 0.0
        %2586 = vmatpush1.xpose.msra.mxu0 0.0
        %2587 = vmatprep.subr.mxu0 0.0
        %2588 = vmatpush1.xpose.msra.mxu0 0.0
        %2589 = vmatprep.subr.mxu0 0.0
        %2590 = vmatpush1.xpose.msra.mxu0 0.0
        %2591 = vmatprep.subr.mxu0 0.0
        %2592 = vmatpush1.xpose.msra.mxu0 0.0
        %2593 = vmatprep.subr.mxu0 0.0
        %2594 = vmatpush1.xpose.msra.mxu0 0.0
        %2595 = vmatprep.subr.mxu0 0.0
        %2596 = vmatpush1.xpose.msra.mxu0 0.0
        %2597 = vmatprep.subr.mxu0 0.0
        %2598 = vmatpush1.xpose.msra.mxu0 0.0
        %2599 = vmatprep.subr.mxu0 0.0
        %2600 = vmatpush1.xpose.msra.mxu0 0.0
        %2601 = vmatprep.subr.mxu0 0.0
        %2602 = vmatpush1.xpose.msra.mxu0 0.0
        %2603 = vmatprep.subr.mxu0 0.0
        %2604 = vmatpush1.xpose.msra.mxu0 0.0
        %2605 = vmatprep.subr.mxu0 0.0
        %2606 = vmatpush1.xpose.msra.mxu0 0.0
        %2607 = vmatprep.subr.mxu0 0.0
        %2608 = vmatpush1.xpose.msra.mxu0 0.0
        %2609 = vmatprep.subr.mxu0 0.0
        %2610 = vmatpush1.xpose.msra.mxu0 0.0
        %2611 = vmatprep.subr.mxu0 0.0
        %2612 = vmatpush1.xpose.msra.mxu0 0.0
        %2613 = vmatprep.subr.mxu0 0.0
        %2614 = vmatpush1.xpose.msra.mxu0 0.0
        %2615 = vmatprep.subr.mxu0 0.0
        %2616 = vmatpush1.xpose.msra.mxu0 %v2583
        %2617 = vmatprep.subr.mxu0 0.0
        %2618 = vmatpush2.xpose.msra.mxu0 0.0
        %2619 = vmatprep.subr.mxu0 0.0
        %2620 = vmatpush2.xpose.msra.mxu0 0.0
        %2621 = vmatprep.subr.mxu0 0.0
        %2622 = vmatpush2.xpose.msra.mxu0 0.0
        %2623 = vmatprep.subr.mxu0 0.0
        %2624 = vmatpush2.xpose.msra.mxu0 0.0
        %2625 = vmatprep.subr.mxu0 0.0
        %2626 = vmatpush2.xpose.msra.mxu0 0.0
        %2627 = vmatprep.subr.mxu0 0.0
        %2628 = vmatpush2.xpose.msra.mxu0 0.0
        %2629 = vmatprep.subr.mxu0 0.0
        %2630 = vmatpush2.xpose.msra.mxu0 0.0
        %2631 = vmatprep.subr.mxu0 0.0
        %2632 = vmatpush2.xpose.msra.mxu0 0.0
        %2633 = vmatprep.subr.mxu0 0.0
        %2634 = vmatpush2.xpose.msra.mxu0 0.0
        %2635 = vmatprep.subr.mxu0 0.0
        %2636 = vmatpush2.xpose.msra.mxu0 0.0
        %2637 = vmatprep.subr.mxu0 0.0
        %2638 = vmatpush2.xpose.msra.mxu0 0.0
        %2639 = vmatprep.subr.mxu0 0.0
        %2640 = vmatpush2.xpose.msra.mxu0 0.0
        %2641 = vmatprep.subr.mxu0 0.0
        %2642 = vmatpush2.xpose.msra.mxu0 0.0
        %2643 = vmatprep.subr.mxu0 0.0
        %2644 = vmatpush2.xpose.msra.mxu0 0.0
        %2645 = vmatprep.subr.mxu0 0.0
        %2646 = vmatpush2.xpose.msra.mxu0 0.0
        %2647 = vmatprep.subr.mxu0 0.0
        %2648 = vmatpush2.xpose.msra.mxu0 0.0
        %2649 = vmatprep.mubr.f32.mxu0 0.0
        %2650 = vmatmul.mubr.f32.gmra.mxu0 %v2580
        %v2651 = vpop.f32.mrf.mxu0
        %v2652 = vadd.f32 0.0, %v2651
        %v2653 = vpop.f32.mrf.mxu0
        %2654 = vdwg.mxu0
        %v2655 = vmul.f32 %v2652, 0.125
        %v2656 = vadd.f32 %v2655, %v2248
        %v2657 = vsel %vm1231, %v2656, -inf
        %2658 = vmax.xlane.f32.xlu0 %v2657
        %v2659 = vpop.xlane.xlu0 %2658
        %v2660 = vsub.f32 %v2656, %v2659
        %v2661 = vmul.f32 %v2660, 1.442695
        %v2662 = vpow.pop %v2661
        %v2663 = vsel %vm1231, %v2662, 0.0
        %2664 = vadd.xlane.f32.xlu0 %v2663
        %v2665 = vpop.xlane.xlu0 %2664
        %v2666 = vrcp.pop %v2665
        %v2668 = vsel %vm1231, %v2662, 0
        %2670 = vmatprep.subr.mxu0 0.0
        %2671 = vmatpush1.msra.mxu0 0.0
        %2672 = vmatprep.subr.mxu0 0.0
        %2673 = vmatpush1.msra.mxu0 0.0
        %2674 = vmatprep.subr.mxu0 0.0
        %2675 = vmatpush1.msra.mxu0 0.0
        %2676 = vmatprep.subr.mxu0 0.0
        %2677 = vmatpush1.msra.mxu0 0.0
        %2678 = vmatprep.subr.mxu0 0.0
        %2679 = vmatpush1.msra.mxu0 0.0
        %2680 = vmatprep.subr.mxu0 0.0
        %2681 = vmatpush1.msra.mxu0 0.0
        %2682 = vmatprep.subr.mxu0 0.0
        %2683 = vmatpush1.msra.mxu0 0.0
        %2684 = vmatprep.subr.mxu0 0.0
        %2685 = vmatpush1.msra.mxu0 0.0
        %2686 = vmatprep.subr.mxu0 0.0
        %2687 = vmatpush1.msra.mxu0 0.0
        %2688 = vmatprep.subr.mxu0 0.0
        %2689 = vmatpush1.msra.mxu0 0.0
        %2690 = vmatprep.subr.mxu0 0.0
        %2691 = vmatpush1.msra.mxu0 0.0
        %2692 = vmatprep.subr.mxu0 0.0
        %2693 = vmatpush1.msra.mxu0 0.0
        %2694 = vmatprep.subr.mxu0 0.0
        %2695 = vmatpush1.msra.mxu0 0.0
        %2696 = vmatprep.subr.mxu0 0.0
        %2697 = vmatpush1.msra.mxu0 0.0
        %2698 = vmatprep.subr.mxu0 0.0
        %2699 = vmatpush1.msra.mxu0 0.0
        %2700 = vmatprep.subr.mxu0 0.0
        %2701 = vmatpush1.msra.mxu0 %v2246
        %2702 = vmatprep.subr.mxu0 0.0
        %2703 = vmatpush2.msra.mxu0 0.0
        %2704 = vmatprep.subr.mxu0 0.0
        %2705 = vmatpush2.msra.mxu0 0.0
        %2706 = vmatprep.subr.mxu0 0.0
        %2707 = vmatpush2.msra.mxu0 0.0
        %2708 = vmatprep.subr.mxu0 0.0
        %2709 = vmatpush2.msra.mxu0 0.0
        %2710 = vmatprep.subr.mxu0 0.0
        %2711 = vmatpush2.msra.mxu0 0.0
        %2712 = vmatprep.subr.mxu0 0.0
        %2713 = vmatpush2.msra.mxu0 0.0
        %2714 = vmatprep.subr.mxu0 0.0
        %2715 = vmatpush2.msra.mxu0 0.0
        %2716 = vmatprep.subr.mxu0 0.0
        %2717 = vmatpush2.msra.mxu0 0.0
        %2718 = vmatprep.subr.mxu0 0.0
        %2719 = vmatpush2.msra.mxu0 0.0
        %2720 = vmatprep.subr.mxu0 0.0
        %2721 = vmatpush2.msra.mxu0 0.0
        %2722 = vmatprep.subr.mxu0 0.0
        %2723 = vmatpush2.msra.mxu0 0.0
        %2724 = vmatprep.subr.mxu0 0.0
        %2725 = vmatpush2.msra.mxu0 0.0
        %2726 = vmatprep.subr.mxu0 0.0
        %2727 = vmatpush2.msra.mxu0 0.0
        %2728 = vmatprep.subr.mxu0 0.0
        %2729 = vmatpush2.msra.mxu0 0.0
        %2730 = vmatprep.subr.mxu0 0.0
        %2731 = vmatpush2.msra.mxu0 0.0
        %2732 = vmatprep.subr.mxu0 0.0
        %2733 = vmatpush2.msra.mxu0 0.0
        %2734 = vmatprep.mubr.f32.mxu0 0.0
        %2735 = vmatmul.mubr.f32.gmra.mxu0 %v2668
        %v2736 = vpop.f32.mrf.mxu0
        %v2737 = vadd.f32 0.0, %v2736
        %v2738 = vpop.f32.mrf.mxu0
        %2739 = vdwg.mxu0
        %v2740 = vmul.f32 %v2737, %v2666
        %2741 = vrot.lane.b32.xlu0 %v2040, 64
        %v2742 = vpop.permute.xlu0 %2741
        %2743 = vrot.lane.b32.xlu0 %v2175, 64
        %v2744 = vpop.permute.xlu0 %2743
        %v2745 = vsel %vm1152, %v2742, 0
        %v2747 = vsel %vm1152, %v2744, 0
        %2749 = vmatprep.subr.mxu0 0.0
        %2750 = vmatpush1.xpose.msra.mxu0 0.0
        %2751 = vmatprep.subr.mxu0 0.0
        %2752 = vmatpush1.xpose.msra.mxu0 0.0
        %2753 = vmatprep.subr.mxu0 0.0
        %2754 = vmatpush1.xpose.msra.mxu0 0.0
        %2755 = vmatprep.subr.mxu0 0.0
        %2756 = vmatpush1.xpose.msra.mxu0 0.0
        %2757 = vmatprep.subr.mxu0 0.0
        %2758 = vmatpush1.xpose.msra.mxu0 0.0
        %2759 = vmatprep.subr.mxu0 0.0
        %2760 = vmatpush1.xpose.msra.mxu0 0.0
        %2761 = vmatprep.subr.mxu0 0.0
        %2762 = vmatpush1.xpose.msra.mxu0 0.0
        %2763 = vmatprep.subr.mxu0 0.0
        %2764 = vmatpush1.xpose.msra.mxu0 0.0
        %2765 = vmatprep.subr.mxu0 0.0
        %2766 = vmatpush1.xpose.msra.mxu0 0.0
        %2767 = vmatprep.subr.mxu0 0.0
        %2768 = vmatpush1.xpose.msra.mxu0 0.0
        %2769 = vmatprep.subr.mxu0 0.0
        %2770 = vmatpush1.xpose.msra.mxu0 0.0
        %2771 = vmatprep.subr.mxu0 0.0
        %2772 = vmatpush1.xpose.msra.mxu0 0.0
        %2773 = vmatprep.subr.mxu0 0.0
        %2774 = vmatpush1.xpose.msra.mxu0 0.0
        %2775 = vmatprep.subr.mxu0 0.0
        %2776 = vmatpush1.xpose.msra.mxu0 0.0
        %2777 = vmatprep.subr.mxu0 0.0
        %2778 = vmatpush1.xpose.msra.mxu0 0.0
        %2779 = vmatprep.subr.mxu0 0.0
        %2780 = vmatpush1.xpose.msra.mxu0 %v2747
        %2781 = vmatprep.subr.mxu0 0.0
        %2782 = vmatpush2.xpose.msra.mxu0 0.0
        %2783 = vmatprep.subr.mxu0 0.0
        %2784 = vmatpush2.xpose.msra.mxu0 0.0
        %2785 = vmatprep.subr.mxu0 0.0
        %2786 = vmatpush2.xpose.msra.mxu0 0.0
        %2787 = vmatprep.subr.mxu0 0.0
        %2788 = vmatpush2.xpose.msra.mxu0 0.0
        %2789 = vmatprep.subr.mxu0 0.0
        %2790 = vmatpush2.xpose.msra.mxu0 0.0
        %2791 = vmatprep.subr.mxu0 0.0
        %2792 = vmatpush2.xpose.msra.mxu0 0.0
        %2793 = vmatprep.subr.mxu0 0.0
        %2794 = vmatpush2.xpose.msra.mxu0 0.0
        %2795 = vmatprep.subr.mxu0 0.0
        %2796 = vmatpush2.xpose.msra.mxu0 0.0
        %2797 = vmatprep.subr.mxu0 0.0
        %2798 = vmatpush2.xpose.msra.mxu0 0.0
        %2799 = vmatprep.subr.mxu0 0.0
        %2800 = vmatpush2.xpose.msra.mxu0 0.0
        %2801 = vmatprep.subr.mxu0 0.0
        %2802 = vmatpush2.xpose.msra.mxu0 0.0
        %2803 = vmatprep.subr.mxu0 0.0
        %2804 = vmatpush2.xpose.msra.mxu0 0.0
        %2805 = vmatprep.subr.mxu0 0.0
        %2806 = vmatpush2.xpose.msra.mxu0 0.0
        %2807 = vmatprep.subr.mxu0 0.0
        %2808 = vmatpush2.xpose.msra.mxu0 0.0
        %2809 = vmatprep.subr.mxu0 0.0
        %2810 = vmatpush2.xpose.msra.mxu0 0.0
        %2811 = vmatprep.subr.mxu0 0.0
        %2812 = vmatpush2.xpose.msra.mxu0 0.0
        %2813 = vmatprep.mubr.f32.mxu0 0.0
        %2814 = vmatmul.mubr.f32.gmra.mxu0 %v2745
        %v2815 = vpop.f32.mrf.mxu0
        %v2816 = vadd.f32 0.0, %v2815
        %v2817 = vpop.f32.mrf.mxu0
        %2818 = vdwg.mxu0
        %v2819 = vmul.f32 %v2816, 0.125
        %v2820 = vadd.f32 %v2819, %v2248
        %v2821 = vsel %vm1231, %v2820, -inf
        %2822 = vmax.xlane.f32.xlu0 %v2821
        %v2823 = vpop.xlane.xlu0 %2822
        %v2824 = vsub.f32 %v2820, %v2823
        %v2825 = vmul.f32 %v2824, 1.442695
        %v2826 = vpow.pop %v2825
        %v2827 = vsel %vm1231, %v2826, 0.0
        %2828 = vadd.xlane.f32.xlu0 %v2827
        %v2829 = vpop.xlane.xlu0 %2828
        %v2830 = vrcp.pop %v2829
        %2832 = vrot.lane.b32.xlu0 %v2246, 64
        %v2833 = vpop.permute.xlu0 %2832
        %v2836 = vsel %vm1231, %v2826, 0
        %2838 = vmatprep.subr.mxu0 0.0
        %2839 = vmatpush1.msra.mxu0 0.0
        %2840 = vmatprep.subr.mxu0 0.0
        %2841 = vmatpush1.msra.mxu0 0.0
        %2842 = vmatprep.subr.mxu0 0.0
        %2843 = vmatpush1.msra.mxu0 0.0
        %2844 = vmatprep.subr.mxu0 0.0
        %2845 = vmatpush1.msra.mxu0 0.0
        %2846 = vmatprep.subr.mxu0 0.0
        %2847 = vmatpush1.msra.mxu0 0.0
        %2848 = vmatprep.subr.mxu0 0.0
        %2849 = vmatpush1.msra.mxu0 0.0
        %2850 = vmatprep.subr.mxu0 0.0
        %2851 = vmatpush1.msra.mxu0 0.0
        %2852 = vmatprep.subr.mxu0 0.0
        %2853 = vmatpush1.msra.mxu0 0.0
        %2854 = vmatprep.subr.mxu0 0.0
        %2855 = vmatpush1.msra.mxu0 0.0
        %2856 = vmatprep.subr.mxu0 0.0
        %2857 = vmatpush1.msra.mxu0 0.0
        %2858 = vmatprep.subr.mxu0 0.0
        %2859 = vmatpush1.msra.mxu0 0.0
        %2860 = vmatprep.subr.mxu0 0.0
        %2861 = vmatpush1.msra.mxu0 0.0
        %2862 = vmatprep.subr.mxu0 0.0
        %2863 = vmatpush1.msra.mxu0 0.0
        %2864 = vmatprep.subr.mxu0 0.0
        %2865 = vmatpush1.msra.mxu0 0.0
        %2866 = vmatprep.subr.mxu0 0.0
        %2867 = vmatpush1.msra.mxu0 0.0
        %2868 = vmatprep.subr.mxu0 0.0
        %2869 = vmatpush1.msra.mxu0 %v2833
        %2870 = vmatprep.subr.mxu0 0.0
        %2871 = vmatpush2.msra.mxu0 0.0
        %2872 = vmatprep.subr.mxu0 0.0
        %2873 = vmatpush2.msra.mxu0 0.0
        %2874 = vmatprep.subr.mxu0 0.0
        %2875 = vmatpush2.msra.mxu0 0.0
        %2876 = vmatprep.subr.mxu0 0.0
        %2877 = vmatpush2.msra.mxu0 0.0
        %2878 = vmatprep.subr.mxu0 0.0
        %2879 = vmatpush2.msra.mxu0 0.0
        %2880 = vmatprep.subr.mxu0 0.0
        %2881 = vmatpush2.msra.mxu0 0.0
        %2882 = vmatprep.subr.mxu0 0.0
        %2883 = vmatpush2.msra.mxu0 0.0
        %2884 = vmatprep.subr.mxu0 0.0
        %2885 = vmatpush2.msra.mxu0 0.0
        %2886 = vmatprep.subr.mxu0 0.0
        %2887 = vmatpush2.msra.mxu0 0.0
        %2888 = vmatprep.subr.mxu0 0.0
        %2889 = vmatpush2.msra.mxu0 0.0
        %2890 = vmatprep.subr.mxu0 0.0
        %2891 = vmatpush2.msra.mxu0 0.0
        %2892 = vmatprep.subr.mxu0 0.0
        %2893 = vmatpush2.msra.mxu0 0.0
        %2894 = vmatprep.subr.mxu0 0.0
        %2895 = vmatpush2.msra.mxu0 0.0
        %2896 = vmatprep.subr.mxu0 0.0
        %2897 = vmatpush2.msra.mxu0 0.0
        %2898 = vmatprep.subr.mxu0 0.0
        %2899 = vmatpush2.msra.mxu0 0.0
        %2900 = vmatprep.subr.mxu0 0.0
        %2901 = vmatpush2.msra.mxu0 0.0
        %2902 = vmatprep.mubr.f32.mxu0 0.0
        %2903 = vmatmul.mubr.f32.gmra.mxu0 %v2836
        %v2904 = vpop.f32.mrf.mxu0
        %v2905 = vadd.f32 0.0, %v2904
        %v2906 = vpop.f32.mrf.mxu0
        %2907 = vdwg.mxu0
        %v2908 = vmul.f32 %v2905, %v2830
        %2910 = vrot.lane.b32.xlu0 %v2578, 64
        %v2911 = vpop.permute.xlu0 %2910
        %2914 = vrot.lane.b32.xlu0 %v2908, 64
        %v2915 = vpop.permute.xlu0 %2914
        %v2917 = vsel %vm1152, %v2410, %v2911
        %v2918 = vsel %vm1152, %v2740, %v2915
        %v2919 = vld [vmem:[%s709] sm:$0xff]
        %v2920 = vld [vmem:[%s709 + $0x8] sm:$0xff]
        %v2921 = vld [vmem:[%s709 + $0x10] sm:$0xff]
        %v2922 = vld [vmem:[%s709 + $0x18] sm:$0xff]
        %v2923 = vld [vmem:[%s709 + $0x20] sm:$0xff]
        %v2924 = vld [vmem:[%s709 + $0x28] sm:$0xff]
        %v2925 = vld [vmem:[%s709 + $0x30] sm:$0xff]
        %v2926 = vld [vmem:[%s709 + $0x38] sm:$0xff]
        %v2927 = vld [vmem:[%s709 + $0x40] sm:$0xff]
        %v2928 = vld [vmem:[%s709 + $0x48] sm:$0xff]
        %v2929 = vld [vmem:[%s709 + $0x50] sm:$0xff]
        %v2930 = vld [vmem:[%s709 + $0x58] sm:$0xff]
        %v2931 = vld [vmem:[%s709 + $0x60] sm:$0xff]
        %v2932 = vld [vmem:[%s709 + $0x68] sm:$0xff]
        %v2933 = vld [vmem:[%s709 + $0x70] sm:$0xff]
        %v2934 = vld [vmem:[%s709 + $0x78] sm:$0xff]
        %v2935 = vld [vmem:[%s709 + $0x80] sm:$0xff]
        %v2936 = vld [vmem:[%s709 + $0x88] sm:$0xff]
        %v2937 = vld [vmem:[%s709 + $0x90] sm:$0xff]
        %v2938 = vld [vmem:[%s709 + $0x98] sm:$0xff]
        %v2939 = vld [vmem:[%s709 + $0xa0] sm:$0xff]
        %v2940 = vld [vmem:[%s709 + $0xa8] sm:$0xff]
        %v2941 = vld [vmem:[%s709 + $0xb0] sm:$0xff]
        %v2942 = vld [vmem:[%s709 + $0xb8] sm:$0xff]
        %v2943 = vld [vmem:[%s709 + $0xc0] sm:$0xff]
        %v2944 = vld [vmem:[%s709 + $0xc8] sm:$0xff]
        %v2945 = vld [vmem:[%s709 + $0xd0] sm:$0xff]
        %v2946 = vld [vmem:[%s709 + $0xd8] sm:$0xff]
        %v2947 = vld [vmem:[%s709 + $0xe0] sm:$0xff]
        %v2948 = vld [vmem:[%s709 + $0xe8] sm:$0xff]
        %v2949 = vld [vmem:[%s709 + $0xf0] sm:$0xff]
        %v2950 = vld [vmem:[%s709 + $0xf8] sm:$0xff]
        %2951 = vmatprep.subr.mxu0 0.0
        %2952 = vmatpush1.msra.mxu0 %v2934
        %2953 = vmatprep.subr.mxu0 0.0
        %2954 = vmatpush1.msra.mxu0 %v2933
        %2955 = vmatprep.subr.mxu0 0.0
        %2956 = vmatpush1.msra.mxu0 %v2932
        %2957 = vmatprep.subr.mxu0 0.0
        %2958 = vmatpush1.msra.mxu0 %v2931
        %2959 = vmatprep.subr.mxu0 0.0
        %2960 = vmatpush1.msra.mxu0 %v2930
        %2961 = vmatprep.subr.mxu0 0.0
        %2962 = vmatpush1.msra.mxu0 %v2929
        %2963 = vmatprep.subr.mxu0 0.0
        %2964 = vmatpush1.msra.mxu0 %v2928
        %2965 = vmatprep.subr.mxu0 0.0
        %2966 = vmatpush1.msra.mxu0 %v2927
        %2967 = vmatprep.subr.mxu0 0.0
        %2968 = vmatpush1.msra.mxu0 %v2926
        %2969 = vmatprep.subr.mxu0 0.0
        %2970 = vmatpush1.msra.mxu0 %v2925
        %2971 = vmatprep.subr.mxu0 0.0
        %2972 = vmatpush1.msra.mxu0 %v2924
        %2973 = vmatprep.subr.mxu0 0.0
        %2974 = vmatpush1.msra.mxu0 %v2923
        %2975 = vmatprep.subr.mxu0 0.0
        %2976 = vmatpush1.msra.mxu0 %v2922
        %2977 = vmatprep.subr.mxu0 0.0
        %2978 = vmatpush1.msra.mxu0 %v2921
        %2979 = vmatprep.subr.mxu0 0.0
        %2980 = vmatpush1.msra.mxu0 %v2920
        %2981 = vmatprep.subr.mxu0 0.0
        %2982 = vmatpush1.msra.mxu0 %v2919
        %2983 = vmatprep.subr.mxu0 0.0
        %2984 = vmatpush2.msra.mxu0 %v2950
        %2985 = vmatprep.subr.mxu0 0.0
        %2986 = vmatpush2.msra.mxu0 %v2949
        %2987 = vmatprep.subr.mxu0 0.0
        %2988 = vmatpush2.msra.mxu0 %v2948
        %2989 = vmatprep.subr.mxu0 0.0
        %2990 = vmatpush2.msra.mxu0 %v2947
        %2991 = vmatprep.subr.mxu0 0.0
        %2992 = vmatpush2.msra.mxu0 %v2946
        %2993 = vmatprep.subr.mxu0 0.0
        %2994 = vmatpush2.msra.mxu0 %v2945
        %2995 = vmatprep.subr.mxu0 0.0
        %2996 = vmatpush2.msra.mxu0 %v2944
        %2997 = vmatprep.subr.mxu0 0.0
        %2998 = vmatpush2.msra.mxu0 %v2943
        %2999 = vmatprep.subr.mxu0 0.0
        %3000 = vmatpush2.msra.mxu0 %v2942
        %3001 = vmatprep.subr.mxu0 0.0
        %3002 = vmatpush2.msra.mxu0 %v2941
        %3003 = vmatprep.subr.mxu0 0.0
        %3004 = vmatpush2.msra.mxu0 %v2940
        %3005 = vmatprep.subr.mxu0 0.0
        %3006 = vmatpush2.msra.mxu0 %v2939
        %3007 = vmatprep.subr.mxu0 0.0
        %3008 = vmatpush2.msra.mxu0 %v2938
        %3009 = vmatprep.subr.mxu0 0.0
        %3010 = vmatpush2.msra.mxu0 %v2937
        %3011 = vmatprep.subr.mxu0 0.0
        %3012 = vmatpush2.msra.mxu0 %v2936
        %3013 = vmatprep.subr.mxu0 0.0
        %3014 = vmatpush2.msra.mxu0 %v2935
        %3015 = vmatprep.mubr.f32.mxu0 %v2918
        %3016 = vmatmul.mubr.f32.gmra.mxu0 %v2917
        %v3017 = vpop.f32.mrf.mxu0
        %v3018 = vadd.f32 0.0, %v3017
        %v3019 = vpop.f32.mrf.mxu0
        %3020 = vdwg.mxu0
        %v3021 = vadd.f32 %v1938, %v3018
        %3022 = vadd.xlane.f32.xlu0 %v3021
        %v3023 = vpop.xlane.xlu0 %3022
        %v3024 = vmul.f32 %v3023, %v1929
        %v3025 = vsub.f32 %v3021, %v3024
        %v3026 = vmul.f32 %v3025, %v3025
        %3027 = vadd.xlane.f32.xlu0 %v3026
        %v3028 = vpop.xlane.xlu0 %3027
        %v3029 = vmul.f32 %v3028, %v1929
        %v3030 = vadd.f32 %v3029, 1e-05
        %v3031 = vrsqrt.pop %v3030
        %v3032 = vmul.f32 %v3025, %v3031
        %v3033 = vld [vmem:[%s718] sm:$0xff]
        %v3034 = vld [vmem:[%s718 + $0x8] sm:$0xff]
        %v3035 = vld [vmem:[%s718 + $0x10] sm:$0xff]
        %v3036 = vld [vmem:[%s718 + $0x18] sm:$0xff]
        %v3037 = vld [vmem:[%s718 + $0x20] sm:$0xff]
        %v3038 = vld [vmem:[%s718 + $0x28] sm:$0xff]
        %v3039 = vld [vmem:[%s718 + $0x30] sm:$0xff]
        %v3040 = vld [vmem:[%s718 + $0x38] sm:$0xff]
        %v3041 = vld [vmem:[%s718 + $0x40] sm:$0xff]
        %v3042 = vld [vmem:[%s718 + $0x48] sm:$0xff]
        %v3043 = vld [vmem:[%s718 + $0x50] sm:$0xff]
        %v3044 = vld [vmem:[%s718 + $0x58] sm:$0xff]
        %v3045 = vld [vmem:[%s718 + $0x60] sm:$0xff]
        %v3046 = vld [vmem:[%s718 + $0x68] sm:$0xff]
        %v3047 = vld [vmem:[%s718 + $0x70] sm:$0xff]
        %v3048 = vld [vmem:[%s718 + $0x78] sm:$0xff]
        %v3049 = vld [vmem:[%s718 + $0x80] sm:$0xff]
        %v3050 = vld [vmem:[%s718 + $0x88] sm:$0xff]
        %v3051 = vld [vmem:[%s718 + $0x90] sm:$0xff]
        %v3052 = vld [vmem:[%s718 + $0x98] sm:$0xff]
        %v3053 = vld [vmem:[%s718 + $0xa0] sm:$0xff]
        %v3054 = vld [vmem:[%s718 + $0xa8] sm:$0xff]
        %v3055 = vld [vmem:[%s718 + $0xb0] sm:$0xff]
        %v3056 = vld [vmem:[%s718 + $0xb8] sm:$0xff]
        %v3057 = vld [vmem:[%s718 + $0xc0] sm:$0xff]
        %v3058 = vld [vmem:[%s718 + $0xc8] sm:$0xff]
        %v3059 = vld [vmem:[%s718 + $0xd0] sm:$0xff]
        %v3060 = vld [vmem:[%s718 + $0xd8] sm:$0xff]
        %v3061 = vld [vmem:[%s718 + $0xe0] sm:$0xff]
        %v3062 = vld [vmem:[%s718 + $0xe8] sm:$0xff]
        %v3063 = vld [vmem:[%s718 + $0xf0] sm:$0xff]
        %v3064 = vld [vmem:[%s718 + $0xf8] sm:$0xff]
        %v3065 = vld [vmem:[%s718 + $0x100] sm:$0xff]
        %v3066 = vld [vmem:[%s718 + $0x108] sm:$0xff]
        %v3067 = vld [vmem:[%s718 + $0x110] sm:$0xff]
        %v3068 = vld [vmem:[%s718 + $0x118] sm:$0xff]
        %v3069 = vld [vmem:[%s718 + $0x120] sm:$0xff]
        %v3070 = vld [vmem:[%s718 + $0x128] sm:$0xff]
        %v3071 = vld [vmem:[%s718 + $0x130] sm:$0xff]
        %v3072 = vld [vmem:[%s718 + $0x138] sm:$0xff]
        %v3073 = vld [vmem:[%s718 + $0x140] sm:$0xff]
        %v3074 = vld [vmem:[%s718 + $0x148] sm:$0xff]
        %v3075 = vld [vmem:[%s718 + $0x150] sm:$0xff]
        %v3076 = vld [vmem:[%s718 + $0x158] sm:$0xff]
        %v3077 = vld [vmem:[%s718 + $0x160] sm:$0xff]
        %v3078 = vld [vmem:[%s718 + $0x168] sm:$0xff]
        %v3079 = vld [vmem:[%s718 + $0x170] sm:$0xff]
        %v3080 = vld [vmem:[%s718 + $0x178] sm:$0xff]
        %v3081 = vld [vmem:[%s718 + $0x180] sm:$0xff]
        %v3082 = vld [vmem:[%s718 + $0x188] sm:$0xff]
        %v3083 = vld [vmem:[%s718 + $0x190] sm:$0xff]
        %v3084 = vld [vmem:[%s718 + $0x198] sm:$0xff]
        %v3085 = vld [vmem:[%s718 + $0x1a0] sm:$0xff]
        %v3086 = vld [vmem:[%s718 + $0x1a8] sm:$0xff]
        %v3087 = vld [vmem:[%s718 + $0x1b0] sm:$0xff]
        %v3088 = vld [vmem:[%s718 + $0x1b8] sm:$0xff]
        %v3089 = vld [vmem:[%s718 + $0x1c0] sm:$0xff]
        %v3090 = vld [vmem:[%s718 + $0x1c8] sm:$0xff]
        %v3091 = vld [vmem:[%s718 + $0x1d0] sm:$0xff]
        %v3092 = vld [vmem:[%s718 + $0x1d8] sm:$0xff]
        %v3093 = vld [vmem:[%s718 + $0x1e0] sm:$0xff]
        %v3094 = vld [vmem:[%s718 + $0x1e8] sm:$0xff]
        %v3095 = vld [vmem:[%s718 + $0x1f0] sm:$0xff]
        %v3096 = vld [vmem:[%s718 + $0x1f8] sm:$0xff]
        %v3097 = vld [vmem:[%s718 + $0x200] sm:$0xff]
        %v3098 = vld [vmem:[%s718 + $0x208] sm:$0xff]
        %v3099 = vld [vmem:[%s718 + $0x210] sm:$0xff]
        %v3100 = vld [vmem:[%s718 + $0x218] sm:$0xff]
        %v3101 = vld [vmem:[%s718 + $0x220] sm:$0xff]
        %v3102 = vld [vmem:[%s718 + $0x228] sm:$0xff]
        %v3103 = vld [vmem:[%s718 + $0x230] sm:$0xff]
        %v3104 = vld [vmem:[%s718 + $0x238] sm:$0xff]
        %v3105 = vld [vmem:[%s718 + $0x240] sm:$0xff]
        %v3106 = vld [vmem:[%s718 + $0x248] sm:$0xff]
        %v3107 = vld [vmem:[%s718 + $0x250] sm:$0xff]
        %v3108 = vld [vmem:[%s718 + $0x258] sm:$0xff]
        %v3109 = vld [vmem:[%s718 + $0x260] sm:$0xff]
        %v3110 = vld [vmem:[%s718 + $0x268] sm:$0xff]
        %v3111 = vld [vmem:[%s718 + $0x270] sm:$0xff]
        %v3112 = vld [vmem:[%s718 + $0x278] sm:$0xff]
        %v3113 = vld [vmem:[%s718 + $0x280] sm:$0xff]
        %v3114 = vld [vmem:[%s718 + $0x288] sm:$0xff]
        %v3115 = vld [vmem:[%s718 + $0x290] sm:$0xff]
        %v3116 = vld [vmem:[%s718 + $0x298] sm:$0xff]
        %v3117 = vld [vmem:[%s718 + $0x2a0] sm:$0xff]
        %v3118 = vld [vmem:[%s718 + $0x2a8] sm:$0xff]
        %v3119 = vld [vmem:[%s718 + $0x2b0] sm:$0xff]
        %v3120 = vld [vmem:[%s718 + $0x2b8] sm:$0xff]
        %v3121 = vld [vmem:[%s718 + $0x2c0] sm:$0xff]
        %v3122 = vld [vmem:[%s718 + $0x2c8] sm:$0xff]
        %v3123 = vld [vmem:[%s718 + $0x2d0] sm:$0xff]
        %v3124 = vld [vmem:[%s718 + $0x2d8] sm:$0xff]
        %v3125 = vld [vmem:[%s718 + $0x2e0] sm:$0xff]
        %v3126 = vld [vmem:[%s718 + $0x2e8] sm:$0xff]
        %v3127 = vld [vmem:[%s718 + $0x2f0] sm:$0xff]
        %v3128 = vld [vmem:[%s718 + $0x2f8] sm:$0xff]
        %v3129 = vld [vmem:[%s718 + $0x300] sm:$0xff]
        %v3130 = vld [vmem:[%s718 + $0x308] sm:$0xff]
        %v3131 = vld [vmem:[%s718 + $0x310] sm:$0xff]
        %v3132 = vld [vmem:[%s718 + $0x318] sm:$0xff]
        %v3133 = vld [vmem:[%s718 + $0x320] sm:$0xff]
        %v3134 = vld [vmem:[%s718 + $0x328] sm:$0xff]
        %v3135 = vld [vmem:[%s718 + $0x330] sm:$0xff]
        %v3136 = vld [vmem:[%s718 + $0x338] sm:$0xff]
        %v3137 = vld [vmem:[%s718 + $0x340] sm:$0xff]
        %v3138 = vld [vmem:[%s718 + $0x348] sm:$0xff]
        %v3139 = vld [vmem:[%s718 + $0x350] sm:$0xff]
        %v3140 = vld [vmem:[%s718 + $0x358] sm:$0xff]
        %v3141 = vld [vmem:[%s718 + $0x360] sm:$0xff]
        %v3142 = vld [vmem:[%s718 + $0x368] sm:$0xff]
        %v3143 = vld [vmem:[%s718 + $0x370] sm:$0xff]
        %v3144 = vld [vmem:[%s718 + $0x378] sm:$0xff]
        %v3145 = vld [vmem:[%s718 + $0x380] sm:$0xff]
        %v3146 = vld [vmem:[%s718 + $0x388] sm:$0xff]
        %v3147 = vld [vmem:[%s718 + $0x390] sm:$0xff]
        %v3148 = vld [vmem:[%s718 + $0x398] sm:$0xff]
        %v3149 = vld [vmem:[%s718 + $0x3a0] sm:$0xff]
        %v3150 = vld [vmem:[%s718 + $0x3a8] sm:$0xff]
        %v3151 = vld [vmem:[%s718 + $0x3b0] sm:$0xff]
        %v3152 = vld [vmem:[%s718 + $0x3b8] sm:$0xff]
        %v3153 = vld [vmem:[%s718 + $0x3c0] sm:$0xff]
        %v3154 = vld [vmem:[%s718 + $0x3c8] sm:$0xff]
        %v3155 = vld [vmem:[%s718 + $0x3d0] sm:$0xff]
        %v3156 = vld [vmem:[%s718 + $0x3d8] sm:$0xff]
        %v3157 = vld [vmem:[%s718 + $0x3e0] sm:$0xff]
        %v3158 = vld [vmem:[%s718 + $0x3e8] sm:$0xff]
        %v3159 = vld [vmem:[%s718 + $0x3f0] sm:$0xff]
        %v3160 = vld [vmem:[%s718 + $0x3f8] sm:$0xff]
        %v3161 = vld [vmem:[%s718 + $0x400] sm:$0xff]
        %v3162 = vld [vmem:[%s718 + $0x408] sm:$0xff]
        %v3163 = vld [vmem:[%s718 + $0x410] sm:$0xff]
        %v3164 = vld [vmem:[%s718 + $0x418] sm:$0xff]
        %v3165 = vld [vmem:[%s718 + $0x420] sm:$0xff]
        %v3166 = vld [vmem:[%s718 + $0x428] sm:$0xff]
        %v3167 = vld [vmem:[%s718 + $0x430] sm:$0xff]
        %v3168 = vld [vmem:[%s718 + $0x438] sm:$0xff]
        %v3169 = vld [vmem:[%s718 + $0x440] sm:$0xff]
        %v3170 = vld [vmem:[%s718 + $0x448] sm:$0xff]
        %v3171 = vld [vmem:[%s718 + $0x450] sm:$0xff]
        %v3172 = vld [vmem:[%s718 + $0x458] sm:$0xff]
        %v3173 = vld [vmem:[%s718 + $0x460] sm:$0xff]
        %v3174 = vld [vmem:[%s718 + $0x468] sm:$0xff]
        %v3175 = vld [vmem:[%s718 + $0x470] sm:$0xff]
        %v3176 = vld [vmem:[%s718 + $0x478] sm:$0xff]
        %v3177 = vld [vmem:[%s718 + $0x480] sm:$0xff]
        %v3178 = vld [vmem:[%s718 + $0x488] sm:$0xff]
        %v3179 = vld [vmem:[%s718 + $0x490] sm:$0xff]
        %v3180 = vld [vmem:[%s718 + $0x498] sm:$0xff]
        %v3181 = vld [vmem:[%s718 + $0x4a0] sm:$0xff]
        %v3182 = vld [vmem:[%s718 + $0x4a8] sm:$0xff]
        %v3183 = vld [vmem:[%s718 + $0x4b0] sm:$0xff]
        %v3184 = vld [vmem:[%s718 + $0x4b8] sm:$0xff]
        %v3185 = vld [vmem:[%s718 + $0x4c0] sm:$0xff]
        %v3186 = vld [vmem:[%s718 + $0x4c8] sm:$0xff]
        %v3187 = vld [vmem:[%s718 + $0x4d0] sm:$0xff]
        %v3188 = vld [vmem:[%s718 + $0x4d8] sm:$0xff]
        %v3189 = vld [vmem:[%s718 + $0x4e0] sm:$0xff]
        %v3190 = vld [vmem:[%s718 + $0x4e8] sm:$0xff]
        %v3191 = vld [vmem:[%s718 + $0x4f0] sm:$0xff]
        %v3192 = vld [vmem:[%s718 + $0x4f8] sm:$0xff]
        %v3193 = vld [vmem:[%s718 + $0x500] sm:$0xff]
        %v3194 = vld [vmem:[%s718 + $0x508] sm:$0xff]
        %v3195 = vld [vmem:[%s718 + $0x510] sm:$0xff]
        %v3196 = vld [vmem:[%s718 + $0x518] sm:$0xff]
        %v3197 = vld [vmem:[%s718 + $0x520] sm:$0xff]
        %v3198 = vld [vmem:[%s718 + $0x528] sm:$0xff]
        %v3199 = vld [vmem:[%s718 + $0x530] sm:$0xff]
        %v3200 = vld [vmem:[%s718 + $0x538] sm:$0xff]
        %v3201 = vld [vmem:[%s718 + $0x540] sm:$0xff]
        %v3202 = vld [vmem:[%s718 + $0x548] sm:$0xff]
        %v3203 = vld [vmem:[%s718 + $0x550] sm:$0xff]
        %v3204 = vld [vmem:[%s718 + $0x558] sm:$0xff]
        %v3205 = vld [vmem:[%s718 + $0x560] sm:$0xff]
        %v3206 = vld [vmem:[%s718 + $0x568] sm:$0xff]
        %v3207 = vld [vmem:[%s718 + $0x570] sm:$0xff]
        %v3208 = vld [vmem:[%s718 + $0x578] sm:$0xff]
        %v3209 = vld [vmem:[%s718 + $0x580] sm:$0xff]
        %v3210 = vld [vmem:[%s718 + $0x588] sm:$0xff]
        %v3211 = vld [vmem:[%s718 + $0x590] sm:$0xff]
        %v3212 = vld [vmem:[%s718 + $0x598] sm:$0xff]
        %v3213 = vld [vmem:[%s718 + $0x5a0] sm:$0xff]
        %v3214 = vld [vmem:[%s718 + $0x5a8] sm:$0xff]
        %v3215 = vld [vmem:[%s718 + $0x5b0] sm:$0xff]
        %v3216 = vld [vmem:[%s718 + $0x5b8] sm:$0xff]
        %v3217 = vld [vmem:[%s718 + $0x5c0] sm:$0xff]
        %v3218 = vld [vmem:[%s718 + $0x5c8] sm:$0xff]
        %v3219 = vld [vmem:[%s718 + $0x5d0] sm:$0xff]
        %v3220 = vld [vmem:[%s718 + $0x5d8] sm:$0xff]
        %v3221 = vld [vmem:[%s718 + $0x5e0] sm:$0xff]
        %v3222 = vld [vmem:[%s718 + $0x5e8] sm:$0xff]
        %v3223 = vld [vmem:[%s718 + $0x5f0] sm:$0xff]
        %v3224 = vld [vmem:[%s718 + $0x5f8] sm:$0xff]
        %v3225 = vld [vmem:[%s718 + $0x600] sm:$0xff]
        %v3226 = vld [vmem:[%s718 + $0x608] sm:$0xff]
        %v3227 = vld [vmem:[%s718 + $0x610] sm:$0xff]
        %v3228 = vld [vmem:[%s718 + $0x618] sm:$0xff]
        %v3229 = vld [vmem:[%s718 + $0x620] sm:$0xff]
        %v3230 = vld [vmem:[%s718 + $0x628] sm:$0xff]
        %v3231 = vld [vmem:[%s718 + $0x630] sm:$0xff]
        %v3232 = vld [vmem:[%s718 + $0x638] sm:$0xff]
        %v3233 = vld [vmem:[%s718 + $0x640] sm:$0xff]
        %v3234 = vld [vmem:[%s718 + $0x648] sm:$0xff]
        %v3235 = vld [vmem:[%s718 + $0x650] sm:$0xff]
        %v3236 = vld [vmem:[%s718 + $0x658] sm:$0xff]
        %v3237 = vld [vmem:[%s718 + $0x660] sm:$0xff]
        %v3238 = vld [vmem:[%s718 + $0x668] sm:$0xff]
        %v3239 = vld [vmem:[%s718 + $0x670] sm:$0xff]
        %v3240 = vld [vmem:[%s718 + $0x678] sm:$0xff]
        %v3241 = vld [vmem:[%s718 + $0x680] sm:$0xff]
        %v3242 = vld [vmem:[%s718 + $0x688] sm:$0xff]
        %v3243 = vld [vmem:[%s718 + $0x690] sm:$0xff]
        %v3244 = vld [vmem:[%s718 + $0x698] sm:$0xff]
        %v3245 = vld [vmem:[%s718 + $0x6a0] sm:$0xff]
        %v3246 = vld [vmem:[%s718 + $0x6a8] sm:$0xff]
        %v3247 = vld [vmem:[%s718 + $0x6b0] sm:$0xff]
        %v3248 = vld [vmem:[%s718 + $0x6b8] sm:$0xff]
        %v3249 = vld [vmem:[%s718 + $0x6c0] sm:$0xff]
        %v3250 = vld [vmem:[%s718 + $0x6c8] sm:$0xff]
        %v3251 = vld [vmem:[%s718 + $0x6d0] sm:$0xff]
        %v3252 = vld [vmem:[%s718 + $0x6d8] sm:$0xff]
        %v3253 = vld [vmem:[%s718 + $0x6e0] sm:$0xff]
        %v3254 = vld [vmem:[%s718 + $0x6e8] sm:$0xff]
        %v3255 = vld [vmem:[%s718 + $0x6f0] sm:$0xff]
        %v3256 = vld [vmem:[%s718 + $0x6f8] sm:$0xff]
        %v3257 = vld [vmem:[%s718 + $0x700] sm:$0xff]
        %v3258 = vld [vmem:[%s718 + $0x708] sm:$0xff]
        %v3259 = vld [vmem:[%s718 + $0x710] sm:$0xff]
        %v3260 = vld [vmem:[%s718 + $0x718] sm:$0xff]
        %v3261 = vld [vmem:[%s718 + $0x720] sm:$0xff]
        %v3262 = vld [vmem:[%s718 + $0x728] sm:$0xff]
        %v3263 = vld [vmem:[%s718 + $0x730] sm:$0xff]
        %v3264 = vld [vmem:[%s718 + $0x738] sm:$0xff]
        %v3265 = vld [vmem:[%s718 + $0x740] sm:$0xff]
        %v3266 = vld [vmem:[%s718 + $0x748] sm:$0xff]
        %v3267 = vld [vmem:[%s718 + $0x750] sm:$0xff]
        %v3268 = vld [vmem:[%s718 + $0x758] sm:$0xff]
        %v3269 = vld [vmem:[%s718 + $0x760] sm:$0xff]
        %v3270 = vld [vmem:[%s718 + $0x768] sm:$0xff]
        %v3271 = vld [vmem:[%s718 + $0x770] sm:$0xff]
        %v3272 = vld [vmem:[%s718 + $0x778] sm:$0xff]
        %v3273 = vld [vmem:[%s718 + $0x780] sm:$0xff]
        %v3274 = vld [vmem:[%s718 + $0x788] sm:$0xff]
        %v3275 = vld [vmem:[%s718 + $0x790] sm:$0xff]
        %v3276 = vld [vmem:[%s718 + $0x798] sm:$0xff]
        %v3277 = vld [vmem:[%s718 + $0x7a0] sm:$0xff]
        %v3278 = vld [vmem:[%s718 + $0x7a8] sm:$0xff]
        %v3279 = vld [vmem:[%s718 + $0x7b0] sm:$0xff]
        %v3280 = vld [vmem:[%s718 + $0x7b8] sm:$0xff]
        %v3281 = vld [vmem:[%s718 + $0x7c0] sm:$0xff]
        %v3282 = vld [vmem:[%s718 + $0x7c8] sm:$0xff]
        %v3283 = vld [vmem:[%s718 + $0x7d0] sm:$0xff]
        %v3284 = vld [vmem:[%s718 + $0x7d8] sm:$0xff]
        %v3285 = vld [vmem:[%s718 + $0x7e0] sm:$0xff]
        %v3286 = vld [vmem:[%s718 + $0x7e8] sm:$0xff]
        %v3287 = vld [vmem:[%s718 + $0x7f0] sm:$0xff]
        %v3288 = vld [vmem:[%s718 + $0x7f8] sm:$0xff]
        %3289 = vmatprep.subr.mxu0 %v3274
        %3290 = vmatpush1.msra.mxu0 %v3273
        %3291 = vmatprep.subr.mxu0 %v3258
        %3292 = vmatpush1.msra.mxu0 %v3257
        %3293 = vmatprep.subr.mxu0 %v3242
        %3294 = vmatpush1.msra.mxu0 %v3241
        %3295 = vmatprep.subr.mxu0 %v3226
        %3296 = vmatpush1.msra.mxu0 %v3225
        %3297 = vmatprep.subr.mxu0 %v3210
        %3298 = vmatpush1.msra.mxu0 %v3209
        %3299 = vmatprep.subr.mxu0 %v3194
        %3300 = vmatpush1.msra.mxu0 %v3193
        %3301 = vmatprep.subr.mxu0 %v3178
        %3302 = vmatpush1.msra.mxu0 %v3177
        %3303 = vmatprep.subr.mxu0 %v3162
        %3304 = vmatpush1.msra.mxu0 %v3161
        %3305 = vmatprep.subr.mxu0 %v3146
        %3306 = vmatpush1.msra.mxu0 %v3145
        %3307 = vmatprep.subr.mxu0 %v3130
        %3308 = vmatpush1.msra.mxu0 %v3129
        %3309 = vmatprep.subr.mxu0 %v3114
        %3310 = vmatpush1.msra.mxu0 %v3113
        %3311 = vmatprep.subr.mxu0 %v3098
        %3312 = vmatpush1.msra.mxu0 %v3097
        %3313 = vmatprep.subr.mxu0 %v3082
        %3314 = vmatpush1.msra.mxu0 %v3081
        %3315 = vmatprep.subr.mxu0 %v3066
        %3316 = vmatpush1.msra.mxu0 %v3065
        %3317 = vmatprep.subr.mxu0 %v3050
        %3318 = vmatpush1.msra.mxu0 %v3049
        %3319 = vmatprep.subr.mxu0 %v3034
        %3320 = vmatpush1.msra.mxu0 %v3033
        %3321 = vmatprep.subr.mxu0 0.0
        %3322 = vmatpush2.msra.mxu0 0.0
        %3323 = vmatprep.subr.mxu0 0.0
        %3324 = vmatpush2.msra.mxu0 0.0
        %3325 = vmatprep.subr.mxu0 0.0
        %3326 = vmatpush2.msra.mxu0 0.0
        %3327 = vmatprep.subr.mxu0 0.0
        %3328 = vmatpush2.msra.mxu0 0.0
        %3329 = vmatprep.subr.mxu0 0.0
        %3330 = vmatpush2.msra.mxu0 0.0
        %3331 = vmatprep.subr.mxu0 0.0
        %3332 = vmatpush2.msra.mxu0 0.0
        %3333 = vmatprep.subr.mxu0 0.0
        %3334 = vmatpush2.msra.mxu0 0.0
        %3335 = vmatprep.subr.mxu0 0.0
        %3336 = vmatpush2.msra.mxu0 0.0
        %3337 = vmatprep.subr.mxu0 0.0
        %3338 = vmatpush2.msra.mxu0 0.0
        %3339 = vmatprep.subr.mxu0 0.0
        %3340 = vmatpush2.msra.mxu0 0.0
        %3341 = vmatprep.subr.mxu0 0.0
        %3342 = vmatpush2.msra.mxu0 0.0
        %3343 = vmatprep.subr.mxu0 0.0
        %3344 = vmatpush2.msra.mxu0 0.0
        %3345 = vmatprep.subr.mxu0 0.0
        %3346 = vmatpush2.msra.mxu0 0.0
        %3347 = vmatprep.subr.mxu0 0.0
        %3348 = vmatpush2.msra.mxu0 0.0
        %3349 = vmatprep.subr.mxu0 0.0
        %3350 = vmatpush2.msra.mxu0 0.0
        %3351 = vmatprep.subr.mxu0 0.0
        %3352 = vmatpush2.msra.mxu0 0.0
        %3353 = vmatprep.mubr.f32.mxu0 0.0
        %3354 = vmatmul.mubr.f32.gmra.mxu0 %v3032
        %v3355 = vpop.f32.mrf.mxu0
        %v3356 = vadd.f32 0.0, %v3355
        %v3357 = vpop.f32.mrf.mxu0
        %v3358 = vadd.f32 0.0, %v3357
        %3359 = vdwg.mxu0
        %3360 = vmatprep.subr.mxu0 %v3276
        %3361 = vmatpush1.msra.mxu0 %v3275
        %3362 = vmatprep.subr.mxu0 %v3260
        %3363 = vmatpush1.msra.mxu0 %v3259
        %3364 = vmatprep.subr.mxu0 %v3244
        %3365 = vmatpush1.msra.mxu0 %v3243
        %3366 = vmatprep.subr.mxu0 %v3228
        %3367 = vmatpush1.msra.mxu0 %v3227
        %3368 = vmatprep.subr.mxu0 %v3212
        %3369 = vmatpush1.msra.mxu0 %v3211
        %3370 = vmatprep.subr.mxu0 %v3196
        %3371 = vmatpush1.msra.mxu0 %v3195
        %3372 = vmatprep.subr.mxu0 %v3180
        %3373 = vmatpush1.msra.mxu0 %v3179
        %3374 = vmatprep.subr.mxu0 %v3164
        %3375 = vmatpush1.msra.mxu0 %v3163
        %3376 = vmatprep.subr.mxu0 %v3148
        %3377 = vmatpush1.msra.mxu0 %v3147
        %3378 = vmatprep.subr.mxu0 %v3132
        %3379 = vmatpush1.msra.mxu0 %v3131
        %3380 = vmatprep.subr.mxu0 %v3116
        %3381 = vmatpush1.msra.mxu0 %v3115
        %3382 = vmatprep.subr.mxu0 %v3100
        %3383 = vmatpush1.msra.mxu0 %v3099
        %3384 = vmatprep.subr.mxu0 %v3084
        %3385 = vmatpush1.msra.mxu0 %v3083
        %3386 = vmatprep.subr.mxu0 %v3068
        %3387 = vmatpush1.msra.mxu0 %v3067
        %3388 = vmatprep.subr.mxu0 %v3052
        %3389 = vmatpush1.msra.mxu0 %v3051
        %3390 = vmatprep.subr.mxu0 %v3036
        %3391 = vmatpush1.msra.mxu0 %v3035
        %3392 = vmatprep.subr.mxu0 0.0
        %3393 = vmatpush2.msra.mxu0 0.0
        %3394 = vmatprep.subr.mxu0 0.0
        %3395 = vmatpush2.msra.mxu0 0.0
        %3396 = vmatprep.subr.mxu0 0.0
        %3397 = vmatpush2.msra.mxu0 0.0
        %3398 = vmatprep.subr.mxu0 0.0
        %3399 = vmatpush2.msra.mxu0 0.0
        %3400 = vmatprep.subr.mxu0 0.0
        %3401 = vmatpush2.msra.mxu0 0.0
        %3402 = vmatprep.subr.mxu0 0.0
        %3403 = vmatpush2.msra.mxu0 0.0
        %3404 = vmatprep.subr.mxu0 0.0
        %3405 = vmatpush2.msra.mxu0 0.0
        %3406 = vmatprep.subr.mxu0 0.0
        %3407 = vmatpush2.msra.mxu0 0.0
        %3408 = vmatprep.subr.mxu0 0.0
        %3409 = vmatpush2.msra.mxu0 0.0
        %3410 = vmatprep.subr.mxu0 0.0
        %3411 = vmatpush2.msra.mxu0 0.0
        %3412 = vmatprep.subr.mxu0 0.0
        %3413 = vmatpush2.msra.mxu0 0.0
        %3414 = vmatprep.subr.mxu0 0.0
        %3415 = vmatpush2.msra.mxu0 0.0
        %3416 = vmatprep.subr.mxu0 0.0
        %3417 = vmatpush2.msra.mxu0 0.0
        %3418 = vmatprep.subr.mxu0 0.0
        %3419 = vmatpush2.msra.mxu0 0.0
        %3420 = vmatprep.subr.mxu0 0.0
        %3421 = vmatpush2.msra.mxu0 0.0
        %3422 = vmatprep.subr.mxu0 0.0
        %3423 = vmatpush2.msra.mxu0 0.0
        %3424 = vmatprep.mubr.f32.mxu0 0.0
        %3425 = vmatmul.mubr.f32.gmra.mxu0 %v3032
        %v3426 = vpop.f32.mrf.mxu0
        %v3427 = vadd.f32 0.0, %v3426
        %v3428 = vpop.f32.mrf.mxu0
        %v3429 = vadd.f32 0.0, %v3428
        %3430 = vdwg.mxu0
        %3431 = vmatprep.subr.mxu0 %v3278
        %3432 = vmatpush1.msra.mxu0 %v3277
        %3433 = vmatprep.subr.mxu0 %v3262
        %3434 = vmatpush1.msra.mxu0 %v3261
        %3435 = vmatprep.subr.mxu0 %v3246
        %3436 = vmatpush1.msra.mxu0 %v3245
        %3437 = vmatprep.subr.mxu0 %v3230
        %3438 = vmatpush1.msra.mxu0 %v3229
        %3439 = vmatprep.subr.mxu0 %v3214
        %3440 = vmatpush1.msra.mxu0 %v3213
        %3441 = vmatprep.subr.mxu0 %v3198
        %3442 = vmatpush1.msra.mxu0 %v3197
        %3443 = vmatprep.subr.mxu0 %v3182
        %3444 = vmatpush1.msra.mxu0 %v3181
        %3445 = vmatprep.subr.mxu0 %v3166
        %3446 = vmatpush1.msra.mxu0 %v3165
        %3447 = vmatprep.subr.mxu0 %v3150
        %3448 = vmatpush1.msra.mxu0 %v3149
        %3449 = vmatprep.subr.mxu0 %v3134
        %3450 = vmatpush1.msra.mxu0 %v3133
        %3451 = vmatprep.subr.mxu0 %v3118
        %3452 = vmatpush1.msra.mxu0 %v3117
        %3453 = vmatprep.subr.mxu0 %v3102
        %3454 = vmatpush1.msra.mxu0 %v3101
        %3455 = vmatprep.subr.mxu0 %v3086
        %3456 = vmatpush1.msra.mxu0 %v3085
        %3457 = vmatprep.subr.mxu0 %v3070
        %3458 = vmatpush1.msra.mxu0 %v3069
        %3459 = vmatprep.subr.mxu0 %v3054
        %3460 = vmatpush1.msra.mxu0 %v3053
        %3461 = vmatprep.subr.mxu0 %v3038
        %3462 = vmatpush1.msra.mxu0 %v3037
        %3463 = vmatprep.subr.mxu0 0.0
        %3464 = vmatpush2.msra.mxu0 0.0
        %3465 = vmatprep.subr.mxu0 0.0
        %3466 = vmatpush2.msra.mxu0 0.0
        %3467 = vmatprep.subr.mxu0 0.0
        %3468 = vmatpush2.msra.mxu0 0.0
        %3469 = vmatprep.subr.mxu0 0.0
        %3470 = vmatpush2.msra.mxu0 0.0
        %3471 = vmatprep.subr.mxu0 0.0
        %3472 = vmatpush2.msra.mxu0 0.0
        %3473 = vmatprep.subr.mxu0 0.0
        %3474 = vmatpush2.msra.mxu0 0.0
        %3475 = vmatprep.subr.mxu0 0.0
        %3476 = vmatpush2.msra.mxu0 0.0
        %3477 = vmatprep.subr.mxu0 0.0
        %3478 = vmatpush2.msra.mxu0 0.0
        %3479 = vmatprep.subr.mxu0 0.0
        %3480 = vmatpush2.msra.mxu0 0.0
        %3481 = vmatprep.subr.mxu0 0.0
        %3482 = vmatpush2.msra.mxu0 0.0
        %3483 = vmatprep.subr.mxu0 0.0
        %3484 = vmatpush2.msra.mxu0 0.0
        %3485 = vmatprep.subr.mxu0 0.0
        %3486 = vmatpush2.msra.mxu0 0.0
        %3487 = vmatprep.subr.mxu0 0.0
        %3488 = vmatpush2.msra.mxu0 0.0
        %3489 = vmatprep.subr.mxu0 0.0
        %3490 = vmatpush2.msra.mxu0 0.0
        %3491 = vmatprep.subr.mxu0 0.0
        %3492 = vmatpush2.msra.mxu0 0.0
        %3493 = vmatprep.subr.mxu0 0.0
        %3494 = vmatpush2.msra.mxu0 0.0
        %3495 = vmatprep.mubr.f32.mxu0 0.0
        %3496 = vmatmul.mubr.f32.gmra.mxu0 %v3032
        %v3497 = vpop.f32.mrf.mxu0
        %v3498 = vadd.f32 0.0, %v3497
        %v3499 = vpop.f32.mrf.mxu0
        %v3500 = vadd.f32 0.0, %v3499
        %3501 = vdwg.mxu0
        %3502 = vmatprep.subr.mxu0 %v3280
        %3503 = vmatpush1.msra.mxu0 %v3279
        %3504 = vmatprep.subr.mxu0 %v3264
        %3505 = vmatpush1.msra.mxu0 %v3263
        %3506 = vmatprep.subr.mxu0 %v3248
        %3507 = vmatpush1.msra.mxu0 %v3247
        %3508 = vmatprep.subr.mxu0 %v3232
        %3509 = vmatpush1.msra.mxu0 %v3231
        %3510 = vmatprep.subr.mxu0 %v3216
        %3511 = vmatpush1.msra.mxu0 %v3215
        %3512 = vmatprep.subr.mxu0 %v3200
        %3513 = vmatpush1.msra.mxu0 %v3199
        %3514 = vmatprep.subr.mxu0 %v3184
        %3515 = vmatpush1.msra.mxu0 %v3183
        %3516 = vmatprep.subr.mxu0 %v3168
        %3517 = vmatpush1.msra.mxu0 %v3167
        %3518 = vmatprep.subr.mxu0 %v3152
        %3519 = vmatpush1.msra.mxu0 %v3151
        %3520 = vmatprep.subr.mxu0 %v3136
        %3521 = vmatpush1.msra.mxu0 %v3135
        %3522 = vmatprep.subr.mxu0 %v3120
        %3523 = vmatpush1.msra.mxu0 %v3119
        %3524 = vmatprep.subr.mxu0 %v3104
        %3525 = vmatpush1.msra.mxu0 %v3103
        %3526 = vmatprep.subr.mxu0 %v3088
        %3527 = vmatpush1.msra.mxu0 %v3087
        %3528 = vmatprep.subr.mxu0 %v3072
        %3529 = vmatpush1.msra.mxu0 %v3071
        %3530 = vmatprep.subr.mxu0 %v3056
        %3531 = vmatpush1.msra.mxu0 %v3055
        %3532 = vmatprep.subr.mxu0 %v3040
        %3533 = vmatpush1.msra.mxu0 %v3039
        %3534 = vmatprep.subr.mxu0 0.0
        %3535 = vmatpush2.msra.mxu0 0.0
        %3536 = vmatprep.subr.mxu0 0.0
        %3537 = vmatpush2.msra.mxu0 0.0
        %3538 = vmatprep.subr.mxu0 0.0
        %3539 = vmatpush2.msra.mxu0 0.0
        %3540 = vmatprep.subr.mxu0 0.0
        %3541 = vmatpush2.msra.mxu0 0.0
        %3542 = vmatprep.subr.mxu0 0.0
        %3543 = vmatpush2.msra.mxu0 0.0
        %3544 = vmatprep.subr.mxu0 0.0
        %3545 = vmatpush2.msra.mxu0 0.0
        %3546 = vmatprep.subr.mxu0 0.0
        %3547 = vmatpush2.msra.mxu0 0.0
        %3548 = vmatprep.subr.mxu0 0.0
        %3549 = vmatpush2.msra.mxu0 0.0
        %3550 = vmatprep.subr.mxu0 0.0
        %3551 = vmatpush2.msra.mxu0 0.0
        %3552 = vmatprep.subr.mxu0 0.0
        %3553 = vmatpush2.msra.mxu0 0.0
        %3554 = vmatprep.subr.mxu0 0.0
        %3555 = vmatpush2.msra.mxu0 0.0
        %3556 = vmatprep.subr.mxu0 0.0
        %3557 = vmatpush2.msra.mxu0 0.0
        %3558 = vmatprep.subr.mxu0 0.0
        %3559 = vmatpush2.msra.mxu0 0.0
        %3560 = vmatprep.subr.mxu0 0.0
        %3561 = vmatpush2.msra.mxu0 0.0
        %3562 = vmatprep.subr.mxu0 0.0
        %3563 = vmatpush2.msra.mxu0 0.0
        %3564 = vmatprep.subr.mxu0 0.0
        %3565 = vmatpush2.msra.mxu0 0.0
        %3566 = vmatprep.mubr.f32.mxu0 0.0
        %3567 = vmatmul.mubr.f32.gmra.mxu0 %v3032
        %v3568 = vpop.f32.mrf.mxu0
        %v3569 = vadd.f32 0.0, %v3568
        %v3570 = vpop.f32.mrf.mxu0
        %v3571 = vadd.f32 0.0, %v3570
        %3572 = vdwg.mxu0
        %3573 = vmatprep.subr.mxu0 %v3282
        %3574 = vmatpush1.msra.mxu0 %v3281
        %3575 = vmatprep.subr.mxu0 %v3266
        %3576 = vmatpush1.msra.mxu0 %v3265
        %3577 = vmatprep.subr.mxu0 %v3250
        %3578 = vmatpush1.msra.mxu0 %v3249
        %3579 = vmatprep.subr.mxu0 %v3234
        %3580 = vmatpush1.msra.mxu0 %v3233
        %3581 = vmatprep.subr.mxu0 %v3218
        %3582 = vmatpush1.msra.mxu0 %v3217
        %3583 = vmatprep.subr.mxu0 %v3202
        %3584 = vmatpush1.msra.mxu0 %v3201
        %3585 = vmatprep.subr.mxu0 %v3186
        %3586 = vmatpush1.msra.mxu0 %v3185
        %3587 = vmatprep.subr.mxu0 %v3170
        %3588 = vmatpush1.msra.mxu0 %v3169
        %3589 = vmatprep.subr.mxu0 %v3154
        %3590 = vmatpush1.msra.mxu0 %v3153
        %3591 = vmatprep.subr.mxu0 %v3138
        %3592 = vmatpush1.msra.mxu0 %v3137
        %3593 = vmatprep.subr.mxu0 %v3122
        %3594 = vmatpush1.msra.mxu0 %v3121
        %3595 = vmatprep.subr.mxu0 %v3106
        %3596 = vmatpush1.msra.mxu0 %v3105
        %3597 = vmatprep.subr.mxu0 %v3090
        %3598 = vmatpush1.msra.mxu0 %v3089
        %3599 = vmatprep.subr.mxu0 %v3074
        %3600 = vmatpush1.msra.mxu0 %v3073
        %3601 = vmatprep.subr.mxu0 %v3058
        %3602 = vmatpush1.msra.mxu0 %v3057
        %3603 = vmatprep.subr.mxu0 %v3042
        %3604 = vmatpush1.msra.mxu0 %v3041
        %3605 = vmatprep.subr.mxu0 0.0
        %3606 = vmatpush2.msra.mxu0 0.0
        %3607 = vmatprep.subr.mxu0 0.0
        %3608 = vmatpush2.msra.mxu0 0.0
        %3609 = vmatprep.subr.mxu0 0.0
        %3610 = vmatpush2.msra.mxu0 0.0
        %3611 = vmatprep.subr.mxu0 0.0
        %3612 = vmatpush2.msra.mxu0 0.0
        %3613 = vmatprep.subr.mxu0 0.0
        %3614 = vmatpush2.msra.mxu0 0.0
        %3615 = vmatprep.subr.mxu0 0.0
        %3616 = vmatpush2.msra.mxu0 0.0
        %3617 = vmatprep.subr.mxu0 0.0
        %3618 = vmatpush2.msra.mxu0 0.0
        %3619 = vmatprep.subr.mxu0 0.0
        %3620 = vmatpush2.msra.mxu0 0.0
        %3621 = vmatprep.subr.mxu0 0.0
        %3622 = vmatpush2.msra.mxu0 0.0
        %3623 = vmatprep.subr.mxu0 0.0
        %3624 = vmatpush2.msra.mxu0 0.0
        %3625 = vmatprep.subr.mxu0 0.0
        %3626 = vmatpush2.msra.mxu0 0.0
        %3627 = vmatprep.subr.mxu0 0.0
        %3628 = vmatpush2.msra.mxu0 0.0
        %3629 = vmatprep.subr.mxu0 0.0
        %3630 = vmatpush2.msra.mxu0 0.0
        %3631 = vmatprep.subr.mxu0 0.0
        %3632 = vmatpush2.msra.mxu0 0.0
        %3633 = vmatprep.subr.mxu0 0.0
        %3634 = vmatpush2.msra.mxu0 0.0
        %3635 = vmatprep.subr.mxu0 0.0
        %3636 = vmatpush2.msra.mxu0 0.0
        %3637 = vmatprep.mubr.f32.mxu0 0.0
        %3638 = vmatmul.mubr.f32.gmra.mxu0 %v3032
        %v3639 = vpop.f32.mrf.mxu0
        %v3640 = vadd.f32 0.0, %v3639
        %v3641 = vpop.f32.mrf.mxu0
        %v3642 = vadd.f32 0.0, %v3641
        %3643 = vdwg.mxu0
        %3644 = vmatprep.subr.mxu0 %v3284
        %3645 = vmatpush1.msra.mxu0 %v3283
        %3646 = vmatprep.subr.mxu0 %v3268
        %3647 = vmatpush1.msra.mxu0 %v3267
        %3648 = vmatprep.subr.mxu0 %v3252
        %3649 = vmatpush1.msra.mxu0 %v3251
        %3650 = vmatprep.subr.mxu0 %v3236
        %3651 = vmatpush1.msra.mxu0 %v3235
        %3652 = vmatprep.subr.mxu0 %v3220
        %3653 = vmatpush1.msra.mxu0 %v3219
        %3654 = vmatprep.subr.mxu0 %v3204
        %3655 = vmatpush1.msra.mxu0 %v3203
        %3656 = vmatprep.subr.mxu0 %v3188
        %3657 = vmatpush1.msra.mxu0 %v3187
        %3658 = vmatprep.subr.mxu0 %v3172
        %3659 = vmatpush1.msra.mxu0 %v3171
        %3660 = vmatprep.subr.mxu0 %v3156
        %3661 = vmatpush1.msra.mxu0 %v3155
        %3662 = vmatprep.subr.mxu0 %v3140
        %3663 = vmatpush1.msra.mxu0 %v3139
        %3664 = vmatprep.subr.mxu0 %v3124
        %3665 = vmatpush1.msra.mxu0 %v3123
        %3666 = vmatprep.subr.mxu0 %v3108
        %3667 = vmatpush1.msra.mxu0 %v3107
        %3668 = vmatprep.subr.mxu0 %v3092
        %3669 = vmatpush1.msra.mxu0 %v3091
        %3670 = vmatprep.subr.mxu0 %v3076
        %3671 = vmatpush1.msra.mxu0 %v3075
        %3672 = vmatprep.subr.mxu0 %v3060
        %3673 = vmatpush1.msra.mxu0 %v3059
        %3674 = vmatprep.subr.mxu0 %v3044
        %3675 = vmatpush1.msra.mxu0 %v3043
        %3676 = vmatprep.subr.mxu0 0.0
        %3677 = vmatpush2.msra.mxu0 0.0
        %3678 = vmatprep.subr.mxu0 0.0
        %3679 = vmatpush2.msra.mxu0 0.0
        %3680 = vmatprep.subr.mxu0 0.0
        %3681 = vmatpush2.msra.mxu0 0.0
        %3682 = vmatprep.subr.mxu0 0.0
        %3683 = vmatpush2.msra.mxu0 0.0
        %3684 = vmatprep.subr.mxu0 0.0
        %3685 = vmatpush2.msra.mxu0 0.0
        %3686 = vmatprep.subr.mxu0 0.0
        %3687 = vmatpush2.msra.mxu0 0.0
        %3688 = vmatprep.subr.mxu0 0.0
        %3689 = vmatpush2.msra.mxu0 0.0
        %3690 = vmatprep.subr.mxu0 0.0
        %3691 = vmatpush2.msra.mxu0 0.0
        %3692 = vmatprep.subr.mxu0 0.0
        %3693 = vmatpush2.msra.mxu0 0.0
        %3694 = vmatprep.subr.mxu0 0.0
        %3695 = vmatpush2.msra.mxu0 0.0
        %3696 = vmatprep.subr.mxu0 0.0
        %3697 = vmatpush2.msra.mxu0 0.0
        %3698 = vmatprep.subr.mxu0 0.0
        %3699 = vmatpush2.msra.mxu0 0.0
        %3700 = vmatprep.subr.mxu0 0.0
        %3701 = vmatpush2.msra.mxu0 0.0
        %3702 = vmatprep.subr.mxu0 0.0
        %3703 = vmatpush2.msra.mxu0 0.0
        %3704 = vmatprep.subr.mxu0 0.0
        %3705 = vmatpush2.msra.mxu0 0.0
        %3706 = vmatprep.subr.mxu0 0.0
        %3707 = vmatpush2.msra.mxu0 0.0
        %3708 = vmatprep.mubr.f32.mxu0 0.0
        %3709 = vmatmul.mubr.f32.gmra.mxu0 %v3032
        %v3710 = vpop.f32.mrf.mxu0
        %v3711 = vadd.f32 0.0, %v3710
        %v3712 = vpop.f32.mrf.mxu0
        %v3713 = vadd.f32 0.0, %v3712
        %3714 = vdwg.mxu0
        %3715 = vmatprep.subr.mxu0 %v3286
        %3716 = vmatpush1.msra.mxu0 %v3285
        %3717 = vmatprep.subr.mxu0 %v3270
        %3718 = vmatpush1.msra.mxu0 %v3269
        %3719 = vmatprep.subr.mxu0 %v3254
        %3720 = vmatpush1.msra.mxu0 %v3253
        %3721 = vmatprep.subr.mxu0 %v3238
        %3722 = vmatpush1.msra.mxu0 %v3237
        %3723 = vmatprep.subr.mxu0 %v3222
        %3724 = vmatpush1.msra.mxu0 %v3221
        %3725 = vmatprep.subr.mxu0 %v3206
        %3726 = vmatpush1.msra.mxu0 %v3205
        %3727 = vmatprep.subr.mxu0 %v3190
        %3728 = vmatpush1.msra.mxu0 %v3189
        %3729 = vmatprep.subr.mxu0 %v3174
        %3730 = vmatpush1.msra.mxu0 %v3173
        %3731 = vmatprep.subr.mxu0 %v3158
        %3732 = vmatpush1.msra.mxu0 %v3157
        %3733 = vmatprep.subr.mxu0 %v3142
        %3734 = vmatpush1.msra.mxu0 %v3141
        %3735 = vmatprep.subr.mxu0 %v3126
        %3736 = vmatpush1.msra.mxu0 %v3125
        %3737 = vmatprep.subr.mxu0 %v3110
        %3738 = vmatpush1.msra.mxu0 %v3109
        %3739 = vmatprep.subr.mxu0 %v3094
        %3740 = vmatpush1.msra.mxu0 %v3093
        %3741 = vmatprep.subr.mxu0 %v3078
        %3742 = vmatpush1.msra.mxu0 %v3077
        %3743 = vmatprep.subr.mxu0 %v3062
        %3744 = vmatpush1.msra.mxu0 %v3061
        %3745 = vmatprep.subr.mxu0 %v3046
        %3746 = vmatpush1.msra.mxu0 %v3045
        %3747 = vmatprep.subr.mxu0 0.0
        %3748 = vmatpush2.msra.mxu0 0.0
        %3749 = vmatprep.subr.mxu0 0.0
        %3750 = vmatpush2.msra.mxu0 0.0
        %3751 = vmatprep.subr.mxu0 0.0
        %3752 = vmatpush2.msra.mxu0 0.0
        %3753 = vmatprep.subr.mxu0 0.0
        %3754 = vmatpush2.msra.mxu0 0.0
        %3755 = vmatprep.subr.mxu0 0.0
        %3756 = vmatpush2.msra.mxu0 0.0
        %3757 = vmatprep.subr.mxu0 0.0
        %3758 = vmatpush2.msra.mxu0 0.0
        %3759 = vmatprep.subr.mxu0 0.0
        %3760 = vmatpush2.msra.mxu0 0.0
        %3761 = vmatprep.subr.mxu0 0.0
        %3762 = vmatpush2.msra.mxu0 0.0
        %3763 = vmatprep.subr.mxu0 0.0
        %3764 = vmatpush2.msra.mxu0 0.0
        %3765 = vmatprep.subr.mxu0 0.0
        %3766 = vmatpush2.msra.mxu0 0.0
        %3767 = vmatprep.subr.mxu0 0.0
        %3768 = vmatpush2.msra.mxu0 0.0
        %3769 = vmatprep.subr.mxu0 0.0
        %3770 = vmatpush2.msra.mxu0 0.0
        %3771 = vmatprep.subr.mxu0 0.0
        %3772 = vmatpush2.msra.mxu0 0.0
        %3773 = vmatprep.subr.mxu0 0.0
        %3774 = vmatpush2.msra.mxu0 0.0
        %3775 = vmatprep.subr.mxu0 0.0
        %3776 = vmatpush2.msra.mxu0 0.0
        %3777 = vmatprep.subr.mxu0 0.0
        %3778 = vmatpush2.msra.mxu0 0.0
        %3779 = vmatprep.mubr.f32.mxu0 0.0
        %3780 = vmatmul.mubr.f32.gmra.mxu0 %v3032
        %v3781 = vpop.f32.mrf.mxu0
        %v3782 = vadd.f32 0.0, %v3781
        %v3783 = vpop.f32.mrf.mxu0
        %v3784 = vadd.f32 0.0, %v3783
        %3785 = vdwg.mxu0
        %3786 = vmatprep.subr.mxu0 %v3288
        %3787 = vmatpush1.msra.mxu0 %v3287
        %3788 = vmatprep.subr.mxu0 %v3272
        %3789 = vmatpush1.msra.mxu0 %v3271
        %3790 = vmatprep.subr.mxu0 %v3256
        %3791 = vmatpush1.msra.mxu0 %v3255
        %3792 = vmatprep.subr.mxu0 %v3240
        %3793 = vmatpush1.msra.mxu0 %v3239
        %3794 = vmatprep.subr.mxu0 %v3224
        %3795 = vmatpush1.msra.mxu0 %v3223
        %3796 = vmatprep.subr.mxu0 %v3208
        %3797 = vmatpush1.msra.mxu0 %v3207
        %3798 = vmatprep.subr.mxu0 %v3192
        %3799 = vmatpush1.msra.mxu0 %v3191
        %3800 = vmatprep.subr.mxu0 %v3176
        %3801 = vmatpush1.msra.mxu0 %v3175
        %3802 = vmatprep.subr.mxu0 %v3160
        %3803 = vmatpush1.msra.mxu0 %v3159
        %3804 = vmatprep.subr.mxu0 %v3144
        %3805 = vmatpush1.msra.mxu0 %v3143
        %3806 = vmatprep.subr.mxu0 %v3128
        %3807 = vmatpush1.msra.mxu0 %v3127
        %3808 = vmatprep.subr.mxu0 %v3112
        %3809 = vmatpush1.msra.mxu0 %v3111
        %3810 = vmatprep.subr.mxu0 %v3096
        %3811 = vmatpush1.msra.mxu0 %v3095
        %3812 = vmatprep.subr.mxu0 %v3080
        %3813 = vmatpush1.msra.mxu0 %v3079
        %3814 = vmatprep.subr.mxu0 %v3064
        %3815 = vmatpush1.msra.mxu0 %v3063
        %3816 = vmatprep.subr.mxu0 %v3048
        %3817 = vmatpush1.msra.mxu0 %v3047
        %3818 = vmatprep.subr.mxu0 0.0
        %3819 = vmatpush2.msra.mxu0 0.0
        %3820 = vmatprep.subr.mxu0 0.0
        %3821 = vmatpush2.msra.mxu0 0.0
        %3822 = vmatprep.subr.mxu0 0.0
        %3823 = vmatpush2.msra.mxu0 0.0
        %3824 = vmatprep.subr.mxu0 0.0
        %3825 = vmatpush2.msra.mxu0 0.0
        %3826 = vmatprep.subr.mxu0 0.0
        %3827 = vmatpush2.msra.mxu0 0.0
        %3828 = vmatprep.subr.mxu0 0.0
        %3829 = vmatpush2.msra.mxu0 0.0
        %3830 = vmatprep.subr.mxu0 0.0
        %3831 = vmatpush2.msra.mxu0 0.0
        %3832 = vmatprep.subr.mxu0 0.0
        %3833 = vmatpush2.msra.mxu0 0.0
        %3834 = vmatprep.subr.mxu0 0.0
        %3835 = vmatpush2.msra.mxu0 0.0
        %3836 = vmatprep.subr.mxu0 0.0
        %3837 = vmatpush2.msra.mxu0 0.0
        %3838 = vmatprep.subr.mxu0 0.0
        %3839 = vmatpush2.msra.mxu0 0.0
        %3840 = vmatprep.subr.mxu0 0.0
        %3841 = vmatpush2.msra.mxu0 0.0
        %3842 = vmatprep.subr.mxu0 0.0
        %3843 = vmatpush2.msra.mxu0 0.0
        %3844 = vmatprep.subr.mxu0 0.0
        %3845 = vmatpush2.msra.mxu0 0.0
        %3846 = vmatprep.subr.mxu0 0.0
        %3847 = vmatpush2.msra.mxu0 0.0
        %3848 = vmatprep.subr.mxu0 0.0
        %3849 = vmatpush2.msra.mxu0 0.0
        %3850 = vmatprep.mubr.f32.mxu0 0.0
        %3851 = vmatmul.mubr.f32.gmra.mxu0 %v3032
        %v3852 = vpop.f32.mrf.mxu0
        %v3853 = vadd.f32 0.0, %v3852
        %v3854 = vpop.f32.mrf.mxu0
        %v3855 = vadd.f32 0.0, %v3854
        %3856 = vdwg.mxu0
        %v3857 = vmax.f32 %v3356, 0.0
        %v3858 = vmax.f32 %v3358, 0.0
        %v3859 = vmax.f32 %v3427, 0.0
        %v3860 = vmax.f32 %v3429, 0.0
        %v3861 = vmax.f32 %v3498, 0.0
        %v3862 = vmax.f32 %v3500, 0.0
        %v3863 = vmax.f32 %v3569, 0.0
        %v3864 = vmax.f32 %v3571, 0.0
        %v3865 = vmax.f32 %v3640, 0.0
        %v3866 = vmax.f32 %v3642, 0.0
        %v3867 = vmax.f32 %v3711, 0.0
        %v3868 = vmax.f32 %v3713, 0.0
        %v3869 = vmax.f32 %v3782, 0.0
        %v3870 = vmax.f32 %v3784, 0.0
        %v3871 = vmax.f32 %v3853, 0.0
        %v3872 = vmax.f32 %v3855, 0.0
        %v3873 = vld [vmem:[%s727] sm:$0xff]
        %v3874 = vld [vmem:[%s727 + $0x8] sm:$0xff]
        %v3875 = vld [vmem:[%s727 + $0x10] sm:$0xff]
        %v3876 = vld [vmem:[%s727 + $0x18] sm:$0xff]
        %v3877 = vld [vmem:[%s727 + $0x20] sm:$0xff]
        %v3878 = vld [vmem:[%s727 + $0x28] sm:$0xff]
        %v3879 = vld [vmem:[%s727 + $0x30] sm:$0xff]
        %v3880 = vld [vmem:[%s727 + $0x38] sm:$0xff]
        %v3881 = vld [vmem:[%s727 + $0x40] sm:$0xff]
        %v3882 = vld [vmem:[%s727 + $0x48] sm:$0xff]
        %v3883 = vld [vmem:[%s727 + $0x50] sm:$0xff]
        %v3884 = vld [vmem:[%s727 + $0x58] sm:$0xff]
        %v3885 = vld [vmem:[%s727 + $0x60] sm:$0xff]
        %v3886 = vld [vmem:[%s727 + $0x68] sm:$0xff]
        %v3887 = vld [vmem:[%s727 + $0x70] sm:$0xff]
        %v3888 = vld [vmem:[%s727 + $0x78] sm:$0xff]
        %v3889 = vld [vmem:[%s727 + $0x80] sm:$0xff]
        %v3890 = vld [vmem:[%s727 + $0x88] sm:$0xff]
        %v3891 = vld [vmem:[%s727 + $0x90] sm:$0xff]
        %v3892 = vld [vmem:[%s727 + $0x98] sm:$0xff]
        %v3893 = vld [vmem:[%s727 + $0xa0] sm:$0xff]
        %v3894 = vld [vmem:[%s727 + $0xa8] sm:$0xff]
        %v3895 = vld [vmem:[%s727 + $0xb0] sm:$0xff]
        %v3896 = vld [vmem:[%s727 + $0xb8] sm:$0xff]
        %v3897 = vld [vmem:[%s727 + $0xc0] sm:$0xff]
        %v3898 = vld [vmem:[%s727 + $0xc8] sm:$0xff]
        %v3899 = vld [vmem:[%s727 + $0xd0] sm:$0xff]
        %v3900 = vld [vmem:[%s727 + $0xd8] sm:$0xff]
        %v3901 = vld [vmem:[%s727 + $0xe0] sm:$0xff]
        %v3902 = vld [vmem:[%s727 + $0xe8] sm:$0xff]
        %v3903 = vld [vmem:[%s727 + $0xf0] sm:$0xff]
        %v3904 = vld [vmem:[%s727 + $0xf8] sm:$0xff]
        %v3905 = vld [vmem:[%s727 + $0x100] sm:$0xff]
        %v3906 = vld [vmem:[%s727 + $0x108] sm:$0xff]
        %v3907 = vld [vmem:[%s727 + $0x110] sm:$0xff]
        %v3908 = vld [vmem:[%s727 + $0x118] sm:$0xff]
        %v3909 = vld [vmem:[%s727 + $0x120] sm:$0xff]
        %v3910 = vld [vmem:[%s727 + $0x128] sm:$0xff]
        %v3911 = vld [vmem:[%s727 + $0x130] sm:$0xff]
        %v3912 = vld [vmem:[%s727 + $0x138] sm:$0xff]
        %v3913 = vld [vmem:[%s727 + $0x140] sm:$0xff]
        %v3914 = vld [vmem:[%s727 + $0x148] sm:$0xff]
        %v3915 = vld [vmem:[%s727 + $0x150] sm:$0xff]
        %v3916 = vld [vmem:[%s727 + $0x158] sm:$0xff]
        %v3917 = vld [vmem:[%s727 + $0x160] sm:$0xff]
        %v3918 = vld [vmem:[%s727 + $0x168] sm:$0xff]
        %v3919 = vld [vmem:[%s727 + $0x170] sm:$0xff]
        %v3920 = vld [vmem:[%s727 + $0x178] sm:$0xff]
        %v3921 = vld [vmem:[%s727 + $0x180] sm:$0xff]
        %v3922 = vld [vmem:[%s727 + $0x188] sm:$0xff]
        %v3923 = vld [vmem:[%s727 + $0x190] sm:$0xff]
        %v3924 = vld [vmem:[%s727 + $0x198] sm:$0xff]
        %v3925 = vld [vmem:[%s727 + $0x1a0] sm:$0xff]
        %v3926 = vld [vmem:[%s727 + $0x1a8] sm:$0xff]
        %v3927 = vld [vmem:[%s727 + $0x1b0] sm:$0xff]
        %v3928 = vld [vmem:[%s727 + $0x1b8] sm:$0xff]
        %v3929 = vld [vmem:[%s727 + $0x1c0] sm:$0xff]
        %v3930 = vld [vmem:[%s727 + $0x1c8] sm:$0xff]
        %v3931 = vld [vmem:[%s727 + $0x1d0] sm:$0xff]
        %v3932 = vld [vmem:[%s727 + $0x1d8] sm:$0xff]
        %v3933 = vld [vmem:[%s727 + $0x1e0] sm:$0xff]
        %v3934 = vld [vmem:[%s727 + $0x1e8] sm:$0xff]
        %v3935 = vld [vmem:[%s727 + $0x1f0] sm:$0xff]
        %v3936 = vld [vmem:[%s727 + $0x1f8] sm:$0xff]
        %v3937 = vld [vmem:[%s727 + $0x200] sm:$0xff]
        %v3938 = vld [vmem:[%s727 + $0x208] sm:$0xff]
        %v3939 = vld [vmem:[%s727 + $0x210] sm:$0xff]
        %v3940 = vld [vmem:[%s727 + $0x218] sm:$0xff]
        %v3941 = vld [vmem:[%s727 + $0x220] sm:$0xff]
        %v3942 = vld [vmem:[%s727 + $0x228] sm:$0xff]
        %v3943 = vld [vmem:[%s727 + $0x230] sm:$0xff]
        %v3944 = vld [vmem:[%s727 + $0x238] sm:$0xff]
        %v3945 = vld [vmem:[%s727 + $0x240] sm:$0xff]
        %v3946 = vld [vmem:[%s727 + $0x248] sm:$0xff]
        %v3947 = vld [vmem:[%s727 + $0x250] sm:$0xff]
        %v3948 = vld [vmem:[%s727 + $0x258] sm:$0xff]
        %v3949 = vld [vmem:[%s727 + $0x260] sm:$0xff]
        %v3950 = vld [vmem:[%s727 + $0x268] sm:$0xff]
        %v3951 = vld [vmem:[%s727 + $0x270] sm:$0xff]
        %v3952 = vld [vmem:[%s727 + $0x278] sm:$0xff]
        %v3953 = vld [vmem:[%s727 + $0x280] sm:$0xff]
        %v3954 = vld [vmem:[%s727 + $0x288] sm:$0xff]
        %v3955 = vld [vmem:[%s727 + $0x290] sm:$0xff]
        %v3956 = vld [vmem:[%s727 + $0x298] sm:$0xff]
        %v3957 = vld [vmem:[%s727 + $0x2a0] sm:$0xff]
        %v3958 = vld [vmem:[%s727 + $0x2a8] sm:$0xff]
        %v3959 = vld [vmem:[%s727 + $0x2b0] sm:$0xff]
        %v3960 = vld [vmem:[%s727 + $0x2b8] sm:$0xff]
        %v3961 = vld [vmem:[%s727 + $0x2c0] sm:$0xff]
        %v3962 = vld [vmem:[%s727 + $0x2c8] sm:$0xff]
        %v3963 = vld [vmem:[%s727 + $0x2d0] sm:$0xff]
        %v3964 = vld [vmem:[%s727 + $0x2d8] sm:$0xff]
        %v3965 = vld [vmem:[%s727 + $0x2e0] sm:$0xff]
        %v3966 = vld [vmem:[%s727 + $0x2e8] sm:$0xff]
        %v3967 = vld [vmem:[%s727 + $0x2f0] sm:$0xff]
        %v3968 = vld [vmem:[%s727 + $0x2f8] sm:$0xff]
        %v3969 = vld [vmem:[%s727 + $0x300] sm:$0xff]
        %v3970 = vld [vmem:[%s727 + $0x308] sm:$0xff]
        %v3971 = vld [vmem:[%s727 + $0x310] sm:$0xff]
        %v3972 = vld [vmem:[%s727 + $0x318] sm:$0xff]
        %v3973 = vld [vmem:[%s727 + $0x320] sm:$0xff]
        %v3974 = vld [vmem:[%s727 + $0x328] sm:$0xff]
        %v3975 = vld [vmem:[%s727 + $0x330] sm:$0xff]
        %v3976 = vld [vmem:[%s727 + $0x338] sm:$0xff]
        %v3977 = vld [vmem:[%s727 + $0x340] sm:$0xff]
        %v3978 = vld [vmem:[%s727 + $0x348] sm:$0xff]
        %v3979 = vld [vmem:[%s727 + $0x350] sm:$0xff]
        %v3980 = vld [vmem:[%s727 + $0x358] sm:$0xff]
        %v3981 = vld [vmem:[%s727 + $0x360] sm:$0xff]
        %v3982 = vld [vmem:[%s727 + $0x368] sm:$0xff]
        %v3983 = vld [vmem:[%s727 + $0x370] sm:$0xff]
        %v3984 = vld [vmem:[%s727 + $0x378] sm:$0xff]
        %v3985 = vld [vmem:[%s727 + $0x380] sm:$0xff]
        %v3986 = vld [vmem:[%s727 + $0x388] sm:$0xff]
        %v3987 = vld [vmem:[%s727 + $0x390] sm:$0xff]
        %v3988 = vld [vmem:[%s727 + $0x398] sm:$0xff]
        %v3989 = vld [vmem:[%s727 + $0x3a0] sm:$0xff]
        %v3990 = vld [vmem:[%s727 + $0x3a8] sm:$0xff]
        %v3991 = vld [vmem:[%s727 + $0x3b0] sm:$0xff]
        %v3992 = vld [vmem:[%s727 + $0x3b8] sm:$0xff]
        %v3993 = vld [vmem:[%s727 + $0x3c0] sm:$0xff]
        %v3994 = vld [vmem:[%s727 + $0x3c8] sm:$0xff]
        %v3995 = vld [vmem:[%s727 + $0x3d0] sm:$0xff]
        %v3996 = vld [vmem:[%s727 + $0x3d8] sm:$0xff]
        %v3997 = vld [vmem:[%s727 + $0x3e0] sm:$0xff]
        %v3998 = vld [vmem:[%s727 + $0x3e8] sm:$0xff]
        %v3999 = vld [vmem:[%s727 + $0x3f0] sm:$0xff]
        %v4000 = vld [vmem:[%s727 + $0x3f8] sm:$0xff]
        %v4001 = vld [vmem:[%s727 + $0x400] sm:$0xff]
        %v4002 = vld [vmem:[%s727 + $0x408] sm:$0xff]
        %v4003 = vld [vmem:[%s727 + $0x410] sm:$0xff]
        %v4004 = vld [vmem:[%s727 + $0x418] sm:$0xff]
        %v4005 = vld [vmem:[%s727 + $0x420] sm:$0xff]
        %v4006 = vld [vmem:[%s727 + $0x428] sm:$0xff]
        %v4007 = vld [vmem:[%s727 + $0x430] sm:$0xff]
        %v4008 = vld [vmem:[%s727 + $0x438] sm:$0xff]
        %v4009 = vld [vmem:[%s727 + $0x440] sm:$0xff]
        %v4010 = vld [vmem:[%s727 + $0x448] sm:$0xff]
        %v4011 = vld [vmem:[%s727 + $0x450] sm:$0xff]
        %v4012 = vld [vmem:[%s727 + $0x458] sm:$0xff]
        %v4013 = vld [vmem:[%s727 + $0x460] sm:$0xff]
        %v4014 = vld [vmem:[%s727 + $0x468] sm:$0xff]
        %v4015 = vld [vmem:[%s727 + $0x470] sm:$0xff]
        %v4016 = vld [vmem:[%s727 + $0x478] sm:$0xff]
        %v4017 = vld [vmem:[%s727 + $0x480] sm:$0xff]
        %v4018 = vld [vmem:[%s727 + $0x488] sm:$0xff]
        %v4019 = vld [vmem:[%s727 + $0x490] sm:$0xff]
        %v4020 = vld [vmem:[%s727 + $0x498] sm:$0xff]
        %v4021 = vld [vmem:[%s727 + $0x4a0] sm:$0xff]
        %v4022 = vld [vmem:[%s727 + $0x4a8] sm:$0xff]
        %v4023 = vld [vmem:[%s727 + $0x4b0] sm:$0xff]
        %v4024 = vld [vmem:[%s727 + $0x4b8] sm:$0xff]
        %v4025 = vld [vmem:[%s727 + $0x4c0] sm:$0xff]
        %v4026 = vld [vmem:[%s727 + $0x4c8] sm:$0xff]
        %v4027 = vld [vmem:[%s727 + $0x4d0] sm:$0xff]
        %v4028 = vld [vmem:[%s727 + $0x4d8] sm:$0xff]
        %v4029 = vld [vmem:[%s727 + $0x4e0] sm:$0xff]
        %v4030 = vld [vmem:[%s727 + $0x4e8] sm:$0xff]
        %v4031 = vld [vmem:[%s727 + $0x4f0] sm:$0xff]
        %v4032 = vld [vmem:[%s727 + $0x4f8] sm:$0xff]
        %v4033 = vld [vmem:[%s727 + $0x500] sm:$0xff]
        %v4034 = vld [vmem:[%s727 + $0x508] sm:$0xff]
        %v4035 = vld [vmem:[%s727 + $0x510] sm:$0xff]
        %v4036 = vld [vmem:[%s727 + $0x518] sm:$0xff]
        %v4037 = vld [vmem:[%s727 + $0x520] sm:$0xff]
        %v4038 = vld [vmem:[%s727 + $0x528] sm:$0xff]
        %v4039 = vld [vmem:[%s727 + $0x530] sm:$0xff]
        %v4040 = vld [vmem:[%s727 + $0x538] sm:$0xff]
        %v4041 = vld [vmem:[%s727 + $0x540] sm:$0xff]
        %v4042 = vld [vmem:[%s727 + $0x548] sm:$0xff]
        %v4043 = vld [vmem:[%s727 + $0x550] sm:$0xff]
        %v4044 = vld [vmem:[%s727 + $0x558] sm:$0xff]
        %v4045 = vld [vmem:[%s727 + $0x560] sm:$0xff]
        %v4046 = vld [vmem:[%s727 + $0x568] sm:$0xff]
        %v4047 = vld [vmem:[%s727 + $0x570] sm:$0xff]
        %v4048 = vld [vmem:[%s727 + $0x578] sm:$0xff]
        %v4049 = vld [vmem:[%s727 + $0x580] sm:$0xff]
        %v4050 = vld [vmem:[%s727 + $0x588] sm:$0xff]
        %v4051 = vld [vmem:[%s727 + $0x590] sm:$0xff]
        %v4052 = vld [vmem:[%s727 + $0x598] sm:$0xff]
        %v4053 = vld [vmem:[%s727 + $0x5a0] sm:$0xff]
        %v4054 = vld [vmem:[%s727 + $0x5a8] sm:$0xff]
        %v4055 = vld [vmem:[%s727 + $0x5b0] sm:$0xff]
        %v4056 = vld [vmem:[%s727 + $0x5b8] sm:$0xff]
        %v4057 = vld [vmem:[%s727 + $0x5c0] sm:$0xff]
        %v4058 = vld [vmem:[%s727 + $0x5c8] sm:$0xff]
        %v4059 = vld [vmem:[%s727 + $0x5d0] sm:$0xff]
        %v4060 = vld [vmem:[%s727 + $0x5d8] sm:$0xff]
        %v4061 = vld [vmem:[%s727 + $0x5e0] sm:$0xff]
        %v4062 = vld [vmem:[%s727 + $0x5e8] sm:$0xff]
        %v4063 = vld [vmem:[%s727 + $0x5f0] sm:$0xff]
        %v4064 = vld [vmem:[%s727 + $0x5f8] sm:$0xff]
        %v4065 = vld [vmem:[%s727 + $0x600] sm:$0xff]
        %v4066 = vld [vmem:[%s727 + $0x608] sm:$0xff]
        %v4067 = vld [vmem:[%s727 + $0x610] sm:$0xff]
        %v4068 = vld [vmem:[%s727 + $0x618] sm:$0xff]
        %v4069 = vld [vmem:[%s727 + $0x620] sm:$0xff]
        %v4070 = vld [vmem:[%s727 + $0x628] sm:$0xff]
        %v4071 = vld [vmem:[%s727 + $0x630] sm:$0xff]
        %v4072 = vld [vmem:[%s727 + $0x638] sm:$0xff]
        %v4073 = vld [vmem:[%s727 + $0x640] sm:$0xff]
        %v4074 = vld [vmem:[%s727 + $0x648] sm:$0xff]
        %v4075 = vld [vmem:[%s727 + $0x650] sm:$0xff]
        %v4076 = vld [vmem:[%s727 + $0x658] sm:$0xff]
        %v4077 = vld [vmem:[%s727 + $0x660] sm:$0xff]
        %v4078 = vld [vmem:[%s727 + $0x668] sm:$0xff]
        %v4079 = vld [vmem:[%s727 + $0x670] sm:$0xff]
        %v4080 = vld [vmem:[%s727 + $0x678] sm:$0xff]
        %v4081 = vld [vmem:[%s727 + $0x680] sm:$0xff]
        %v4082 = vld [vmem:[%s727 + $0x688] sm:$0xff]
        %v4083 = vld [vmem:[%s727 + $0x690] sm:$0xff]
        %v4084 = vld [vmem:[%s727 + $0x698] sm:$0xff]
        %v4085 = vld [vmem:[%s727 + $0x6a0] sm:$0xff]
        %v4086 = vld [vmem:[%s727 + $0x6a8] sm:$0xff]
        %v4087 = vld [vmem:[%s727 + $0x6b0] sm:$0xff]
        %v4088 = vld [vmem:[%s727 + $0x6b8] sm:$0xff]
        %v4089 = vld [vmem:[%s727 + $0x6c0] sm:$0xff]
        %v4090 = vld [vmem:[%s727 + $0x6c8] sm:$0xff]
        %v4091 = vld [vmem:[%s727 + $0x6d0] sm:$0xff]
        %v4092 = vld [vmem:[%s727 + $0x6d8] sm:$0xff]
        %v4093 = vld [vmem:[%s727 + $0x6e0] sm:$0xff]
        %v4094 = vld [vmem:[%s727 + $0x6e8] sm:$0xff]
        %v4095 = vld [vmem:[%s727 + $0x6f0] sm:$0xff]
        %v4096 = vld [vmem:[%s727 + $0x6f8] sm:$0xff]
        %v4097 = vld [vmem:[%s727 + $0x700] sm:$0xff]
        %v4098 = vld [vmem:[%s727 + $0x708] sm:$0xff]
        %v4099 = vld [vmem:[%s727 + $0x710] sm:$0xff]
        %v4100 = vld [vmem:[%s727 + $0x718] sm:$0xff]
        %v4101 = vld [vmem:[%s727 + $0x720] sm:$0xff]
        %v4102 = vld [vmem:[%s727 + $0x728] sm:$0xff]
        %v4103 = vld [vmem:[%s727 + $0x730] sm:$0xff]
        %v4104 = vld [vmem:[%s727 + $0x738] sm:$0xff]
        %v4105 = vld [vmem:[%s727 + $0x740] sm:$0xff]
        %v4106 = vld [vmem:[%s727 + $0x748] sm:$0xff]
        %v4107 = vld [vmem:[%s727 + $0x750] sm:$0xff]
        %v4108 = vld [vmem:[%s727 + $0x758] sm:$0xff]
        %v4109 = vld [vmem:[%s727 + $0x760] sm:$0xff]
        %v4110 = vld [vmem:[%s727 + $0x768] sm:$0xff]
        %v4111 = vld [vmem:[%s727 + $0x770] sm:$0xff]
        %v4112 = vld [vmem:[%s727 + $0x778] sm:$0xff]
        %v4113 = vld [vmem:[%s727 + $0x780] sm:$0xff]
        %v4114 = vld [vmem:[%s727 + $0x788] sm:$0xff]
        %v4115 = vld [vmem:[%s727 + $0x790] sm:$0xff]
        %v4116 = vld [vmem:[%s727 + $0x798] sm:$0xff]
        %v4117 = vld [vmem:[%s727 + $0x7a0] sm:$0xff]
        %v4118 = vld [vmem:[%s727 + $0x7a8] sm:$0xff]
        %v4119 = vld [vmem:[%s727 + $0x7b0] sm:$0xff]
        %v4120 = vld [vmem:[%s727 + $0x7b8] sm:$0xff]
        %v4121 = vld [vmem:[%s727 + $0x7c0] sm:$0xff]
        %v4122 = vld [vmem:[%s727 + $0x7c8] sm:$0xff]
        %v4123 = vld [vmem:[%s727 + $0x7d0] sm:$0xff]
        %v4124 = vld [vmem:[%s727 + $0x7d8] sm:$0xff]
        %v4125 = vld [vmem:[%s727 + $0x7e0] sm:$0xff]
        %v4126 = vld [vmem:[%s727 + $0x7e8] sm:$0xff]
        %v4127 = vld [vmem:[%s727 + $0x7f0] sm:$0xff]
        %v4128 = vld [vmem:[%s727 + $0x7f8] sm:$0xff]
        %4129 = vmatprep.subr.mxu0 0.0
        %4130 = vmatpush1.msra.mxu0 %v3888
        %4131 = vmatprep.subr.mxu0 0.0
        %4132 = vmatpush1.msra.mxu0 %v3887
        %4133 = vmatprep.subr.mxu0 0.0
        %4134 = vmatpush1.msra.mxu0 %v3886
        %4135 = vmatprep.subr.mxu0 0.0
        %4136 = vmatpush1.msra.mxu0 %v3885
        %4137 = vmatprep.subr.mxu0 0.0
        %4138 = vmatpush1.msra.mxu0 %v3884
        %4139 = vmatprep.subr.mxu0 0.0
        %4140 = vmatpush1.msra.mxu0 %v3883
        %4141 = vmatprep.subr.mxu0 0.0
        %4142 = vmatpush1.msra.mxu0 %v3882
        %4143 = vmatprep.subr.mxu0 0.0
        %4144 = vmatpush1.msra.mxu0 %v3881
        %4145 = vmatprep.subr.mxu0 0.0
        %4146 = vmatpush1.msra.mxu0 %v3880
        %4147 = vmatprep.subr.mxu0 0.0
        %4148 = vmatpush1.msra.mxu0 %v3879
        %4149 = vmatprep.subr.mxu0 0.0
        %4150 = vmatpush1.msra.mxu0 %v3878
        %4151 = vmatprep.subr.mxu0 0.0
        %4152 = vmatpush1.msra.mxu0 %v3877
        %4153 = vmatprep.subr.mxu0 0.0
        %4154 = vmatpush1.msra.mxu0 %v3876
        %4155 = vmatprep.subr.mxu0 0.0
        %4156 = vmatpush1.msra.mxu0 %v3875
        %4157 = vmatprep.subr.mxu0 0.0
        %4158 = vmatpush1.msra.mxu0 %v3874
        %4159 = vmatprep.subr.mxu0 0.0
        %4160 = vmatpush1.msra.mxu0 %v3873
        %4161 = vmatprep.subr.mxu0 0.0
        %4162 = vmatpush2.msra.mxu0 %v3904
        %4163 = vmatprep.subr.mxu0 0.0
        %4164 = vmatpush2.msra.mxu0 %v3903
        %4165 = vmatprep.subr.mxu0 0.0
        %4166 = vmatpush2.msra.mxu0 %v3902
        %4167 = vmatprep.subr.mxu0 0.0
        %4168 = vmatpush2.msra.mxu0 %v3901
        %4169 = vmatprep.subr.mxu0 0.0
        %4170 = vmatpush2.msra.mxu0 %v3900
        %4171 = vmatprep.subr.mxu0 0.0
        %4172 = vmatpush2.msra.mxu0 %v3899
        %4173 = vmatprep.subr.mxu0 0.0
        %4174 = vmatpush2.msra.mxu0 %v3898
        %4175 = vmatprep.subr.mxu0 0.0
        %4176 = vmatpush2.msra.mxu0 %v3897
        %4177 = vmatprep.subr.mxu0 0.0
        %4178 = vmatpush2.msra.mxu0 %v3896
        %4179 = vmatprep.subr.mxu0 0.0
        %4180 = vmatpush2.msra.mxu0 %v3895
        %4181 = vmatprep.subr.mxu0 0.0
        %4182 = vmatpush2.msra.mxu0 %v3894
        %4183 = vmatprep.subr.mxu0 0.0
        %4184 = vmatpush2.msra.mxu0 %v3893
        %4185 = vmatprep.subr.mxu0 0.0
        %4186 = vmatpush2.msra.mxu0 %v3892
        %4187 = vmatprep.subr.mxu0 0.0
        %4188 = vmatpush2.msra.mxu0 %v3891
        %4189 = vmatprep.subr.mxu0 0.0
        %4190 = vmatpush2.msra.mxu0 %v3890
        %4191 = vmatprep.subr.mxu0 0.0
        %4192 = vmatpush2.msra.mxu0 %v3889
        %4193 = vmatprep.mubr.f32.mxu0 %v3858
        %4194 = vmatmul.mubr.f32.gmra.mxu0 %v3857
        %v4195 = vpop.f32.mrf.mxu0
        %v4196 = vadd.f32 0.0, %v4195
        %v4197 = vpop.f32.mrf.mxu0
        %4198 = vdwg.mxu0
        %4199 = vmatprep.subr.mxu0 0.0
        %4200 = vmatpush1.msra.mxu0 %v3920
        %4201 = vmatprep.subr.mxu0 0.0
        %4202 = vmatpush1.msra.mxu0 %v3919
        %4203 = vmatprep.subr.mxu0 0.0
        %4204 = vmatpush1.msra.mxu0 %v3918
        %4205 = vmatprep.subr.mxu0 0.0
        %4206 = vmatpush1.msra.mxu0 %v3917
        %4207 = vmatprep.subr.mxu0 0.0
        %4208 = vmatpush1.msra.mxu0 %v3916
        %4209 = vmatprep.subr.mxu0 0.0
        %4210 = vmatpush1.msra.mxu0 %v3915
        %4211 = vmatprep.subr.mxu0 0.0
        %4212 = vmatpush1.msra.mxu0 %v3914
        %4213 = vmatprep.subr.mxu0 0.0
        %4214 = vmatpush1.msra.mxu0 %v3913
        %4215 = vmatprep.subr.mxu0 0.0
        %4216 = vmatpush1.msra.mxu0 %v3912
        %4217 = vmatprep.subr.mxu0 0.0
        %4218 = vmatpush1.msra.mxu0 %v3911
        %4219 = vmatprep.subr.mxu0 0.0
        %4220 = vmatpush1.msra.mxu0 %v3910
        %4221 = vmatprep.subr.mxu0 0.0
        %4222 = vmatpush1.msra.mxu0 %v3909
        %4223 = vmatprep.subr.mxu0 0.0
        %4224 = vmatpush1.msra.mxu0 %v3908
        %4225 = vmatprep.subr.mxu0 0.0
        %4226 = vmatpush1.msra.mxu0 %v3907
        %4227 = vmatprep.subr.mxu0 0.0
        %4228 = vmatpush1.msra.mxu0 %v3906
        %4229 = vmatprep.subr.mxu0 0.0
        %4230 = vmatpush1.msra.mxu0 %v3905
        %4231 = vmatprep.subr.mxu0 0.0
        %4232 = vmatpush2.msra.mxu0 %v3936
        %4233 = vmatprep.subr.mxu0 0.0
        %4234 = vmatpush2.msra.mxu0 %v3935
        %4235 = vmatprep.subr.mxu0 0.0
        %4236 = vmatpush2.msra.mxu0 %v3934
        %4237 = vmatprep.subr.mxu0 0.0
        %4238 = vmatpush2.msra.mxu0 %v3933
        %4239 = vmatprep.subr.mxu0 0.0
        %4240 = vmatpush2.msra.mxu0 %v3932
        %4241 = vmatprep.subr.mxu0 0.0
        %4242 = vmatpush2.msra.mxu0 %v3931
        %4243 = vmatprep.subr.mxu0 0.0
        %4244 = vmatpush2.msra.mxu0 %v3930
        %4245 = vmatprep.subr.mxu0 0.0
        %4246 = vmatpush2.msra.mxu0 %v3929
        %4247 = vmatprep.subr.mxu0 0.0
        %4248 = vmatpush2.msra.mxu0 %v3928
        %4249 = vmatprep.subr.mxu0 0.0
        %4250 = vmatpush2.msra.mxu0 %v3927
        %4251 = vmatprep.subr.mxu0 0.0
        %4252 = vmatpush2.msra.mxu0 %v3926
        %4253 = vmatprep.subr.mxu0 0.0
        %4254 = vmatpush2.msra.mxu0 %v3925
        %4255 = vmatprep.subr.mxu0 0.0
        %4256 = vmatpush2.msra.mxu0 %v3924
        %4257 = vmatprep.subr.mxu0 0.0
        %4258 = vmatpush2.msra.mxu0 %v3923
        %4259 = vmatprep.subr.mxu0 0.0
        %4260 = vmatpush2.msra.mxu0 %v3922
        %4261 = vmatprep.subr.mxu0 0.0
        %4262 = vmatpush2.msra.mxu0 %v3921
        %4263 = vmatprep.mubr.f32.mxu0 %v3860
        %4264 = vmatmul.mubr.f32.gmra.mxu0 %v3859
        %v4265 = vpop.f32.mrf.mxu0
        %v4266 = vadd.f32 %v4196, %v4265
        %v4267 = vpop.f32.mrf.mxu0
        %4268 = vdwg.mxu0
        %4269 = vmatprep.subr.mxu0 0.0
        %4270 = vmatpush1.msra.mxu0 %v3952
        %4271 = vmatprep.subr.mxu0 0.0
        %4272 = vmatpush1.msra.mxu0 %v3951
        %4273 = vmatprep.subr.mxu0 0.0
        %4274 = vmatpush1.msra.mxu0 %v3950
        %4275 = vmatprep.subr.mxu0 0.0
        %4276 = vmatpush1.msra.mxu0 %v3949
        %4277 = vmatprep.subr.mxu0 0.0
        %4278 = vmatpush1.msra.mxu0 %v3948
        %4279 = vmatprep.subr.mxu0 0.0
        %4280 = vmatpush1.msra.mxu0 %v3947
        %4281 = vmatprep.subr.mxu0 0.0
        %4282 = vmatpush1.msra.mxu0 %v3946
        %4283 = vmatprep.subr.mxu0 0.0
        %4284 = vmatpush1.msra.mxu0 %v3945
        %4285 = vmatprep.subr.mxu0 0.0
        %4286 = vmatpush1.msra.mxu0 %v3944
        %4287 = vmatprep.subr.mxu0 0.0
        %4288 = vmatpush1.msra.mxu0 %v3943
        %4289 = vmatprep.subr.mxu0 0.0
        %4290 = vmatpush1.msra.mxu0 %v3942
        %4291 = vmatprep.subr.mxu0 0.0
        %4292 = vmatpush1.msra.mxu0 %v3941
        %4293 = vmatprep.subr.mxu0 0.0
        %4294 = vmatpush1.msra.mxu0 %v3940
        %4295 = vmatprep.subr.mxu0 0.0
        %4296 = vmatpush1.msra.mxu0 %v3939
        %4297 = vmatprep.subr.mxu0 0.0
        %4298 = vmatpush1.msra.mxu0 %v3938
        %4299 = vmatprep.subr.mxu0 0.0
        %4300 = vmatpush1.msra.mxu0 %v3937
        %4301 = vmatprep.subr.mxu0 0.0
        %4302 = vmatpush2.msra.mxu0 %v3968
        %4303 = vmatprep.subr.mxu0 0.0
        %4304 = vmatpush2.msra.mxu0 %v3967
        %4305 = vmatprep.subr.mxu0 0.0
        %4306 = vmatpush2.msra.mxu0 %v3966
        %4307 = vmatprep.subr.mxu0 0.0
        %4308 = vmatpush2.msra.mxu0 %v3965
        %4309 = vmatprep.subr.mxu0 0.0
        %4310 = vmatpush2.msra.mxu0 %v3964
        %4311 = vmatprep.subr.mxu0 0.0
        %4312 = vmatpush2.msra.mxu0 %v3963
        %4313 = vmatprep.subr.mxu0 0.0
        %4314 = vmatpush2.msra.mxu0 %v3962
        %4315 = vmatprep.subr.mxu0 0.0
        %4316 = vmatpush2.msra.mxu0 %v3961
        %4317 = vmatprep.subr.mxu0 0.0
        %4318 = vmatpush2.msra.mxu0 %v3960
        %4319 = vmatprep.subr.mxu0 0.0
        %4320 = vmatpush2.msra.mxu0 %v3959
        %4321 = vmatprep.subr.mxu0 0.0
        %4322 = vmatpush2.msra.mxu0 %v3958
        %4323 = vmatprep.subr.mxu0 0.0
        %4324 = vmatpush2.msra.mxu0 %v3957
        %4325 = vmatprep.subr.mxu0 0.0
        %4326 = vmatpush2.msra.mxu0 %v3956
        %4327 = vmatprep.subr.mxu0 0.0
        %4328 = vmatpush2.msra.mxu0 %v3955
        %4329 = vmatprep.subr.mxu0 0.0
        %4330 = vmatpush2.msra.mxu0 %v3954
        %4331 = vmatprep.subr.mxu0 0.0
        %4332 = vmatpush2.msra.mxu0 %v3953
        %4333 = vmatprep.mubr.f32.mxu0 %v3862
        %4334 = vmatmul.mubr.f32.gmra.mxu0 %v3861
        %v4335 = vpop.f32.mrf.mxu0
        %v4336 = vadd.f32 %v4266, %v4335
        %v4337 = vpop.f32.mrf.mxu0
        %4338 = vdwg.mxu0
        %4339 = vmatprep.subr.mxu0 0.0
        %4340 = vmatpush1.msra.mxu0 %v3984
        %4341 = vmatprep.subr.mxu0 0.0
        %4342 = vmatpush1.msra.mxu0 %v3983
        %4343 = vmatprep.subr.mxu0 0.0
        %4344 = vmatpush1.msra.mxu0 %v3982
        %4345 = vmatprep.subr.mxu0 0.0
        %4346 = vmatpush1.msra.mxu0 %v3981
        %4347 = vmatprep.subr.mxu0 0.0
        %4348 = vmatpush1.msra.mxu0 %v3980
        %4349 = vmatprep.subr.mxu0 0.0
        %4350 = vmatpush1.msra.mxu0 %v3979
        %4351 = vmatprep.subr.mxu0 0.0
        %4352 = vmatpush1.msra.mxu0 %v3978
        %4353 = vmatprep.subr.mxu0 0.0
        %4354 = vmatpush1.msra.mxu0 %v3977
        %4355 = vmatprep.subr.mxu0 0.0
        %4356 = vmatpush1.msra.mxu0 %v3976
        %4357 = vmatprep.subr.mxu0 0.0
        %4358 = vmatpush1.msra.mxu0 %v3975
        %4359 = vmatprep.subr.mxu0 0.0
        %4360 = vmatpush1.msra.mxu0 %v3974
        %4361 = vmatprep.subr.mxu0 0.0
        %4362 = vmatpush1.msra.mxu0 %v3973
        %4363 = vmatprep.subr.mxu0 0.0
        %4364 = vmatpush1.msra.mxu0 %v3972
        %4365 = vmatprep.subr.mxu0 0.0
        %4366 = vmatpush1.msra.mxu0 %v3971
        %4367 = vmatprep.subr.mxu0 0.0
        %4368 = vmatpush1.msra.mxu0 %v3970
        %4369 = vmatprep.subr.mxu0 0.0
        %4370 = vmatpush1.msra.mxu0 %v3969
        %4371 = vmatprep.subr.mxu0 0.0
        %4372 = vmatpush2.msra.mxu0 %v4000
        %4373 = vmatprep.subr.mxu0 0.0
        %4374 = vmatpush2.msra.mxu0 %v3999
        %4375 = vmatprep.subr.mxu0 0.0
        %4376 = vmatpush2.msra.mxu0 %v3998
        %4377 = vmatprep.subr.mxu0 0.0
        %4378 = vmatpush2.msra.mxu0 %v3997
        %4379 = vmatprep.subr.mxu0 0.0
        %4380 = vmatpush2.msra.mxu0 %v3996
        %4381 = vmatprep.subr.mxu0 0.0
        %4382 = vmatpush2.msra.mxu0 %v3995
        %4383 = vmatprep.subr.mxu0 0.0
        %4384 = vmatpush2.msra.mxu0 %v3994
        %4385 = vmatprep.subr.mxu0 0.0
        %4386 = vmatpush2.msra.mxu0 %v3993
        %4387 = vmatprep.subr.mxu0 0.0
        %4388 = vmatpush2.msra.mxu0 %v3992
        %4389 = vmatprep.subr.mxu0 0.0
        %4390 = vmatpush2.msra.mxu0 %v3991
        %4391 = vmatprep.subr.mxu0 0.0
        %4392 = vmatpush2.msra.mxu0 %v3990
        %4393 = vmatprep.subr.mxu0 0.0
        %4394 = vmatpush2.msra.mxu0 %v3989
        %4395 = vmatprep.subr.mxu0 0.0
        %4396 = vmatpush2.msra.mxu0 %v3988
        %4397 = vmatprep.subr.mxu0 0.0
        %4398 = vmatpush2.msra.mxu0 %v3987
        %4399 = vmatprep.subr.mxu0 0.0
        %4400 = vmatpush2.msra.mxu0 %v3986
        %4401 = vmatprep.subr.mxu0 0.0
        %4402 = vmatpush2.msra.mxu0 %v3985
        %4403 = vmatprep.mubr.f32.mxu0 %v3864
        %4404 = vmatmul.mubr.f32.gmra.mxu0 %v3863
        %v4405 = vpop.f32.mrf.mxu0
        %v4406 = vadd.f32 %v4336, %v4405
        %v4407 = vpop.f32.mrf.mxu0
        %4408 = vdwg.mxu0
        %4409 = vmatprep.subr.mxu0 0.0
        %4410 = vmatpush1.msra.mxu0 %v4016
        %4411 = vmatprep.subr.mxu0 0.0
        %4412 = vmatpush1.msra.mxu0 %v4015
        %4413 = vmatprep.subr.mxu0 0.0
        %4414 = vmatpush1.msra.mxu0 %v4014
        %4415 = vmatprep.subr.mxu0 0.0
        %4416 = vmatpush1.msra.mxu0 %v4013
        %4417 = vmatprep.subr.mxu0 0.0
        %4418 = vmatpush1.msra.mxu0 %v4012
        %4419 = vmatprep.subr.mxu0 0.0
        %4420 = vmatpush1.msra.mxu0 %v4011
        %4421 = vmatprep.subr.mxu0 0.0
        %4422 = vmatpush1.msra.mxu0 %v4010
        %4423 = vmatprep.subr.mxu0 0.0
        %4424 = vmatpush1.msra.mxu0 %v4009
        %4425 = vmatprep.subr.mxu0 0.0
        %4426 = vmatpush1.msra.mxu0 %v4008
        %4427 = vmatprep.subr.mxu0 0.0
        %4428 = vmatpush1.msra.mxu0 %v4007
        %4429 = vmatprep.subr.mxu0 0.0
        %4430 = vmatpush1.msra.mxu0 %v4006
        %4431 = vmatprep.subr.mxu0 0.0
        %4432 = vmatpush1.msra.mxu0 %v4005
        %4433 = vmatprep.subr.mxu0 0.0
        %4434 = vmatpush1.msra.mxu0 %v4004
        %4435 = vmatprep.subr.mxu0 0.0
        %4436 = vmatpush1.msra.mxu0 %v4003
        %4437 = vmatprep.subr.mxu0 0.0
        %4438 = vmatpush1.msra.mxu0 %v4002
        %4439 = vmatprep.subr.mxu0 0.0
        %4440 = vmatpush1.msra.mxu0 %v4001
        %4441 = vmatprep.subr.mxu0 0.0
        %4442 = vmatpush2.msra.mxu0 %v4032
        %4443 = vmatprep.subr.mxu0 0.0
        %4444 = vmatpush2.msra.mxu0 %v4031
        %4445 = vmatprep.subr.mxu0 0.0
        %4446 = vmatpush2.msra.mxu0 %v4030
        %4447 = vmatprep.subr.mxu0 0.0
        %4448 = vmatpush2.msra.mxu0 %v4029
        %4449 = vmatprep.subr.mxu0 0.0
        %4450 = vmatpush2.msra.mxu0 %v4028
        %4451 = vmatprep.subr.mxu0 0.0
        %4452 = vmatpush2.msra.mxu0 %v4027
        %4453 = vmatprep.subr.mxu0 0.0
        %4454 = vmatpush2.msra.mxu0 %v4026
        %4455 = vmatprep.subr.mxu0 0.0
        %4456 = vmatpush2.msra.mxu0 %v4025
        %4457 = vmatprep.subr.mxu0 0.0
        %4458 = vmatpush2.msra.mxu0 %v4024
        %4459 = vmatprep.subr.mxu0 0.0
        %4460 = vmatpush2.msra.mxu0 %v4023
        %4461 = vmatprep.subr.mxu0 0.0
        %4462 = vmatpush2.msra.mxu0 %v4022
        %4463 = vmatprep.subr.mxu0 0.0
        %4464 = vmatpush2.msra.mxu0 %v4021
        %4465 = vmatprep.subr.mxu0 0.0
        %4466 = vmatpush2.msra.mxu0 %v4020
        %4467 = vmatprep.subr.mxu0 0.0
        %4468 = vmatpush2.msra.mxu0 %v4019
        %4469 = vmatprep.subr.mxu0 0.0
        %4470 = vmatpush2.msra.mxu0 %v4018
        %4471 = vmatprep.subr.mxu0 0.0
        %4472 = vmatpush2.msra.mxu0 %v4017
        %4473 = vmatprep.mubr.f32.mxu0 %v3866
        %4474 = vmatmul.mubr.f32.gmra.mxu0 %v3865
        %v4475 = vpop.f32.mrf.mxu0
        %v4476 = vadd.f32 %v4406, %v4475
        %v4477 = vpop.f32.mrf.mxu0
        %4478 = vdwg.mxu0
        %4479 = vmatprep.subr.mxu0 0.0
        %4480 = vmatpush1.msra.mxu0 %v4048
        %4481 = vmatprep.subr.mxu0 0.0
        %4482 = vmatpush1.msra.mxu0 %v4047
        %4483 = vmatprep.subr.mxu0 0.0
        %4484 = vmatpush1.msra.mxu0 %v4046
        %4485 = vmatprep.subr.mxu0 0.0
        %4486 = vmatpush1.msra.mxu0 %v4045
        %4487 = vmatprep.subr.mxu0 0.0
        %4488 = vmatpush1.msra.mxu0 %v4044
        %4489 = vmatprep.subr.mxu0 0.0
        %4490 = vmatpush1.msra.mxu0 %v4043
        %4491 = vmatprep.subr.mxu0 0.0
        %4492 = vmatpush1.msra.mxu0 %v4042
        %4493 = vmatprep.subr.mxu0 0.0
        %4494 = vmatpush1.msra.mxu0 %v4041
        %4495 = vmatprep.subr.mxu0 0.0
        %4496 = vmatpush1.msra.mxu0 %v4040
        %4497 = vmatprep.subr.mxu0 0.0
        %4498 = vmatpush1.msra.mxu0 %v4039
        %4499 = vmatprep.subr.mxu0 0.0
        %4500 = vmatpush1.msra.mxu0 %v4038
        %4501 = vmatprep.subr.mxu0 0.0
        %4502 = vmatpush1.msra.mxu0 %v4037
        %4503 = vmatprep.subr.mxu0 0.0
        %4504 = vmatpush1.msra.mxu0 %v4036
        %4505 = vmatprep.subr.mxu0 0.0
        %4506 = vmatpush1.msra.mxu0 %v4035
        %4507 = vmatprep.subr.mxu0 0.0
        %4508 = vmatpush1.msra.mxu0 %v4034
        %4509 = vmatprep.subr.mxu0 0.0
        %4510 = vmatpush1.msra.mxu0 %v4033
        %4511 = vmatprep.subr.mxu0 0.0
        %4512 = vmatpush2.msra.mxu0 %v4064
        %4513 = vmatprep.subr.mxu0 0.0
        %4514 = vmatpush2.msra.mxu0 %v4063
        %4515 = vmatprep.subr.mxu0 0.0
        %4516 = vmatpush2.msra.mxu0 %v4062
        %4517 = vmatprep.subr.mxu0 0.0
        %4518 = vmatpush2.msra.mxu0 %v4061
        %4519 = vmatprep.subr.mxu0 0.0
        %4520 = vmatpush2.msra.mxu0 %v4060
        %4521 = vmatprep.subr.mxu0 0.0
        %4522 = vmatpush2.msra.mxu0 %v4059
        %4523 = vmatprep.subr.mxu0 0.0
        %4524 = vmatpush2.msra.mxu0 %v4058
        %4525 = vmatprep.subr.mxu0 0.0
        %4526 = vmatpush2.msra.mxu0 %v4057
        %4527 = vmatprep.subr.mxu0 0.0
        %4528 = vmatpush2.msra.mxu0 %v4056
        %4529 = vmatprep.subr.mxu0 0.0
        %4530 = vmatpush2.msra.mxu0 %v4055
        %4531 = vmatprep.subr.mxu0 0.0
        %4532 = vmatpush2.msra.mxu0 %v4054
        %4533 = vmatprep.subr.mxu0 0.0
        %4534 = vmatpush2.msra.mxu0 %v4053
        %4535 = vmatprep.subr.mxu0 0.0
        %4536 = vmatpush2.msra.mxu0 %v4052
        %4537 = vmatprep.subr.mxu0 0.0
        %4538 = vmatpush2.msra.mxu0 %v4051
        %4539 = vmatprep.subr.mxu0 0.0
        %4540 = vmatpush2.msra.mxu0 %v4050
        %4541 = vmatprep.subr.mxu0 0.0
        %4542 = vmatpush2.msra.mxu0 %v4049
        %4543 = vmatprep.mubr.f32.mxu0 %v3868
        %4544 = vmatmul.mubr.f32.gmra.mxu0 %v3867
        %v4545 = vpop.f32.mrf.mxu0
        %v4546 = vadd.f32 %v4476, %v4545
        %v4547 = vpop.f32.mrf.mxu0
        %4548 = vdwg.mxu0
        %4549 = vmatprep.subr.mxu0 0.0
        %4550 = vmatpush1.msra.mxu0 %v4080
        %4551 = vmatprep.subr.mxu0 0.0
        %4552 = vmatpush1.msra.mxu0 %v4079
        %4553 = vmatprep.subr.mxu0 0.0
        %4554 = vmatpush1.msra.mxu0 %v4078
        %4555 = vmatprep.subr.mxu0 0.0
        %4556 = vmatpush1.msra.mxu0 %v4077
        %4557 = vmatprep.subr.mxu0 0.0
        %4558 = vmatpush1.msra.mxu0 %v4076
        %4559 = vmatprep.subr.mxu0 0.0
        %4560 = vmatpush1.msra.mxu0 %v4075
        %4561 = vmatprep.subr.mxu0 0.0
        %4562 = vmatpush1.msra.mxu0 %v4074
        %4563 = vmatprep.subr.mxu0 0.0
        %4564 = vmatpush1.msra.mxu0 %v4073
        %4565 = vmatprep.subr.mxu0 0.0
        %4566 = vmatpush1.msra.mxu0 %v4072
        %4567 = vmatprep.subr.mxu0 0.0
        %4568 = vmatpush1.msra.mxu0 %v4071
        %4569 = vmatprep.subr.mxu0 0.0
        %4570 = vmatpush1.msra.mxu0 %v4070
        %4571 = vmatprep.subr.mxu0 0.0
        %4572 = vmatpush1.msra.mxu0 %v4069
        %4573 = vmatprep.subr.mxu0 0.0
        %4574 = vmatpush1.msra.mxu0 %v4068
        %4575 = vmatprep.subr.mxu0 0.0
        %4576 = vmatpush1.msra.mxu0 %v4067
        %4577 = vmatprep.subr.mxu0 0.0
        %4578 = vmatpush1.msra.mxu0 %v4066
        %4579 = vmatprep.subr.mxu0 0.0
        %4580 = vmatpush1.msra.mxu0 %v4065
        %4581 = vmatprep.subr.mxu0 0.0
        %4582 = vmatpush2.msra.mxu0 %v4096
        %4583 = vmatprep.subr.mxu0 0.0
        %4584 = vmatpush2.msra.mxu0 %v4095
        %4585 = vmatprep.subr.mxu0 0.0
        %4586 = vmatpush2.msra.mxu0 %v4094
        %4587 = vmatprep.subr.mxu0 0.0
        %4588 = vmatpush2.msra.mxu0 %v4093
        %4589 = vmatprep.subr.mxu0 0.0
        %4590 = vmatpush2.msra.mxu0 %v4092
        %4591 = vmatprep.subr.mxu0 0.0
        %4592 = vmatpush2.msra.mxu0 %v4091
        %4593 = vmatprep.subr.mxu0 0.0
        %4594 = vmatpush2.msra.mxu0 %v4090
        %4595 = vmatprep.subr.mxu0 0.0
        %4596 = vmatpush2.msra.mxu0 %v4089
        %4597 = vmatprep.subr.mxu0 0.0
        %4598 = vmatpush2.msra.mxu0 %v4088
        %4599 = vmatprep.subr.mxu0 0.0
        %4600 = vmatpush2.msra.mxu0 %v4087
        %4601 = vmatprep.subr.mxu0 0.0
        %4602 = vmatpush2.msra.mxu0 %v4086
        %4603 = vmatprep.subr.mxu0 0.0
        %4604 = vmatpush2.msra.mxu0 %v4085
        %4605 = vmatprep.subr.mxu0 0.0
        %4606 = vmatpush2.msra.mxu0 %v4084
        %4607 = vmatprep.subr.mxu0 0.0
        %4608 = vmatpush2.msra.mxu0 %v4083
        %4609 = vmatprep.subr.mxu0 0.0
        %4610 = vmatpush2.msra.mxu0 %v4082
        %4611 = vmatprep.subr.mxu0 0.0
        %4612 = vmatpush2.msra.mxu0 %v4081
        %4613 = vmatprep.mubr.f32.mxu0 %v3870
        %4614 = vmatmul.mubr.f32.gmra.mxu0 %v3869
        %v4615 = vpop.f32.mrf.mxu0
        %v4616 = vadd.f32 %v4546, %v4615
        %v4617 = vpop.f32.mrf.mxu0
        %4618 = vdwg.mxu0
        %4619 = vmatprep.subr.mxu0 0.0
        %4620 = vmatpush1.msra.mxu0 %v4112
        %4621 = vmatprep.subr.mxu0 0.0
        %4622 = vmatpush1.msra.mxu0 %v4111
        %4623 = vmatprep.subr.mxu0 0.0
        %4624 = vmatpush1.msra.mxu0 %v4110
        %4625 = vmatprep.subr.mxu0 0.0
        %4626 = vmatpush1.msra.mxu0 %v4109
        %4627 = vmatprep.subr.mxu0 0.0
        %4628 = vmatpush1.msra.mxu0 %v4108
        %4629 = vmatprep.subr.mxu0 0.0
        %4630 = vmatpush1.msra.mxu0 %v4107
        %4631 = vmatprep.subr.mxu0 0.0
        %4632 = vmatpush1.msra.mxu0 %v4106
        %4633 = vmatprep.subr.mxu0 0.0
        %4634 = vmatpush1.msra.mxu0 %v4105
        %4635 = vmatprep.subr.mxu0 0.0
        %4636 = vmatpush1.msra.mxu0 %v4104
        %4637 = vmatprep.subr.mxu0 0.0
        %4638 = vmatpush1.msra.mxu0 %v4103
        %4639 = vmatprep.subr.mxu0 0.0
        %4640 = vmatpush1.msra.mxu0 %v4102
        %4641 = vmatprep.subr.mxu0 0.0
        %4642 = vmatpush1.msra.mxu0 %v4101
        %4643 = vmatprep.subr.mxu0 0.0
        %4644 = vmatpush1.msra.mxu0 %v4100
        %4645 = vmatprep.subr.mxu0 0.0
        %4646 = vmatpush1.msra.mxu0 %v4099
        %4647 = vmatprep.subr.mxu0 0.0
        %4648 = vmatpush1.msra.mxu0 %v4098
        %4649 = vmatprep.subr.mxu0 0.0
        %4650 = vmatpush1.msra.mxu0 %v4097
        %4651 = vmatprep.subr.mxu0 0.0
        %4652 = vmatpush2.msra.mxu0 %v4128
        %4653 = vmatprep.subr.mxu0 0.0
        %4654 = vmatpush2.msra.mxu0 %v4127
        %4655 = vmatprep.subr.mxu0 0.0
        %4656 = vmatpush2.msra.mxu0 %v4126
        %4657 = vmatprep.subr.mxu0 0.0
        %4658 = vmatpush2.msra.mxu0 %v4125
        %4659 = vmatprep.subr.mxu0 0.0
        %4660 = vmatpush2.msra.mxu0 %v4124
        %4661 = vmatprep.subr.mxu0 0.0
        %4662 = vmatpush2.msra.mxu0 %v4123
        %4663 = vmatprep.subr.mxu0 0.0
        %4664 = vmatpush2.msra.mxu0 %v4122
        %4665 = vmatprep.subr.mxu0 0.0
        %4666 = vmatpush2.msra.mxu0 %v4121
        %4667 = vmatprep.subr.mxu0 0.0
        %4668 = vmatpush2.msra.mxu0 %v4120
        %4669 = vmatprep.subr.mxu0 0.0
        %4670 = vmatpush2.msra.mxu0 %v4119
        %4671 = vmatprep.subr.mxu0 0.0
        %4672 = vmatpush2.msra.mxu0 %v4118
        %4673 = vmatprep.subr.mxu0 0.0
        %4674 = vmatpush2.msra.mxu0 %v4117
        %4675 = vmatprep.subr.mxu0 0.0
        %4676 = vmatpush2.msra.mxu0 %v4116
        %4677 = vmatprep.subr.mxu0 0.0
        %4678 = vmatpush2.msra.mxu0 %v4115
        %4679 = vmatprep.subr.mxu0 0.0
        %4680 = vmatpush2.msra.mxu0 %v4114
        %4681 = vmatprep.subr.mxu0 0.0
        %4682 = vmatpush2.msra.mxu0 %v4113
        %4683 = vmatprep.mubr.f32.mxu0 %v3872
        %4684 = vmatmul.mubr.f32.gmra.mxu0 %v3871
        %v4685 = vpop.f32.mrf.mxu0
        %v4686 = vadd.f32 %v4616, %v4685
        %v4687 = vpop.f32.mrf.mxu0
        %4688 = vdwg.mxu0
        %v4689 = vadd.f32 %v3032, %v4686
        %4690 = vadd.xlane.f32.xlu0 %v4689
        %v4691 = vpop.xlane.xlu0 %4690
        %v4692 = vmul.f32 %v4691, %v1929
        %v4693 = vsub.f32 %v4689, %v4692
        %v4694 = vmul.f32 %v4693, %v4693
        %4695 = vadd.xlane.f32.xlu0 %v4694
        %v4696 = vpop.xlane.xlu0 %4695
        %v4697 = vmul.f32 %v4696, %v1929
        %v4698 = vadd.f32 %v4697, 1e-05
        %v4699 = vrsqrt.pop %v4698
        %v4700 = vmul.f32 %v4693, %v4699
        %4701 = vst [vmem:[#allocation2] sm:$0xff] %v4700
        %p4702 = scmp.eq.s32.totalorder %s48, 1
        // Predicated region
        $region121: #{decoder_forward.1} parent=71 // pred_check
          %p4703 = pneg %p4702
        $region122: #{decoder_forward.1} parent=71 // pred_check_branch
          %4705 = sbr.rel (%p4703) target = $region124
        $region123: #{decoder_forward.1} parent=71 // pred_region
          %v4706 = vld [vmem:[#allocation18] sm:$0xff]
          %v4707 = vld [vmem:[#allocation18 + $0x8] sm:$0xff]
          %v4708 = vld [vmem:[#allocation18 + $0x10] sm:$0xff]
          %v4709 = vld [vmem:[#allocation18 + $0x18] sm:$0xff]
          %v4710 = vld [vmem:[#allocation18 + $0x20] sm:$0xff]
          %v4711 = vld [vmem:[#allocation18 + $0x28] sm:$0xff]
          %v4712 = vld [vmem:[#allocation18 + $0x30] sm:$0xff]
          %v4713 = vld [vmem:[#allocation18 + $0x38] sm:$0xff]
          %v4714 = vld [vmem:[#allocation18 + $0x40] sm:$0xff]
          %v4715 = vld [vmem:[#allocation18 + $0x48] sm:$0xff]
          %v4716 = vld [vmem:[#allocation18 + $0x50] sm:$0xff]
          %v4717 = vld [vmem:[#allocation18 + $0x58] sm:$0xff]
          %v4718 = vld [vmem:[#allocation18 + $0x60] sm:$0xff]
          %v4719 = vld [vmem:[#allocation18 + $0x68] sm:$0xff]
          %v4720 = vld [vmem:[#allocation18 + $0x70] sm:$0xff]
          %v4721 = vld [vmem:[#allocation18 + $0x78] sm:$0xff]
          %v4722 = vld [vmem:[#allocation20] sm:$0x1]
          %v4724 = vlaneseq
          %v4725 = vshrl.u32 %v4724, 7
          %v4726 = vsub.s32 0, %v4725
          %v4727 = vrot.slane %v4722, %v4726
          %4729 = vmatprep.subr.mxu0 0.0
          %4730 = vmatpush1.msra.mxu0 %v4721
          %4731 = vmatprep.subr.mxu0 0.0
          %4732 = vmatpush1.msra.mxu0 %v4720
          %4733 = vmatprep.subr.mxu0 0.0
          %4734 = vmatpush1.msra.mxu0 %v4719
          %4735 = vmatprep.subr.mxu0 0.0
          %4736 = vmatpush1.msra.mxu0 %v4718
          %4737 = vmatprep.subr.mxu0 0.0
          %4738 = vmatpush1.msra.mxu0 %v4717
          %4739 = vmatprep.subr.mxu0 0.0
          %4740 = vmatpush1.msra.mxu0 %v4716
          %4741 = vmatprep.subr.mxu0 0.0
          %4742 = vmatpush1.msra.mxu0 %v4715
          %4743 = vmatprep.subr.mxu0 0.0
          %4744 = vmatpush1.msra.mxu0 %v4714
          %4745 = vmatprep.subr.mxu0 0.0
          %4746 = vmatpush1.msra.mxu0 %v4713
          %4747 = vmatprep.subr.mxu0 0.0
          %4748 = vmatpush1.msra.mxu0 %v4712
          %4749 = vmatprep.subr.mxu0 0.0
          %4750 = vmatpush1.msra.mxu0 %v4711
          %4751 = vmatprep.subr.mxu0 0.0
          %4752 = vmatpush1.msra.mxu0 %v4710
          %4753 = vmatprep.subr.mxu0 0.0
          %4754 = vmatpush1.msra.mxu0 %v4709
          %4755 = vmatprep.subr.mxu0 0.0
          %4756 = vmatpush1.msra.mxu0 %v4708
          %4757 = vmatprep.subr.mxu0 0.0
          %4758 = vmatpush1.msra.mxu0 %v4707
          %4759 = vmatprep.subr.mxu0 0.0
          %4760 = vmatpush1.msra.mxu0 %v4706
          %4761 = vmatprep.subr.mxu0 0.0
          %4762 = vmatpush2.msra.mxu0 0.0
          %4763 = vmatprep.subr.mxu0 0.0
          %4764 = vmatpush2.msra.mxu0 0.0
          %4765 = vmatprep.subr.mxu0 0.0
          %4766 = vmatpush2.msra.mxu0 0.0
          %4767 = vmatprep.subr.mxu0 0.0
          %4768 = vmatpush2.msra.mxu0 0.0
          %4769 = vmatprep.subr.mxu0 0.0
          %4770 = vmatpush2.msra.mxu0 0.0
          %4771 = vmatprep.subr.mxu0 0.0
          %4772 = vmatpush2.msra.mxu0 0.0
          %4773 = vmatprep.subr.mxu0 0.0
          %4774 = vmatpush2.msra.mxu0 0.0
          %4775 = vmatprep.subr.mxu0 0.0
          %4776 = vmatpush2.msra.mxu0 0.0
          %4777 = vmatprep.subr.mxu0 0.0
          %4778 = vmatpush2.msra.mxu0 0.0
          %4779 = vmatprep.subr.mxu0 0.0
          %4780 = vmatpush2.msra.mxu0 0.0
          %4781 = vmatprep.subr.mxu0 0.0
          %4782 = vmatpush2.msra.mxu0 0.0
          %4783 = vmatprep.subr.mxu0 0.0
          %4784 = vmatpush2.msra.mxu0 0.0
          %4785 = vmatprep.subr.mxu0 0.0
          %4786 = vmatpush2.msra.mxu0 0.0
          %4787 = vmatprep.subr.mxu0 0.0
          %4788 = vmatpush2.msra.mxu0 0.0
          %4789 = vmatprep.subr.mxu0 0.0
          %4790 = vmatpush2.msra.mxu0 0.0
          %4791 = vmatprep.subr.mxu0 0.0
          %4792 = vmatpush2.msra.mxu0 0.0
          %4793 = vmatprep.mubr.f32.mxu0 0.0
          %4794 = vmatmul.mubr.f32.gmra.mxu0 %v4700
          %v4795 = vpop.f32.mrf.mxu0
          %v4796 = vadd.f32 %v4727, %v4795
          %v4797 = vpop.f32.mrf.mxu0
          %4798 = vdwg.mxu0
          %4799 = vst [vmem:[%s825] sm:$0xff] %v4796
        $region124: #{decoder_forward.1} parent=71 // pred_fallthru
          _
        %s4800 = sand.u32 %s391, 1
        %s4801 = scalar_lea.sflag [#allocation5], %s4800
        %s4802 = sand.u32 %s391, 1
        %s4803 = smul.addr %s4802, 8
        %s4804 = scalar_lea.vmem [#allocation21], %s4803
        // Predicated region
        $region125: #{decoder_forward.1} parent=71 // pred_check
          %p4805 = pneg %p401
        $region126: #{decoder_forward.1} parent=71 // pred_check_branch
          %4807 = sbr.rel (%p4805) target = $region128
        $region127: #{decoder_forward.1} parent=71 // pred_region
          %s4809 = ssub.s32 128, 128
          %4810 = vsyncadd %s4801, %s4809
          %s4811 = smul.addr %s47, 128
          %s4812 = scalar_lea.hbm %s13, %s4811
          %s4814 = sshll.u32 %s4804, 4
          %s4815 = int_to_ptr.vmem [resolvable:$true] %s4814
          %4817 = dma.vmem_to_hbm [thread:$0]  %s4815, 128, %s4812, %s4801
        $region128: #{decoder_forward.1} parent=71 // pred_fallthru
          _
      $region72: #{decoder_forward.1} parent=5 // pred_fallthru
        _
      %p4818 = scmp.le.s32.totalorder 2, %s38
      // Predicated region
      $region129: #{decoder_forward.1} parent=5 // pred_check
        %p4819 = pneg %p4818
      $region130: #{decoder_forward.1} parent=5 // pred_check_branch
        %4821 = sbr.rel (%p4819) target = $region132
      $region131: #{decoder_forward.1} parent=5 // pred_region
        %s4822 = ssub.s32 %s38, 2
        // Predicated region
        $region133: #{decoder_forward.1} parent=131 // pred_check
          %p4823 = pneg %p407
        $region134: #{decoder_forward.1} parent=131 // pred_check_branch
          %4825 = sbr.rel (%p4823) target = $region136
        $region135: #{decoder_forward.1} parent=131 // pred_region
          %s4826 = sand.u32 %s392, 1
          %s4827 = scalar_lea.sflag [#allocation5], %s4826
          %s4828 = sand.u32 %s392, 1
          %s4829 = smul.addr %s4828, 8
          %s4830 = scalar_lea.vmem [#allocation21], %s4829
          %4831 = dma.done %s4827, 128
        $region136: #{decoder_forward.1} parent=131 // pred_fallthru
          _
      $region132: #{decoder_forward.1} parent=5 // pred_fallthru
        _
    $region6: #{decoder_forward.1} parent=1 // loop_footer
      %s42 = sadd.s32 1, %s38
    $region7: #{decoder_forward.1} parent=1 // loop_footer_branch
      %37 = sbr.rel target = $region3
    $region8: #{decoder_forward.1} parent=1 // loop_exit
      _
    %4832 = vsyncpa [#allocation4], 1
    %s4833 = scalar_lea.sflag [#allocation4], 1
    %4834 = vsyncpa %s4833, 1
    %4835 = vsyncpa [#allocation7], 1
    %s4836 = scalar_lea.sflag [#allocation7], 1
    %4837 = vsyncpa %s4836, 1
    %4838 = vsyncpa [#allocation10], 1
    %s4839 = scalar_lea.sflag [#allocation10], 1
    %4840 = vsyncpa %s4839, 1
    %4841 = vsyncpa [#allocation13], 1
    %s4842 = scalar_lea.sflag [#allocation13], 1
    %4843 = vsyncpa %s4842, 1
    %4844 = vsyncpa [#allocation16], 1
    %s4845 = scalar_lea.sflag [#allocation16], 1
    %4846 = vsyncpa %s4845, 1
    %4847 = vsyncpa [#allocation19], 1
    %4848 = vsyncpa [#allocation5], 1
    %s4849 = scalar_lea.sflag [#allocation5], 1
    %4850 = vsyncpa %s4849, 1

</llo_original>
